<compile_context>
chip_gen: v6e
topology: v6e:2x2x1
jax: 0.10.0
libtpu: 0.0.40
codegen_flags: <defaults>
</compile_context>

<pallas_src>
import jax
import jax.numpy as jnp
from jax.experimental import pallas as pl
from jax.experimental.pallas import tpu as pltpu


# ------------------------------ fused Pallas kernel ------------------------------ #

def _fused_cnn_kernel(p_ref, wc_ref, bc_ref, wd_ref, bd_ref, o_ref):
    """Single grid=() invocation computes the whole forward pass.

    p_ref  : (B, P, KC)      im2col patches, rows ordered (oh, ow), cols (cin, kh, kw)
    wc_ref : (KC, Cout)      conv weight as a matmul operand
    bc_ref : (1, Cout)       conv bias
    wd_ref : (OUT, P, Cout)  dense weight, pre-permuted so no activation relayout is needed
    bd_ref : (1, OUT)        dense bias
    o_ref  : (B, OUT)        result
    """
    wc = wc_ref[...]                       # (KC, Cout)
    bc = bc_ref[...]                       # (1, Cout)
    wd = wd_ref[...]                       # (OUT, P, Cout)
    bd = bd_ref[0, :]                      # (OUT,)

    batch = o_ref.shape[0]
    for b in range(batch):                 # B is tiny & static -> unrolled
        pb = p_ref[b]                      # (P, KC) — contiguous VMEM load, no relayout
        # Conv as MXU matmul with fused bias + ReLU; stays resident in VMEM/vregs.
        act = jnp.maximum(
            jnp.dot(pb, wc, preferred_element_type=jnp.float32) + bc, 0.0)   # (P, Cout)
        # Dense layer: contract the (P, Cout) pair directly against the
        # pre-permuted weight — broadcast multiply + minor-axis reductions only.
        prod = act[None, :, :] * wd                    # (OUT, P, Cout)
        s = jnp.sum(jnp.sum(prod, axis=2), axis=1)     # (OUT,)
        o_ref[b, :] = s + bd


# --------------------------- one-time parameter prep ----------------------------- #

def prepare_params(params):
    """Convert PyTorch-layout params to kernel layout ONCE (outside the jit hot path)."""
    w_conv = jnp.asarray(params["w_conv"], jnp.float32)     # (Cout, Cin, KH, KW)  OIHW
    b_conv = jnp.asarray(params["b_conv"], jnp.float32)     # (Cout,)
    w_dense = jnp.asarray(params["w_dense"], jnp.float32)   # (OUT, Cout*OH*OW), flat order [Cout, OH, OW]
    b_dense = jnp.asarray(params["b_dense"], jnp.float32)   # (OUT,)

    Cout, Cin, KH, KW = w_conv.shape
    out_features = w_dense.shape[0]
    P = w_dense.shape[1] // Cout                             # OH*OW

    # im2col conv weight: (Cin*KH*KW, Cout), feature order [Cin, kh, kw].
    w_conv_mat = w_conv.reshape(Cout, Cin * KH * KW).T

    # Dense weight: PyTorch flatten order is [Cout, OH, OW]; permute to (OUT, P, Cout)
    # so the kernel contracts the conv activation (P, Cout) directly — no in-kernel
    # flatten / relayout of the activation is ever needed.
    w_dense_3d = w_dense.reshape(out_features, Cout, P).transpose(0, 2, 1)

    return {
        "w_conv_mat": w_conv_mat,                      # (Cin*9, Cout)
        "b_conv": b_conv.reshape(1, Cout),             # (1, Cout)
        "w_dense_3d": w_dense_3d,                      # (OUT, OH*OW, Cout)
        "b_dense": b_dense.reshape(1, out_features),   # (1, OUT)
    }


# ------------------------------ forward (jitted) --------------------------------- #

def my_cnn_forward(x, kp, *, stride=3, kernel_size=3):
    """Matches myCNN: conv(k=3, s=3) -> ReLU -> flatten -> linear, as ONE fused kernel."""
    B, Cin, H, W = x.shape
    assert H % stride == 0 and W % stride == 0, "spatial dims must be multiples of 3"
    OH, OW = H // stride, W // stride
    P = OH * OW
    KC = Cin * kernel_size * kernel_size
    Cout = kp["w_conv_mat"].shape[1]
    OUT = kp["w_dense_3d"].shape[0]

    # stride == kernel_size: im2col collapses to one reshape+transpose.  With
    # allow_input_fusion XLA folds this producer into the pallas input DMA, so no
    # standalone transpose dispatch / HBM round-trip for the patches array.
    patches = (x.reshape(B, Cin, OH, kernel_size, OW, kernel_size)
               .transpose(0, 2, 4, 1, 3, 5)
               .reshape(B, P, KC))

    return pl.pallas_call(
        _fused_cnn_kernel,
        out_shape=jax.ShapeDtypeStruct((B, OUT), jnp.float32),
        in_specs=[
            pl.BlockSpec((B, P, KC), lambda: (0, 0, 0)),
            pl.BlockSpec((KC, Cout), lambda: (0, 0)),
            pl.BlockSpec((1, Cout), lambda: (0, 0)),
            pl.BlockSpec((OUT, P, Cout), lambda: (0, 0, 0)),
            pl.BlockSpec((1, OUT), lambda: (0, 0)),
        ],
        out_specs=pl.BlockSpec((B, OUT), lambda: (0, 0)),
        compiler_params=pltpu.CompilerParams(
            allow_input_fusion=[True, False, False, False, False]),
    )(patches, kp["w_conv_mat"], kp["b_conv"], kp["w_dense_3d"], kp["b_dense"])


# ------------------------------ reference (JAX) ----------------------------------- #

def my_cnn_reference(x, params, *, stride=3):
    conv = jax.lax.conv_general_dilated(
        x, params["w_conv"], window_strides=(stride, stride), padding="VALID",
        dimension_numbers=("NCHW", "OIHW", "NCHW"))
    conv = jnp.maximum(conv + params["b_conv"].reshape(1, -1, 1, 1), 0.0)
    flat = conv.reshape(x.shape[0], -1)
    return flat @ params["w_dense"].T + params["b_dense"]


# ----------------------------------- main ----------------------------------------- #

if __name__ == "__main__":
    # Shapes implied by the module: conv(k=3, s=3) must yield 10 x 21 spatial so the
    # Linear(64*10*21, OUT_FEATURE) is consistent -> input spatial 30 x 63.
    B, Cin, H, W = 2, 4, 30, 63
    Cout = 64
    OUT_FEATURE = 8

    key = jax.random.PRNGKey(0)
    k_x, k_wc, k_bc, k_wd, k_bd = jax.random.split(key, 5)

    x = jax.random.normal(k_x, (B, Cin, H, W), dtype=jnp.float32)
    params = {
        "w_conv": 0.05 * jax.random.normal(k_wc, (Cout, Cin, 3, 3), dtype=jnp.float32),
        "b_conv": 0.05 * jax.random.normal(k_bc, (Cout,), dtype=jnp.float32),
        "w_dense": 0.01 * jax.random.normal(k_wd, (OUT_FEATURE, Cout * 10 * 21), dtype=jnp.float32),
        "b_dense": 0.01 * jax.random.normal(k_bd, (OUT_FEATURE,), dtype=jnp.float32),
    }

    # One-time parameter layout conversion (outside the jitted hot path).
    kparams = jax.tree_util.tree_map(jax.block_until_ready, prepare_params(params))

    fwd = jax.jit(my_cnn_forward)
    out = jax.block_until_ready(fwd(x, kparams))

    ref = my_cnn_reference(x, params)
    assert out.shape == (B, OUT_FEATURE), out.shape
    assert jnp.allclose(out, ref, rtol=1e-4, atol=1e-4), \
        f"max abs diff {jnp.max(jnp.abs(out - ref))}"

    print("KERNEL_OK")
</pallas_src>

<mosaic_0001>
module attributes {stable_mosaic.version = 11 : i64} {
  func.func @_fused_cnn_kernel(%arg0: memref<2x210x36xf32, #tpu.memory_space<vmem>>, %arg1: memref<36x64xf32, #tpu.memory_space<vmem>>, %arg2: memref<1x64xf32, #tpu.memory_space<vmem>>, %arg3: memref<8x210x64xf32, #tpu.memory_space<vmem>>, %arg4: memref<1x8xf32, #tpu.memory_space<vmem>>, %arg5: memref<2x8xf32, #tpu.memory_space<vmem>>) attributes {dimension_semantics = [], scalar_prefetch = 0 : i64, scratch_operands = 0 : i64, tpu.core_type = #tpu.core_type<tc>} {
    %c0 = arith.constant 0 : index
    %c0_0 = arith.constant 0 : index
    %0 = vector.load %arg1[%c0, %c0_0] : memref<36x64xf32, #tpu.memory_space<vmem>>, vector<36x64xf32>
    %c0_1 = arith.constant 0 : index
    %c0_2 = arith.constant 0 : index
    %1 = vector.load %arg2[%c0_1, %c0_2] : memref<1x64xf32, #tpu.memory_space<vmem>>, vector<1x64xf32>
    %c0_3 = arith.constant 0 : index
    %c0_4 = arith.constant 0 : index
    %c0_5 = arith.constant 0 : index
    %2 = vector.load %arg3[%c0_3, %c0_4, %c0_5] : memref<8x210x64xf32, #tpu.memory_space<vmem>>, vector<8x210x64xf32>
    %c0_6 = arith.constant 0 : index
    %c0_7 = arith.constant 0 : index
    %3 = vector.load %arg4[%c0_6, %c0_7] : memref<1x8xf32, #tpu.memory_space<vmem>>, vector<1x8xf32>
    %4 = vector.shape_cast %3 : vector<1x8xf32> to vector<8xf32>
    %c0_8 = arith.constant 0 : index
    %c0_9 = arith.constant 0 : index
    %c0_10 = arith.constant 0 : index
    %5 = vector.load %arg0[%c0_8, %c0_9, %c0_10] : memref<2x210x36xf32, #tpu.memory_space<vmem>>, vector<1x210x36xf32>
    %6 = vector.shape_cast %5 : vector<1x210x36xf32> to vector<210x36xf32>
    %cst = arith.constant dense<0.000000e+00> : vector<210x64xf32>
    %7 = tpu.matmul %6, %0, %cst {dimension_numbers = #tpu.dot_dimension_numbers<[1], [0], [0], [1], [0, 0, 1, 1], [], []>} : vector<210x36xf32>, vector<36x64xf32>, vector<210x64xf32> -> vector<210x64xf32>
    %8 = vector.broadcast %1 : vector<1x64xf32> to vector<210x64xf32>
    %9 = arith.addf %7, %8 : vector<210x64xf32>
    %cst_11 = arith.constant 0.000000e+00 : f32
    %10 = vector.broadcast %cst_11 : f32 to vector<210x64xf32>
    %11 = arith.maximumf %9, %10 : vector<210x64xf32>
    %12 = vector.shape_cast %11 : vector<210x64xf32> to vector<1x210x64xf32>
    %13 = vector.broadcast %12 : vector<1x210x64xf32> to vector<8x210x64xf32>
    %14 = arith.mulf %13, %2 : vector<8x210x64xf32>
    %cst_12 = arith.constant dense<0.000000e+00> : vector<8x210xf32>
    %15 = vector.multi_reduction <add>, %14, %cst_12 [2] : vector<8x210x64xf32> to vector<8x210xf32>
    %cst_13 = arith.constant dense<0.000000e+00> : vector<8xf32>
    %16 = vector.multi_reduction <add>, %15, %cst_13 [1] : vector<8x210xf32> to vector<8xf32>
    %17 = arith.addf %16, %4 : vector<8xf32>
    %c0_14 = arith.constant 0 : index
    %c0_15 = arith.constant 0 : index
    %18 = vector.load %arg5[%c0_14, %c0_15] : memref<2x8xf32, #tpu.memory_space<vmem>>, vector<1x8xf32>
    %19 = vector.shape_cast %18 : vector<1x8xf32> to vector<8xf32>
    %20 = vector.shape_cast %17 : vector<8xf32> to vector<1x8xf32>
    tpu.vector_store %arg5[%c0_14, %c0_15], %20 {strides = array<i32>} : memref<2x8xf32, #tpu.memory_space<vmem>>, vector<1x8xf32>,
    %c1 = arith.constant 1 : index
    %c0_16 = arith.constant 0 : index
    %c0_17 = arith.constant 0 : index
    %21 = vector.load %arg0[%c1, %c0_16, %c0_17] : memref<2x210x36xf32, #tpu.memory_space<vmem>>, vector<1x210x36xf32>
    %22 = vector.shape_cast %21 : vector<1x210x36xf32> to vector<210x36xf32>
    %cst_18 = arith.constant dense<0.000000e+00> : vector<210x64xf32>
    %23 = tpu.matmul %22, %0, %cst_18 {dimension_numbers = #tpu.dot_dimension_numbers<[1], [0], [0], [1], [0, 0, 1, 1], [], []>} : vector<210x36xf32>, vector<36x64xf32>, vector<210x64xf32> -> vector<210x64xf32>
    %24 = vector.broadcast %1 : vector<1x64xf32> to vector<210x64xf32>
    %25 = arith.addf %23, %24 : vector<210x64xf32>
    %cst_19 = arith.constant 0.000000e+00 : f32
    %26 = vector.broadcast %cst_19 : f32 to vector<210x64xf32>
    %27 = arith.maximumf %25, %26 : vector<210x64xf32>
    %28 = vector.shape_cast %27 : vector<210x64xf32> to vector<1x210x64xf32>
    %29 = vector.broadcast %28 : vector<1x210x64xf32> to vector<8x210x64xf32>
    %30 = arith.mulf %29, %2 : vector<8x210x64xf32>
    %cst_20 = arith.constant dense<0.000000e+00> : vector<8x210xf32>
    %31 = vector.multi_reduction <add>, %30, %cst_20 [2] : vector<8x210x64xf32> to vector<8x210xf32>
    %cst_21 = arith.constant dense<0.000000e+00> : vector<8xf32>
    %32 = vector.multi_reduction <add>, %31, %cst_21 [1] : vector<8x210xf32> to vector<8xf32>
    %33 = arith.addf %32, %4 : vector<8xf32>
    %c1_22 = arith.constant 1 : index
    %c0_23 = arith.constant 0 : index
    %34 = vector.load %arg5[%c1_22, %c0_23] : memref<2x8xf32, #tpu.memory_space<vmem>>, vector<1x8xf32>
    %35 = vector.shape_cast %34 : vector<1x8xf32> to vector<8xf32>
    %36 = vector.shape_cast %33 : vector<8xf32> to vector<1x8xf32>
    tpu.vector_store %arg5[%c1_22, %c0_23], %36 {strides = array<i32>} : memref<2x8xf32, #tpu.memory_space<vmem>>, vector<1x8xf32>,
    return
  }
}

</mosaic_0001>

<llo_original>
// kernel: my_cnn_forward.1
$region0: #{my_cnn_forward.1}
  #allocation0 [shape = 'u32[]', space=smem, size = 0x4, offset = 0x4, fixed_abs, tag = 'smem constant byte address 0x4 - core index']
  #allocation1 [shape = 'u32[144,128]{1,0:T(1,128)}', space=vmem, size = 0x12000, scoped, tag = 'internal scratch']
  %s0 = inlined_call_operand.vmem [shape: f32[2,210,36], index: 0, kind: input, shape index: {}]
  %s1 = inlined_call_operand.vmem [shape: f32[36,64], index: 1, kind: input, shape index: {}]
  %s2 = inlined_call_operand.vmem [shape: f32[1,64], index: 2, kind: input, shape index: {}]
  %s3 = inlined_call_operand.vmem [shape: f32[8,210,64], index: 3, kind: input, shape index: {}]
  %s4 = inlined_call_operand.vmem [shape: f32[1,8], index: 4, kind: input, shape index: {}]
  %s5 = inlined_call_operand.hbm [shape: f32[2,8], index: 5, kind: output, shape index: {}]
  %s6 = sld [smem:[#allocation0]]
  $region30: #{my_cnn_forward.1} parent=0
    _
  %s8 = ssub.s32 1, %s6
  %s9 = scalar_select 0, %s8, %s6
  $region1: #{my_cnn_forward.1} parent=0
    #allocation2 [shape = 'u8[1024]{0}', space=vmem, size = 0x400, scoped, tag = 'output window, operand 0, single buffered']
    #allocation3 [shape = 's32[1]{0}', space=sflag, size = 0x4, scoped, tag = 'scoped memory for my_cnn_forward.1']
    %10 = vsyncpa [#allocation3], 0
    // Predicated region
    $region2: #{my_cnn_forward.1} parent=1 // pred_check
      _
    $region3: #{my_cnn_forward.1} parent=1 // pred_check_branch
      %12 = sbr.rel (0) target = $region5
    $region4: #{my_cnn_forward.1} parent=1 // pred_region
      _
    $region5: #{my_cnn_forward.1} parent=1 // pred_fallthru
      _
    // Predicated region
    $region6: #{my_cnn_forward.1} parent=1 // pred_check
      _
    $region7: #{my_cnn_forward.1} parent=1 // pred_check_branch
      %14 = sbr.rel (0) target = $region9
    $region8: #{my_cnn_forward.1} parent=1 // pred_region
      _
    $region9: #{my_cnn_forward.1} parent=1 // pred_fallthru
      _
    // Predicated region
    $region10: #{my_cnn_forward.1} parent=1 // pred_check
      _
    $region11: #{my_cnn_forward.1} parent=1 // pred_check_branch
      %16 = sbr.rel (0) target = $region13
    $region12: #{my_cnn_forward.1} parent=1 // pred_region
      _
    $region13: #{my_cnn_forward.1} parent=1 // pred_fallthru
      _
    // Predicated region
    $region14: #{my_cnn_forward.1} parent=1 // pred_check
      _
    $region15: #{my_cnn_forward.1} parent=1 // pred_check_branch
      %18 = sbr.rel (0) target = $region17
    $region16: #{my_cnn_forward.1} parent=1 // pred_region
      _
    $region17: #{my_cnn_forward.1} parent=1 // pred_fallthru
      _
    // Predicated region
    $region18: #{my_cnn_forward.1} parent=1 // pred_check
      _
    $region19: #{my_cnn_forward.1} parent=1 // pred_check_branch
      %20 = sbr.rel (0) target = $region21
    $region20: #{my_cnn_forward.1} parent=1 // pred_region
      _
    $region21: #{my_cnn_forward.1} parent=1 // pred_fallthru
      _
    %v21 = vld [vmem:[%s1] sm:$0xff]
    %v22 = vld [vmem:[%s1 + $0x8] sm:$0xff]
    %v23 = vld [vmem:[%s1 + $0x10] sm:$0xff]
    %v24 = vld [vmem:[%s1 + $0x18] sm:$0xff]
    %v25 = vld [vmem:[%s1 + $0x20] sm:$0xf]
    %v26 = vld [vmem:[%s2] sm:$0x1]
    %v27 = vld [vmem:[%s3] sm:$0xff]
    %v28 = vld [vmem:[%s3 + $0x8] sm:$0xff]
    %v29 = vld [vmem:[%s3 + $0x10] sm:$0xff]
    %v30 = vld [vmem:[%s3 + $0x18] sm:$0xff]
    %v31 = vld [vmem:[%s3 + $0x20] sm:$0xff]
    %v32 = vld [vmem:[%s3 + $0x28] sm:$0xff]
    %v33 = vld [vmem:[%s3 + $0x30] sm:$0xff]
    %v34 = vld [vmem:[%s3 + $0x38] sm:$0xff]
    %v35 = vld [vmem:[%s3 + $0x40] sm:$0xff]
    %v36 = vld [vmem:[%s3 + $0x48] sm:$0xff]
    %v37 = vld [vmem:[%s3 + $0x50] sm:$0xff]
    %v38 = vld [vmem:[%s3 + $0x58] sm:$0xff]
    %v39 = vld [vmem:[%s3 + $0x60] sm:$0xff]
    %v40 = vld [vmem:[%s3 + $0x68] sm:$0xff]
    %v41 = vld [vmem:[%s3 + $0x70] sm:$0xff]
    %v42 = vld [vmem:[%s3 + $0x78] sm:$0xff]
    %v43 = vld [vmem:[%s3 + $0x80] sm:$0xff]
    %v44 = vld [vmem:[%s3 + $0x88] sm:$0xff]
    %v45 = vld [vmem:[%s3 + $0x90] sm:$0xff]
    %v46 = vld [vmem:[%s3 + $0x98] sm:$0xff]
    %v47 = vld [vmem:[%s3 + $0xa0] sm:$0xff]
    %v48 = vld [vmem:[%s3 + $0xa8] sm:$0xff]
    %v49 = vld [vmem:[%s3 + $0xb0] sm:$0xff]
    %v50 = vld [vmem:[%s3 + $0xb8] sm:$0xff]
    %v51 = vld [vmem:[%s3 + $0xc0] sm:$0xff]
    %v52 = vld [vmem:[%s3 + $0xc8] sm:$0xff]
    %v53 = vld [vmem:[%s3 + $0xd0] sm:$0x3]
    %v54 = vld [vmem:[%s3 + $0xd8] sm:$0xff]
    %v55 = vld [vmem:[%s3 + $0xe0] sm:$0xff]
    %v56 = vld [vmem:[%s3 + $0xe8] sm:$0xff]
    %v57 = vld [vmem:[%s3 + $0xf0] sm:$0xff]
    %v58 = vld [vmem:[%s3 + $0xf8] sm:$0xff]
    %v59 = vld [vmem:[%s3 + $0x100] sm:$0xff]
    %v60 = vld [vmem:[%s3 + $0x108] sm:$0xff]
    %v61 = vld [vmem:[%s3 + $0x110] sm:$0xff]
    %v62 = vld [vmem:[%s3 + $0x118] sm:$0xff]
    %v63 = vld [vmem:[%s3 + $0x120] sm:$0xff]
    %v64 = vld [vmem:[%s3 + $0x128] sm:$0xff]
    %v65 = vld [vmem:[%s3 + $0x130] sm:$0xff]
    %v66 = vld [vmem:[%s3 + $0x138] sm:$0xff]
    %v67 = vld [vmem:[%s3 + $0x140] sm:$0xff]
    %v68 = vld [vmem:[%s3 + $0x148] sm:$0xff]
    %v69 = vld [vmem:[%s3 + $0x150] sm:$0xff]
    %v70 = vld [vmem:[%s3 + $0x158] sm:$0xff]
    %v71 = vld [vmem:[%s3 + $0x160] sm:$0xff]
    %v72 = vld [vmem:[%s3 + $0x168] sm:$0xff]
    %v73 = vld [vmem:[%s3 + $0x170] sm:$0xff]
    %v74 = vld [vmem:[%s3 + $0x178] sm:$0xff]
    %v75 = vld [vmem:[%s3 + $0x180] sm:$0xff]
    %v76 = vld [vmem:[%s3 + $0x188] sm:$0xff]
    %v77 = vld [vmem:[%s3 + $0x190] sm:$0xff]
    %v78 = vld [vmem:[%s3 + $0x198] sm:$0xff]
    %v79 = vld [vmem:[%s3 + $0x1a0] sm:$0xff]
    %v80 = vld [vmem:[%s3 + $0x1a8] sm:$0x3]
    %v81 = vld [vmem:[%s3 + $0x1b0] sm:$0xff]
    %v82 = vld [vmem:[%s3 + $0x1b8] sm:$0xff]
    %v83 = vld [vmem:[%s3 + $0x1c0] sm:$0xff]
    %v84 = vld [vmem:[%s3 + $0x1c8] sm:$0xff]
    %v85 = vld [vmem:[%s3 + $0x1d0] sm:$0xff]
    %v86 = vld [vmem:[%s3 + $0x1d8] sm:$0xff]
    %v87 = vld [vmem:[%s3 + $0x1e0] sm:$0xff]
    %v88 = vld [vmem:[%s3 + $0x1e8] sm:$0xff]
    %v89 = vld [vmem:[%s3 + $0x1f0] sm:$0xff]
    %v90 = vld [vmem:[%s3 + $0x1f8] sm:$0xff]
    %v91 = vld [vmem:[%s3 + $0x200] sm:$0xff]
    %v92 = vld [vmem:[%s3 + $0x208] sm:$0xff]
    %v93 = vld [vmem:[%s3 + $0x210] sm:$0xff]
    %v94 = vld [vmem:[%s3 + $0x218] sm:$0xff]
    %v95 = vld [vmem:[%s3 + $0x220] sm:$0xff]
    %v96 = vld [vmem:[%s3 + $0x228] sm:$0xff]
    %v97 = vld [vmem:[%s3 + $0x230] sm:$0xff]
    %v98 = vld [vmem:[%s3 + $0x238] sm:$0xff]
    %v99 = vld [vmem:[%s3 + $0x240] sm:$0xff]
    %v100 = vld [vmem:[%s3 + $0x248] sm:$0xff]
    %v101 = vld [vmem:[%s3 + $0x250] sm:$0xff]
    %v102 = vld [vmem:[%s3 + $0x258] sm:$0xff]
    %v103 = vld [vmem:[%s3 + $0x260] sm:$0xff]
    %v104 = vld [vmem:[%s3 + $0x268] sm:$0xff]
    %v105 = vld [vmem:[%s3 + $0x270] sm:$0xff]
    %v106 = vld [vmem:[%s3 + $0x278] sm:$0xff]
    %v107 = vld [vmem:[%s3 + $0x280] sm:$0x3]
    %v108 = vld [vmem:[%s3 + $0x288] sm:$0xff]
    %v109 = vld [vmem:[%s3 + $0x290] sm:$0xff]
    %v110 = vld [vmem:[%s3 + $0x298] sm:$0xff]
    %v111 = vld [vmem:[%s3 + $0x2a0] sm:$0xff]
    %v112 = vld [vmem:[%s3 + $0x2a8] sm:$0xff]
    %v113 = vld [vmem:[%s3 + $0x2b0] sm:$0xff]
    %v114 = vld [vmem:[%s3 + $0x2b8] sm:$0xff]
    %v115 = vld [vmem:[%s3 + $0x2c0] sm:$0xff]
    %v116 = vld [vmem:[%s3 + $0x2c8] sm:$0xff]
    %v117 = vld [vmem:[%s3 + $0x2d0] sm:$0xff]
    %v118 = vld [vmem:[%s3 + $0x2d8] sm:$0xff]
    %v119 = vld [vmem:[%s3 + $0x2e0] sm:$0xff]
    %v120 = vld [vmem:[%s3 + $0x2e8] sm:$0xff]
    %v121 = vld [vmem:[%s3 + $0x2f0] sm:$0xff]
    %v122 = vld [vmem:[%s3 + $0x2f8] sm:$0xff]
    %v123 = vld [vmem:[%s3 + $0x300] sm:$0xff]
    %v124 = vld [vmem:[%s3 + $0x308] sm:$0xff]
    %v125 = vld [vmem:[%s3 + $0x310] sm:$0xff]
    %v126 = vld [vmem:[%s3 + $0x318] sm:$0xff]
    %v127 = vld [vmem:[%s3 + $0x320] sm:$0xff]
    %v128 = vld [vmem:[%s3 + $0x328] sm:$0xff]
    %v129 = vld [vmem:[%s3 + $0x330] sm:$0xff]
    %v130 = vld [vmem:[%s3 + $0x338] sm:$0xff]
    %v131 = vld [vmem:[%s3 + $0x340] sm:$0xff]
    %v132 = vld [vmem:[%s3 + $0x348] sm:$0xff]
    %v133 = vld [vmem:[%s3 + $0x350] sm:$0xff]
    %v134 = vld [vmem:[%s3 + $0x358] sm:$0x3]
    %v135 = vld [vmem:[%s3 + $0x360] sm:$0xff]
    %v136 = vld [vmem:[%s3 + $0x368] sm:$0xff]
    %v137 = vld [vmem:[%s3 + $0x370] sm:$0xff]
    %v138 = vld [vmem:[%s3 + $0x378] sm:$0xff]
    %v139 = vld [vmem:[%s3 + $0x380] sm:$0xff]
    %v140 = vld [vmem:[%s3 + $0x388] sm:$0xff]
    %v141 = vld [vmem:[%s3 + $0x390] sm:$0xff]
    %v142 = vld [vmem:[%s3 + $0x398] sm:$0xff]
    %v143 = vld [vmem:[%s3 + $0x3a0] sm:$0xff]
    %v144 = vld [vmem:[%s3 + $0x3a8] sm:$0xff]
    %v145 = vld [vmem:[%s3 + $0x3b0] sm:$0xff]
    %v146 = vld [vmem:[%s3 + $0x3b8] sm:$0xff]
    %v147 = vld [vmem:[%s3 + $0x3c0] sm:$0xff]
    %v148 = vld [vmem:[%s3 + $0x3c8] sm:$0xff]
    %v149 = vld [vmem:[%s3 + $0x3d0] sm:$0xff]
    %v150 = vld [vmem:[%s3 + $0x3d8] sm:$0xff]
    %v151 = vld [vmem:[%s3 + $0x3e0] sm:$0xff]
    %v152 = vld [vmem:[%s3 + $0x3e8] sm:$0xff]
    %v153 = vld [vmem:[%s3 + $0x3f0] sm:$0xff]
    %v154 = vld [vmem:[%s3 + $0x3f8] sm:$0xff]
    %v155 = vld [vmem:[%s3 + $0x400] sm:$0xff]
    %v156 = vld [vmem:[%s3 + $0x408] sm:$0xff]
    %v157 = vld [vmem:[%s3 + $0x410] sm:$0xff]
    %v158 = vld [vmem:[%s3 + $0x418] sm:$0xff]
    %v159 = vld [vmem:[%s3 + $0x420] sm:$0xff]
    %v160 = vld [vmem:[%s3 + $0x428] sm:$0xff]
    %v161 = vld [vmem:[%s3 + $0x430] sm:$0x3]
    %v162 = vld [vmem:[%s3 + $0x438] sm:$0xff]
    %v163 = vld [vmem:[%s3 + $0x440] sm:$0xff]
    %v164 = vld [vmem:[%s3 + $0x448] sm:$0xff]
    %v165 = vld [vmem:[%s3 + $0x450] sm:$0xff]
    %v166 = vld [vmem:[%s3 + $0x458] sm:$0xff]
    %v167 = vld [vmem:[%s3 + $0x460] sm:$0xff]
    %v168 = vld [vmem:[%s3 + $0x468] sm:$0xff]
    %v169 = vld [vmem:[%s3 + $0x470] sm:$0xff]
    %v170 = vld [vmem:[%s3 + $0x478] sm:$0xff]
    %v171 = vld [vmem:[%s3 + $0x480] sm:$0xff]
    %v172 = vld [vmem:[%s3 + $0x488] sm:$0xff]
    %v173 = vld [vmem:[%s3 + $0x490] sm:$0xff]
    %v174 = vld [vmem:[%s3 + $0x498] sm:$0xff]
    %v175 = vld [vmem:[%s3 + $0x4a0] sm:$0xff]
    %v176 = vld [vmem:[%s3 + $0x4a8] sm:$0xff]
    %v177 = vld [vmem:[%s3 + $0x4b0] sm:$0xff]
    %v178 = vld [vmem:[%s3 + $0x4b8] sm:$0xff]
    %v179 = vld [vmem:[%s3 + $0x4c0] sm:$0xff]
    %v180 = vld [vmem:[%s3 + $0x4c8] sm:$0xff]
    %v181 = vld [vmem:[%s3 + $0x4d0] sm:$0xff]
    %v182 = vld [vmem:[%s3 + $0x4d8] sm:$0xff]
    %v183 = vld [vmem:[%s3 + $0x4e0] sm:$0xff]
    %v184 = vld [vmem:[%s3 + $0x4e8] sm:$0xff]
    %v185 = vld [vmem:[%s3 + $0x4f0] sm:$0xff]
    %v186 = vld [vmem:[%s3 + $0x4f8] sm:$0xff]
    %v187 = vld [vmem:[%s3 + $0x500] sm:$0xff]
    %v188 = vld [vmem:[%s3 + $0x508] sm:$0x3]
    %v189 = vld [vmem:[%s3 + $0x510] sm:$0xff]
    %v190 = vld [vmem:[%s3 + $0x518] sm:$0xff]
    %v191 = vld [vmem:[%s3 + $0x520] sm:$0xff]
    %v192 = vld [vmem:[%s3 + $0x528] sm:$0xff]
    %v193 = vld [vmem:[%s3 + $0x530] sm:$0xff]
    %v194 = vld [vmem:[%s3 + $0x538] sm:$0xff]
    %v195 = vld [vmem:[%s3 + $0x540] sm:$0xff]
    %v196 = vld [vmem:[%s3 + $0x548] sm:$0xff]
    %v197 = vld [vmem:[%s3 + $0x550] sm:$0xff]
    %v198 = vld [vmem:[%s3 + $0x558] sm:$0xff]
    %v199 = vld [vmem:[%s3 + $0x560] sm:$0xff]
    %v200 = vld [vmem:[%s3 + $0x568] sm:$0xff]
    %v201 = vld [vmem:[%s3 + $0x570] sm:$0xff]
    %v202 = vld [vmem:[%s3 + $0x578] sm:$0xff]
    %v203 = vld [vmem:[%s3 + $0x580] sm:$0xff]
    %v204 = vld [vmem:[%s3 + $0x588] sm:$0xff]
    %v205 = vld [vmem:[%s3 + $0x590] sm:$0xff]
    %v206 = vld [vmem:[%s3 + $0x598] sm:$0xff]
    %v207 = vld [vmem:[%s3 + $0x5a0] sm:$0xff]
    %v208 = vld [vmem:[%s3 + $0x5a8] sm:$0xff]
    %v209 = vld [vmem:[%s3 + $0x5b0] sm:$0xff]
    %v210 = vld [vmem:[%s3 + $0x5b8] sm:$0xff]
    %v211 = vld [vmem:[%s3 + $0x5c0] sm:$0xff]
    %v212 = vld [vmem:[%s3 + $0x5c8] sm:$0xff]
    %v213 = vld [vmem:[%s3 + $0x5d0] sm:$0xff]
    %v214 = vld [vmem:[%s3 + $0x5d8] sm:$0xff]
    %v215 = vld [vmem:[%s3 + $0x5e0] sm:$0x3]
    %v216 = vld [vmem:[%s3 + $0x5e8] sm:$0xff]
    %v217 = vld [vmem:[%s3 + $0x5f0] sm:$0xff]
    %v218 = vld [vmem:[%s3 + $0x5f8] sm:$0xff]
    %v219 = vld [vmem:[%s3 + $0x600] sm:$0xff]
    %v220 = vld [vmem:[%s3 + $0x608] sm:$0xff]
    %v221 = vld [vmem:[%s3 + $0x610] sm:$0xff]
    %v222 = vld [vmem:[%s3 + $0x618] sm:$0xff]
    %v223 = vld [vmem:[%s3 + $0x620] sm:$0xff]
    %v224 = vld [vmem:[%s3 + $0x628] sm:$0xff]
    %v225 = vld [vmem:[%s3 + $0x630] sm:$0xff]
    %v226 = vld [vmem:[%s3 + $0x638] sm:$0xff]
    %v227 = vld [vmem:[%s3 + $0x640] sm:$0xff]
    %v228 = vld [vmem:[%s3 + $0x648] sm:$0xff]
    %v229 = vld [vmem:[%s3 + $0x650] sm:$0xff]
    %v230 = vld [vmem:[%s3 + $0x658] sm:$0xff]
    %v231 = vld [vmem:[%s3 + $0x660] sm:$0xff]
    %v232 = vld [vmem:[%s3 + $0x668] sm:$0xff]
    %v233 = vld [vmem:[%s3 + $0x670] sm:$0xff]
    %v234 = vld [vmem:[%s3 + $0x678] sm:$0xff]
    %v235 = vld [vmem:[%s3 + $0x680] sm:$0xff]
    %v236 = vld [vmem:[%s3 + $0x688] sm:$0xff]
    %v237 = vld [vmem:[%s3 + $0x690] sm:$0xff]
    %v238 = vld [vmem:[%s3 + $0x698] sm:$0xff]
    %v239 = vld [vmem:[%s3 + $0x6a0] sm:$0xff]
    %v240 = vld [vmem:[%s3 + $0x6a8] sm:$0xff]
    %v241 = vld [vmem:[%s3 + $0x6b0] sm:$0xff]
    %v242 = vld [vmem:[%s3 + $0x6b8] sm:$0x3]
    %v243 = vld [vmem:[%s4] sm:$0x1]
    %v244 = vld [vmem:[%s0] sm:$0xff]
    %v245 = vld [vmem:[%s0 + $0x8] sm:$0xff]
    %v246 = vld [vmem:[%s0 + $0x10] sm:$0xff]
    %v247 = vld [vmem:[%s0 + $0x18] sm:$0xff]
    %v248 = vld [vmem:[%s0 + $0x20] sm:$0xff]
    %v249 = vld [vmem:[%s0 + $0x28] sm:$0xff]
    %v250 = vld [vmem:[%s0 + $0x30] sm:$0xff]
    %v251 = vld [vmem:[%s0 + $0x38] sm:$0xff]
    %v252 = vld [vmem:[%s0 + $0x40] sm:$0xff]
    %v253 = vld [vmem:[%s0 + $0x48] sm:$0xff]
    %v254 = vld [vmem:[%s0 + $0x50] sm:$0xff]
    %v255 = vld [vmem:[%s0 + $0x58] sm:$0xff]
    %v256 = vld [vmem:[%s0 + $0x60] sm:$0xff]
    %v257 = vld [vmem:[%s0 + $0x68] sm:$0xff]
    %v258 = vld [vmem:[%s0 + $0x70] sm:$0xff]
    %v259 = vld [vmem:[%s0 + $0x78] sm:$0xff]
    %v260 = vld [vmem:[%s0 + $0x80] sm:$0xff]
    %v261 = vld [vmem:[%s0 + $0x88] sm:$0xff]
    %v262 = vld [vmem:[%s0 + $0x90] sm:$0xff]
    %v263 = vld [vmem:[%s0 + $0x98] sm:$0xff]
    %v264 = vld [vmem:[%s0 + $0xa0] sm:$0xff]
    %v265 = vld [vmem:[%s0 + $0xa8] sm:$0xff]
    %v266 = vld [vmem:[%s0 + $0xb0] sm:$0xff]
    %v267 = vld [vmem:[%s0 + $0xb8] sm:$0xff]
    %v268 = vld [vmem:[%s0 + $0xc0] sm:$0xff]
    %v269 = vld [vmem:[%s0 + $0xc8] sm:$0xff]
    %v270 = vld [vmem:[%s0 + $0xd0] sm:$0x3]
    %v272 = vlaneseq
    %v273 = vshrl.u32 %v272, 7
    %v274 = vsub.s32 0, %v273
    %v275 = vrot.slane %v26, %v274
    %vm277 = vcmask 293888
    %v279 = vsel %vm277, %v244, 0
    %v282 = vsel %vm277, %v245, 0
    %v285 = vsel %vm277, %v246, 0
    %v288 = vsel %vm277, %v247, 0
    %v291 = vsel %vm277, %v248, 0
    %v294 = vsel %vm277, %v249, 0
    %v297 = vsel %vm277, %v250, 0
    %v300 = vsel %vm277, %v251, 0
    %v303 = vsel %vm277, %v252, 0
    %v306 = vsel %vm277, %v253, 0
    %v309 = vsel %vm277, %v254, 0
    %v312 = vsel %vm277, %v255, 0
    %v315 = vsel %vm277, %v256, 0
    %v318 = vsel %vm277, %v257, 0
    %v321 = vsel %vm277, %v258, 0
    %v324 = vsel %vm277, %v259, 0
    %v327 = vsel %vm277, %v260, 0
    %v330 = vsel %vm277, %v261, 0
    %v333 = vsel %vm277, %v262, 0
    %v336 = vsel %vm277, %v263, 0
    %v339 = vsel %vm277, %v264, 0
    %v342 = vsel %vm277, %v265, 0
    %v345 = vsel %vm277, %v266, 0
    %v348 = vsel %vm277, %v267, 0
    %v351 = vsel %vm277, %v268, 0
    %v354 = vsel %vm277, %v269, 0
    %v357 = vsel %vm277, %v270, 0
    %vm359 = vcmask 1043456
    %v361 = vsel %vm359, %v25, 0
    %363 = vmatprep.subr.mxu0 0.0
    %364 = vmatpush1.msra.mxu0 0.0
    %365 = vmatprep.subr.mxu0 0.0
    %366 = vmatpush1.msra.mxu0 0.0
    %367 = vmatprep.subr.mxu0 0.0
    %368 = vmatpush1.msra.mxu0 0.0
    %369 = vmatprep.subr.mxu0 0.0
    %370 = vmatpush1.msra.mxu0 0.0
    %371 = vmatprep.subr.mxu0 0.0
    %372 = vmatpush1.msra.mxu0 0.0
    %373 = vmatprep.subr.mxu0 0.0
    %374 = vmatpush1.msra.mxu0 0.0
    %375 = vmatprep.subr.mxu0 0.0
    %376 = vmatpush1.msra.mxu0 0.0
    %377 = vmatprep.subr.mxu0 0.0
    %378 = vmatpush1.msra.mxu0 0.0
    %379 = vmatprep.subr.mxu0 0.0
    %380 = vmatpush1.msra.mxu0 0.0
    %381 = vmatprep.subr.mxu0 0.0
    %382 = vmatpush1.msra.mxu0 0.0
    %383 = vmatprep.subr.mxu0 0.0
    %384 = vmatpush1.msra.mxu0 0.0
    %385 = vmatprep.subr.mxu0 0.0
    %386 = vmatpush1.msra.mxu0 %v361
    %387 = vmatprep.subr.mxu0 0.0
    %388 = vmatpush1.msra.mxu0 %v24
    %389 = vmatprep.subr.mxu0 0.0
    %390 = vmatpush1.msra.mxu0 %v23
    %391 = vmatprep.subr.mxu0 0.0
    %392 = vmatpush1.msra.mxu0 %v22
    %393 = vmatprep.subr.mxu0 0.0
    %394 = vmatpush1.msra.mxu0 %v21
    %395 = vmatprep.subr.mxu0 0.0
    %396 = vmatpush2.msra.mxu0 0.0
    %397 = vmatprep.subr.mxu0 0.0
    %398 = vmatpush2.msra.mxu0 0.0
    %399 = vmatprep.subr.mxu0 0.0
    %400 = vmatpush2.msra.mxu0 0.0
    %401 = vmatprep.subr.mxu0 0.0
    %402 = vmatpush2.msra.mxu0 0.0
    %403 = vmatprep.subr.mxu0 0.0
    %404 = vmatpush2.msra.mxu0 0.0
    %405 = vmatprep.subr.mxu0 0.0
    %406 = vmatpush2.msra.mxu0 0.0
    %407 = vmatprep.subr.mxu0 0.0
    %408 = vmatpush2.msra.mxu0 0.0
    %409 = vmatprep.subr.mxu0 0.0
    %410 = vmatpush2.msra.mxu0 0.0
    %411 = vmatprep.subr.mxu0 0.0
    %412 = vmatpush2.msra.mxu0 0.0
    %413 = vmatprep.subr.mxu0 0.0
    %414 = vmatpush2.msra.mxu0 0.0
    %415 = vmatprep.subr.mxu0 0.0
    %416 = vmatpush2.msra.mxu0 0.0
    %417 = vmatprep.subr.mxu0 0.0
    %418 = vmatpush2.msra.mxu0 0.0
    %419 = vmatprep.subr.mxu0 0.0
    %420 = vmatpush2.msra.mxu0 0.0
    %421 = vmatprep.subr.mxu0 0.0
    %422 = vmatpush2.msra.mxu0 0.0
    %423 = vmatprep.subr.mxu0 0.0
    %424 = vmatpush2.msra.mxu0 0.0
    %425 = vmatprep.subr.mxu0 0.0
    %426 = vmatpush2.msra.mxu0 0.0
    %427 = vmatprep.mubr.f32.mxu0 0.0
    %428 = vmatmul.mubr.f32.gmra.mxu0 %v279
    %v429 = vpop.f32.mrf.mxu0
    %v430 = vadd.f32 %v275, %v429
    %v431 = vpop.f32.mrf.mxu0
    %432 = vmatprep.mubr.f32.mxu0 0.0
    %433 = vmatmul.mubr.f32.gmra.mxu0 %v282
    %v434 = vpop.f32.mrf.mxu0
    %v435 = vadd.f32 %v275, %v434
    %v436 = vpop.f32.mrf.mxu0
    %437 = vmatprep.mubr.f32.mxu0 0.0
    %438 = vmatmul.mubr.f32.gmra.mxu0 %v285
    %v439 = vpop.f32.mrf.mxu0
    %v440 = vadd.f32 %v275, %v439
    %v441 = vpop.f32.mrf.mxu0
    %442 = vmatprep.mubr.f32.mxu0 0.0
    %443 = vmatmul.mubr.f32.gmra.mxu0 %v288
    %v444 = vpop.f32.mrf.mxu0
    %v445 = vadd.f32 %v275, %v444
    %v446 = vpop.f32.mrf.mxu0
    %447 = vmatprep.mubr.f32.mxu0 0.0
    %448 = vmatmul.mubr.f32.gmra.mxu0 %v291
    %v449 = vpop.f32.mrf.mxu0
    %v450 = vadd.f32 %v275, %v449
    %v451 = vpop.f32.mrf.mxu0
    %452 = vmatprep.mubr.f32.mxu0 0.0
    %453 = vmatmul.mubr.f32.gmra.mxu0 %v294
    %v454 = vpop.f32.mrf.mxu0
    %v455 = vadd.f32 %v275, %v454
    %v456 = vpop.f32.mrf.mxu0
    %457 = vmatprep.mubr.f32.mxu0 0.0
    %458 = vmatmul.mubr.f32.gmra.mxu0 %v297
    %v459 = vpop.f32.mrf.mxu0
    %v460 = vadd.f32 %v275, %v459
    %v461 = vpop.f32.mrf.mxu0
    %462 = vmatprep.mubr.f32.mxu0 0.0
    %463 = vmatmul.mubr.f32.gmra.mxu0 %v300
    %v464 = vpop.f32.mrf.mxu0
    %v465 = vadd.f32 %v275, %v464
    %v466 = vpop.f32.mrf.mxu0
    %467 = vmatprep.mubr.f32.mxu0 0.0
    %468 = vmatmul.mubr.f32.gmra.mxu0 %v303
    %v469 = vpop.f32.mrf.mxu0
    %v470 = vadd.f32 %v275, %v469
    %v471 = vpop.f32.mrf.mxu0
    %472 = vmatprep.mubr.f32.mxu0 0.0
    %473 = vmatmul.mubr.f32.gmra.mxu0 %v306
    %v474 = vpop.f32.mrf.mxu0
    %v475 = vadd.f32 %v275, %v474
    %v476 = vpop.f32.mrf.mxu0
    %477 = vmatprep.mubr.f32.mxu0 0.0
    %478 = vmatmul.mubr.f32.gmra.mxu0 %v309
    %v479 = vpop.f32.mrf.mxu0
    %v480 = vadd.f32 %v275, %v479
    %v481 = vpop.f32.mrf.mxu0
    %482 = vmatprep.mubr.f32.mxu0 0.0
    %483 = vmatmul.mubr.f32.gmra.mxu0 %v312
    %v484 = vpop.f32.mrf.mxu0
    %v485 = vadd.f32 %v275, %v484
    %v486 = vpop.f32.mrf.mxu0
    %487 = vmatprep.mubr.f32.mxu0 0.0
    %488 = vmatmul.mubr.f32.gmra.mxu0 %v315
    %v489 = vpop.f32.mrf.mxu0
    %v490 = vadd.f32 %v275, %v489
    %v491 = vpop.f32.mrf.mxu0
    %492 = vmatprep.mubr.f32.mxu0 0.0
    %493 = vmatmul.mubr.f32.gmra.mxu0 %v318
    %v494 = vpop.f32.mrf.mxu0
    %v495 = vadd.f32 %v275, %v494
    %v496 = vpop.f32.mrf.mxu0
    %497 = vmatprep.mubr.f32.mxu0 0.0
    %498 = vmatmul.mubr.f32.gmra.mxu0 %v321
    %v499 = vpop.f32.mrf.mxu0
    %v500 = vadd.f32 %v275, %v499
    %v501 = vpop.f32.mrf.mxu0
    %502 = vmatprep.mubr.f32.mxu0 0.0
    %503 = vmatmul.mubr.f32.gmra.mxu0 %v324
    %v504 = vpop.f32.mrf.mxu0
    %v505 = vadd.f32 %v275, %v504
    %v506 = vpop.f32.mrf.mxu0
    %507 = vmatprep.mubr.f32.mxu0 0.0
    %508 = vmatmul.mubr.f32.gmra.mxu0 %v327
    %v509 = vpop.f32.mrf.mxu0
    %v510 = vadd.f32 %v275, %v509
    %v511 = vpop.f32.mrf.mxu0
    %512 = vmatprep.mubr.f32.mxu0 0.0
    %513 = vmatmul.mubr.f32.gmra.mxu0 %v330
    %v514 = vpop.f32.mrf.mxu0
    %v515 = vadd.f32 %v275, %v514
    %v516 = vpop.f32.mrf.mxu0
    %517 = vmatprep.mubr.f32.mxu0 0.0
    %518 = vmatmul.mubr.f32.gmra.mxu0 %v333
    %v519 = vpop.f32.mrf.mxu0
    %v520 = vadd.f32 %v275, %v519
    %v521 = vpop.f32.mrf.mxu0
    %522 = vmatprep.mubr.f32.mxu0 0.0
    %523 = vmatmul.mubr.f32.gmra.mxu0 %v336
    %v524 = vpop.f32.mrf.mxu0
    %v525 = vadd.f32 %v275, %v524
    %v526 = vpop.f32.mrf.mxu0
    %527 = vmatprep.mubr.f32.mxu0 0.0
    %528 = vmatmul.mubr.f32.gmra.mxu0 %v339
    %v529 = vpop.f32.mrf.mxu0
    %v530 = vadd.f32 %v275, %v529
    %v531 = vpop.f32.mrf.mxu0
    %532 = vmatprep.mubr.f32.mxu0 0.0
    %533 = vmatmul.mubr.f32.gmra.mxu0 %v342
    %v534 = vpop.f32.mrf.mxu0
    %v535 = vadd.f32 %v275, %v534
    %v536 = vpop.f32.mrf.mxu0
    %537 = vmatprep.mubr.f32.mxu0 0.0
    %538 = vmatmul.mubr.f32.gmra.mxu0 %v345
    %v539 = vpop.f32.mrf.mxu0
    %v540 = vadd.f32 %v275, %v539
    %v541 = vpop.f32.mrf.mxu0
    %542 = vmatprep.mubr.f32.mxu0 0.0
    %543 = vmatmul.mubr.f32.gmra.mxu0 %v348
    %v544 = vpop.f32.mrf.mxu0
    %v545 = vadd.f32 %v275, %v544
    %v546 = vpop.f32.mrf.mxu0
    %547 = vmatprep.mubr.f32.mxu0 0.0
    %548 = vmatmul.mubr.f32.gmra.mxu0 %v351
    %v549 = vpop.f32.mrf.mxu0
    %v550 = vadd.f32 %v275, %v549
    %v551 = vpop.f32.mrf.mxu0
    %552 = vmatprep.mubr.f32.mxu0 0.0
    %553 = vmatmul.mubr.f32.gmra.mxu0 %v354
    %v554 = vpop.f32.mrf.mxu0
    %v555 = vadd.f32 %v275, %v554
    %v556 = vpop.f32.mrf.mxu0
    %557 = vmatprep.mubr.f32.mxu0 0.0
    %558 = vmatmul.mubr.f32.gmra.mxu0 %v357
    %v559 = vpop.f32.mrf.mxu0
    %v560 = vadd.f32 %v275, %v559
    %v561 = vpop.f32.mrf.mxu0
    %562 = vdwg.mxu0
    %v563 = vmax.f32 %v430, 0.0
    %v564 = vmax.f32 %v435, 0.0
    %v565 = vmax.f32 %v440, 0.0
    %v566 = vmax.f32 %v445, 0.0
    %v567 = vmax.f32 %v450, 0.0
    %v568 = vmax.f32 %v455, 0.0
    %v569 = vmax.f32 %v460, 0.0
    %v570 = vmax.f32 %v465, 0.0
    %v571 = vmax.f32 %v470, 0.0
    %v572 = vmax.f32 %v475, 0.0
    %v573 = vmax.f32 %v480, 0.0
    %v574 = vmax.f32 %v485, 0.0
    %v575 = vmax.f32 %v490, 0.0
    %v576 = vmax.f32 %v495, 0.0
    %v577 = vmax.f32 %v500, 0.0
    %v578 = vmax.f32 %v505, 0.0
    %v579 = vmax.f32 %v510, 0.0
    %v580 = vmax.f32 %v515, 0.0
    %v581 = vmax.f32 %v520, 0.0
    %v582 = vmax.f32 %v525, 0.0
    %v583 = vmax.f32 %v530, 0.0
    %v584 = vmax.f32 %v535, 0.0
    %v585 = vmax.f32 %v540, 0.0
    %v586 = vmax.f32 %v545, 0.0
    %v587 = vmax.f32 %v550, 0.0
    %v588 = vmax.f32 %v555, 0.0
    %v589 = vmax.f32 %v560, 0.0
    %v590 = vmul.f32 %v563, %v27
    %v591 = vmul.f32 %v564, %v28
    %v592 = vmul.f32 %v565, %v29
    %v593 = vmul.f32 %v566, %v30
    %v594 = vmul.f32 %v567, %v31
    %v595 = vmul.f32 %v568, %v32
    %v596 = vmul.f32 %v569, %v33
    %v597 = vmul.f32 %v570, %v34
    %v598 = vmul.f32 %v571, %v35
    %v599 = vmul.f32 %v572, %v36
    %v600 = vmul.f32 %v573, %v37
    %v601 = vmul.f32 %v574, %v38
    %v602 = vmul.f32 %v575, %v39
    %v603 = vmul.f32 %v576, %v40
    %v604 = vmul.f32 %v577, %v41
    %v605 = vmul.f32 %v578, %v42
    %v606 = vmul.f32 %v579, %v43
    %v607 = vmul.f32 %v580, %v44
    %v608 = vmul.f32 %v581, %v45
    %v609 = vmul.f32 %v582, %v46
    %v610 = vmul.f32 %v583, %v47
    %v611 = vmul.f32 %v584, %v48
    %v612 = vmul.f32 %v585, %v49
    %v613 = vmul.f32 %v586, %v50
    %v614 = vmul.f32 %v587, %v51
    %v615 = vmul.f32 %v588, %v52
    %v616 = vmul.f32 %v589, %v53
    %v617 = vmul.f32 %v563, %v54
    %v618 = vmul.f32 %v564, %v55
    %v619 = vmul.f32 %v565, %v56
    %v620 = vmul.f32 %v566, %v57
    %v621 = vmul.f32 %v567, %v58
    %v622 = vmul.f32 %v568, %v59
    %v623 = vmul.f32 %v569, %v60
    %v624 = vmul.f32 %v570, %v61
    %v625 = vmul.f32 %v571, %v62
    %v626 = vmul.f32 %v572, %v63
    %v627 = vmul.f32 %v573, %v64
    %v628 = vmul.f32 %v574, %v65
    %v629 = vmul.f32 %v575, %v66
    %v630 = vmul.f32 %v576, %v67
    %v631 = vmul.f32 %v577, %v68
    %v632 = vmul.f32 %v578, %v69
    %v633 = vmul.f32 %v579, %v70
    %v634 = vmul.f32 %v580, %v71
    %v635 = vmul.f32 %v581, %v72
    %v636 = vmul.f32 %v582, %v73
    %v637 = vmul.f32 %v583, %v74
    %v638 = vmul.f32 %v584, %v75
    %v639 = vmul.f32 %v585, %v76
    %v640 = vmul.f32 %v586, %v77
    %v641 = vmul.f32 %v587, %v78
    %v642 = vmul.f32 %v588, %v79
    %v643 = vmul.f32 %v589, %v80
    %v644 = vmul.f32 %v563, %v81
    %v645 = vmul.f32 %v564, %v82
    %v646 = vmul.f32 %v565, %v83
    %v647 = vmul.f32 %v566, %v84
    %v648 = vmul.f32 %v567, %v85
    %v649 = vmul.f32 %v568, %v86
    %v650 = vmul.f32 %v569, %v87
    %v651 = vmul.f32 %v570, %v88
    %v652 = vmul.f32 %v571, %v89
    %v653 = vmul.f32 %v572, %v90
    %v654 = vmul.f32 %v573, %v91
    %v655 = vmul.f32 %v574, %v92
    %v656 = vmul.f32 %v575, %v93
    %v657 = vmul.f32 %v576, %v94
    %v658 = vmul.f32 %v577, %v95
    %v659 = vmul.f32 %v578, %v96
    %v660 = vmul.f32 %v579, %v97
    %v661 = vmul.f32 %v580, %v98
    %v662 = vmul.f32 %v581, %v99
    %v663 = vmul.f32 %v582, %v100
    %v664 = vmul.f32 %v583, %v101
    %v665 = vmul.f32 %v584, %v102
    %v666 = vmul.f32 %v585, %v103
    %v667 = vmul.f32 %v586, %v104
    %v668 = vmul.f32 %v587, %v105
    %v669 = vmul.f32 %v588, %v106
    %v670 = vmul.f32 %v589, %v107
    %v671 = vmul.f32 %v563, %v108
    %v672 = vmul.f32 %v564, %v109
    %v673 = vmul.f32 %v565, %v110
    %v674 = vmul.f32 %v566, %v111
    %v675 = vmul.f32 %v567, %v112
    %v676 = vmul.f32 %v568, %v113
    %v677 = vmul.f32 %v569, %v114
    %v678 = vmul.f32 %v570, %v115
    %v679 = vmul.f32 %v571, %v116
    %v680 = vmul.f32 %v572, %v117
    %v681 = vmul.f32 %v573, %v118
    %v682 = vmul.f32 %v574, %v119
    %v683 = vmul.f32 %v575, %v120
    %v684 = vmul.f32 %v576, %v121
    %v685 = vmul.f32 %v577, %v122
    %v686 = vmul.f32 %v578, %v123
    %v687 = vmul.f32 %v579, %v124
    %v688 = vmul.f32 %v580, %v125
    %v689 = vmul.f32 %v581, %v126
    %v690 = vmul.f32 %v582, %v127
    %v691 = vmul.f32 %v583, %v128
    %v692 = vmul.f32 %v584, %v129
    %v693 = vmul.f32 %v585, %v130
    %v694 = vmul.f32 %v586, %v131
    %v695 = vmul.f32 %v587, %v132
    %v696 = vmul.f32 %v588, %v133
    %v697 = vmul.f32 %v589, %v134
    %v698 = vmul.f32 %v563, %v135
    %v699 = vmul.f32 %v564, %v136
    %v700 = vmul.f32 %v565, %v137
    %v701 = vmul.f32 %v566, %v138
    %v702 = vmul.f32 %v567, %v139
    %v703 = vmul.f32 %v568, %v140
    %v704 = vmul.f32 %v569, %v141
    %v705 = vmul.f32 %v570, %v142
    %v706 = vmul.f32 %v571, %v143
    %v707 = vmul.f32 %v572, %v144
    %v708 = vmul.f32 %v573, %v145
    %v709 = vmul.f32 %v574, %v146
    %v710 = vmul.f32 %v575, %v147
    %v711 = vmul.f32 %v576, %v148
    %v712 = vmul.f32 %v577, %v149
    %v713 = vmul.f32 %v578, %v150
    %v714 = vmul.f32 %v579, %v151
    %v715 = vmul.f32 %v580, %v152
    %v716 = vmul.f32 %v581, %v153
    %v717 = vmul.f32 %v582, %v154
    %v718 = vmul.f32 %v583, %v155
    %v719 = vmul.f32 %v584, %v156
    %v720 = vmul.f32 %v585, %v157
    %v721 = vmul.f32 %v586, %v158
    %v722 = vmul.f32 %v587, %v159
    %v723 = vmul.f32 %v588, %v160
    %v724 = vmul.f32 %v589, %v161
    %v725 = vmul.f32 %v563, %v162
    %v726 = vmul.f32 %v564, %v163
    %v727 = vmul.f32 %v565, %v164
    %v728 = vmul.f32 %v566, %v165
    %v729 = vmul.f32 %v567, %v166
    %v730 = vmul.f32 %v568, %v167
    %v731 = vmul.f32 %v569, %v168
    %v732 = vmul.f32 %v570, %v169
    %v733 = vmul.f32 %v571, %v170
    %v734 = vmul.f32 %v572, %v171
    %v735 = vmul.f32 %v573, %v172
    %v736 = vmul.f32 %v574, %v173
    %v737 = vmul.f32 %v575, %v174
    %v738 = vmul.f32 %v576, %v175
    %v739 = vmul.f32 %v577, %v176
    %v740 = vmul.f32 %v578, %v177
    %v741 = vmul.f32 %v579, %v178
    %v742 = vmul.f32 %v580, %v179
    %v743 = vmul.f32 %v581, %v180
    %v744 = vmul.f32 %v582, %v181
    %v745 = vmul.f32 %v583, %v182
    %v746 = vmul.f32 %v584, %v183
    %v747 = vmul.f32 %v585, %v184
    %v748 = vmul.f32 %v586, %v185
    %v749 = vmul.f32 %v587, %v186
    %v750 = vmul.f32 %v588, %v187
    %v751 = vmul.f32 %v589, %v188
    %v752 = vmul.f32 %v563, %v189
    %v753 = vmul.f32 %v564, %v190
    %v754 = vmul.f32 %v565, %v191
    %v755 = vmul.f32 %v566, %v192
    %v756 = vmul.f32 %v567, %v193
    %v757 = vmul.f32 %v568, %v194
    %v758 = vmul.f32 %v569, %v195
    %v759 = vmul.f32 %v570, %v196
    %v760 = vmul.f32 %v571, %v197
    %v761 = vmul.f32 %v572, %v198
    %v762 = vmul.f32 %v573, %v199
    %v763 = vmul.f32 %v574, %v200
    %v764 = vmul.f32 %v575, %v201
    %v765 = vmul.f32 %v576, %v202
    %v766 = vmul.f32 %v577, %v203
    %v767 = vmul.f32 %v578, %v204
    %v768 = vmul.f32 %v579, %v205
    %v769 = vmul.f32 %v580, %v206
    %v770 = vmul.f32 %v581, %v207
    %v771 = vmul.f32 %v582, %v208
    %v772 = vmul.f32 %v583, %v209
    %v773 = vmul.f32 %v584, %v210
    %v774 = vmul.f32 %v585, %v211
    %v775 = vmul.f32 %v586, %v212
    %v776 = vmul.f32 %v587, %v213
    %v777 = vmul.f32 %v588, %v214
    %v778 = vmul.f32 %v589, %v215
    %v779 = vmul.f32 %v563, %v216
    %v780 = vmul.f32 %v564, %v217
    %v781 = vmul.f32 %v565, %v218
    %v782 = vmul.f32 %v566, %v219
    %v783 = vmul.f32 %v567, %v220
    %v784 = vmul.f32 %v568, %v221
    %v785 = vmul.f32 %v569, %v222
    %v786 = vmul.f32 %v570, %v223
    %v787 = vmul.f32 %v571, %v224
    %v788 = vmul.f32 %v572, %v225
    %v789 = vmul.f32 %v573, %v226
    %v790 = vmul.f32 %v574, %v227
    %v791 = vmul.f32 %v575, %v228
    %v792 = vmul.f32 %v576, %v229
    %v793 = vmul.f32 %v577, %v230
    %v794 = vmul.f32 %v578, %v231
    %v795 = vmul.f32 %v579, %v232
    %v796 = vmul.f32 %v580, %v233
    %v797 = vmul.f32 %v581, %v234
    %v798 = vmul.f32 %v582, %v235
    %v799 = vmul.f32 %v583, %v236
    %v800 = vmul.f32 %v584, %v237
    %v801 = vmul.f32 %v585, %v238
    %v802 = vmul.f32 %v586, %v239
    %v803 = vmul.f32 %v587, %v240
    %v804 = vmul.f32 %v588, %v241
    %v805 = vmul.f32 %v589, %v242
    %vm806 = vcmask 523264
    %v807 = vsel %vm806, %v590, 0.0
    %808 = vadd.xlane.f32.xlu0 %v807
    %v809 = vpop.xlane.xlu0 %808
    %v810 = vsel %vm806, %v591, 0.0
    %811 = vadd.xlane.f32.xlu0 %v810
    %v812 = vpop.xlane.xlu0 %811
    %v813 = vsel %vm806, %v592, 0.0
    %814 = vadd.xlane.f32.xlu0 %v813
    %v815 = vpop.xlane.xlu0 %814
    %v816 = vsel %vm806, %v593, 0.0
    %817 = vadd.xlane.f32.xlu0 %v816
    %v818 = vpop.xlane.xlu0 %817
    %v819 = vsel %vm806, %v594, 0.0
    %820 = vadd.xlane.f32.xlu0 %v819
    %v821 = vpop.xlane.xlu0 %820
    %v822 = vsel %vm806, %v595, 0.0
    %823 = vadd.xlane.f32.xlu0 %v822
    %v824 = vpop.xlane.xlu0 %823
    %v825 = vsel %vm806, %v596, 0.0
    %826 = vadd.xlane.f32.xlu0 %v825
    %v827 = vpop.xlane.xlu0 %826
    %v828 = vsel %vm806, %v597, 0.0
    %829 = vadd.xlane.f32.xlu0 %v828
    %v830 = vpop.xlane.xlu0 %829
    %v831 = vsel %vm806, %v598, 0.0
    %832 = vadd.xlane.f32.xlu0 %v831
    %v833 = vpop.xlane.xlu0 %832
    %v834 = vsel %vm806, %v599, 0.0
    %835 = vadd.xlane.f32.xlu0 %v834
    %v836 = vpop.xlane.xlu0 %835
    %v837 = vsel %vm806, %v600, 0.0
    %838 = vadd.xlane.f32.xlu0 %v837
    %v839 = vpop.xlane.xlu0 %838
    %v840 = vsel %vm806, %v601, 0.0
    %841 = vadd.xlane.f32.xlu0 %v840
    %v842 = vpop.xlane.xlu0 %841
    %v843 = vsel %vm806, %v602, 0.0
    %844 = vadd.xlane.f32.xlu0 %v843
    %v845 = vpop.xlane.xlu0 %844
    %v846 = vsel %vm806, %v603, 0.0
    %847 = vadd.xlane.f32.xlu0 %v846
    %v848 = vpop.xlane.xlu0 %847
    %v849 = vsel %vm806, %v604, 0.0
    %850 = vadd.xlane.f32.xlu0 %v849
    %v851 = vpop.xlane.xlu0 %850
    %v852 = vsel %vm806, %v605, 0.0
    %853 = vadd.xlane.f32.xlu0 %v852
    %v854 = vpop.xlane.xlu0 %853
    %v855 = vsel %vm806, %v606, 0.0
    %856 = vadd.xlane.f32.xlu0 %v855
    %v857 = vpop.xlane.xlu0 %856
    %v858 = vsel %vm806, %v607, 0.0
    %859 = vadd.xlane.f32.xlu0 %v858
    %v860 = vpop.xlane.xlu0 %859
    %v861 = vsel %vm806, %v608, 0.0
    %862 = vadd.xlane.f32.xlu0 %v861
    %v863 = vpop.xlane.xlu0 %862
    %v864 = vsel %vm806, %v609, 0.0
    %865 = vadd.xlane.f32.xlu0 %v864
    %v866 = vpop.xlane.xlu0 %865
    %v867 = vsel %vm806, %v610, 0.0
    %868 = vadd.xlane.f32.xlu0 %v867
    %v869 = vpop.xlane.xlu0 %868
    %v870 = vsel %vm806, %v611, 0.0
    %871 = vadd.xlane.f32.xlu0 %v870
    %v872 = vpop.xlane.xlu0 %871
    %v873 = vsel %vm806, %v612, 0.0
    %874 = vadd.xlane.f32.xlu0 %v873
    %v875 = vpop.xlane.xlu0 %874
    %v876 = vsel %vm806, %v613, 0.0
    %877 = vadd.xlane.f32.xlu0 %v876
    %v878 = vpop.xlane.xlu0 %877
    %v879 = vsel %vm806, %v614, 0.0
    %880 = vadd.xlane.f32.xlu0 %v879
    %v881 = vpop.xlane.xlu0 %880
    %v882 = vsel %vm806, %v615, 0.0
    %883 = vadd.xlane.f32.xlu0 %v882
    %v884 = vpop.xlane.xlu0 %883
    %vm885 = vcmask 517120
    %v886 = vsel %vm885, %v616, 0.0
    %887 = vadd.xlane.f32.xlu0 %v886
    %v888 = vpop.xlane.xlu0 %887
    %v889 = vsel %vm806, %v617, 0.0
    %890 = vadd.xlane.f32.xlu0 %v889
    %v891 = vpop.xlane.xlu0 %890
    %v892 = vsel %vm806, %v618, 0.0
    %893 = vadd.xlane.f32.xlu0 %v892
    %v894 = vpop.xlane.xlu0 %893
    %v895 = vsel %vm806, %v619, 0.0
    %896 = vadd.xlane.f32.xlu0 %v895
    %v897 = vpop.xlane.xlu0 %896
    %v898 = vsel %vm806, %v620, 0.0
    %899 = vadd.xlane.f32.xlu0 %v898
    %v900 = vpop.xlane.xlu0 %899
    %v901 = vsel %vm806, %v621, 0.0
    %902 = vadd.xlane.f32.xlu0 %v901
    %v903 = vpop.xlane.xlu0 %902
    %v904 = vsel %vm806, %v622, 0.0
    %905 = vadd.xlane.f32.xlu0 %v904
    %v906 = vpop.xlane.xlu0 %905
    %v907 = vsel %vm806, %v623, 0.0
    %908 = vadd.xlane.f32.xlu0 %v907
    %v909 = vpop.xlane.xlu0 %908
    %v910 = vsel %vm806, %v624, 0.0
    %911 = vadd.xlane.f32.xlu0 %v910
    %v912 = vpop.xlane.xlu0 %911
    %v913 = vsel %vm806, %v625, 0.0
    %914 = vadd.xlane.f32.xlu0 %v913
    %v915 = vpop.xlane.xlu0 %914
    %v916 = vsel %vm806, %v626, 0.0
    %917 = vadd.xlane.f32.xlu0 %v916
    %v918 = vpop.xlane.xlu0 %917
    %v919 = vsel %vm806, %v627, 0.0
    %920 = vadd.xlane.f32.xlu0 %v919
    %v921 = vpop.xlane.xlu0 %920
    %v922 = vsel %vm806, %v628, 0.0
    %923 = vadd.xlane.f32.xlu0 %v922
    %v924 = vpop.xlane.xlu0 %923
    %v925 = vsel %vm806, %v629, 0.0
    %926 = vadd.xlane.f32.xlu0 %v925
    %v927 = vpop.xlane.xlu0 %926
    %v928 = vsel %vm806, %v630, 0.0
    %929 = vadd.xlane.f32.xlu0 %v928
    %v930 = vpop.xlane.xlu0 %929
    %v931 = vsel %vm806, %v631, 0.0
    %932 = vadd.xlane.f32.xlu0 %v931
    %v933 = vpop.xlane.xlu0 %932
    %v934 = vsel %vm806, %v632, 0.0
    %935 = vadd.xlane.f32.xlu0 %v934
    %v936 = vpop.xlane.xlu0 %935
    %v937 = vsel %vm806, %v633, 0.0
    %938 = vadd.xlane.f32.xlu0 %v937
    %v939 = vpop.xlane.xlu0 %938
    %v940 = vsel %vm806, %v634, 0.0
    %941 = vadd.xlane.f32.xlu0 %v940
    %v942 = vpop.xlane.xlu0 %941
    %v943 = vsel %vm806, %v635, 0.0
    %944 = vadd.xlane.f32.xlu0 %v943
    %v945 = vpop.xlane.xlu0 %944
    %v946 = vsel %vm806, %v636, 0.0
    %947 = vadd.xlane.f32.xlu0 %v946
    %v948 = vpop.xlane.xlu0 %947
    %v949 = vsel %vm806, %v637, 0.0
    %950 = vadd.xlane.f32.xlu0 %v949
    %v951 = vpop.xlane.xlu0 %950
    %v952 = vsel %vm806, %v638, 0.0
    %953 = vadd.xlane.f32.xlu0 %v952
    %v954 = vpop.xlane.xlu0 %953
    %v955 = vsel %vm806, %v639, 0.0
    %956 = vadd.xlane.f32.xlu0 %v955
    %v957 = vpop.xlane.xlu0 %956
    %v958 = vsel %vm806, %v640, 0.0
    %959 = vadd.xlane.f32.xlu0 %v958
    %v960 = vpop.xlane.xlu0 %959
    %v961 = vsel %vm806, %v641, 0.0
    %962 = vadd.xlane.f32.xlu0 %v961
    %v963 = vpop.xlane.xlu0 %962
    %v964 = vsel %vm806, %v642, 0.0
    %965 = vadd.xlane.f32.xlu0 %v964
    %v966 = vpop.xlane.xlu0 %965
    %v967 = vsel %vm885, %v643, 0.0
    %968 = vadd.xlane.f32.xlu0 %v967
    %v969 = vpop.xlane.xlu0 %968
    %v970 = vsel %vm806, %v644, 0.0
    %971 = vadd.xlane.f32.xlu0 %v970
    %v972 = vpop.xlane.xlu0 %971
    %v973 = vsel %vm806, %v645, 0.0
    %974 = vadd.xlane.f32.xlu0 %v973
    %v975 = vpop.xlane.xlu0 %974
    %v976 = vsel %vm806, %v646, 0.0
    %977 = vadd.xlane.f32.xlu0 %v976
    %v978 = vpop.xlane.xlu0 %977
    %v979 = vsel %vm806, %v647, 0.0
    %980 = vadd.xlane.f32.xlu0 %v979
    %v981 = vpop.xlane.xlu0 %980
    %v982 = vsel %vm806, %v648, 0.0
    %983 = vadd.xlane.f32.xlu0 %v982
    %v984 = vpop.xlane.xlu0 %983
    %v985 = vsel %vm806, %v649, 0.0
    %986 = vadd.xlane.f32.xlu0 %v985
    %v987 = vpop.xlane.xlu0 %986
    %v988 = vsel %vm806, %v650, 0.0
    %989 = vadd.xlane.f32.xlu0 %v988
    %v990 = vpop.xlane.xlu0 %989
    %v991 = vsel %vm806, %v651, 0.0
    %992 = vadd.xlane.f32.xlu0 %v991
    %v993 = vpop.xlane.xlu0 %992
    %v994 = vsel %vm806, %v652, 0.0
    %995 = vadd.xlane.f32.xlu0 %v994
    %v996 = vpop.xlane.xlu0 %995
    %v997 = vsel %vm806, %v653, 0.0
    %998 = vadd.xlane.f32.xlu0 %v997
    %v999 = vpop.xlane.xlu0 %998
    %v1000 = vsel %vm806, %v654, 0.0
    %1001 = vadd.xlane.f32.xlu0 %v1000
    %v1002 = vpop.xlane.xlu0 %1001
    %v1003 = vsel %vm806, %v655, 0.0
    %1004 = vadd.xlane.f32.xlu0 %v1003
    %v1005 = vpop.xlane.xlu0 %1004
    %v1006 = vsel %vm806, %v656, 0.0
    %1007 = vadd.xlane.f32.xlu0 %v1006
    %v1008 = vpop.xlane.xlu0 %1007
    %v1009 = vsel %vm806, %v657, 0.0
    %1010 = vadd.xlane.f32.xlu0 %v1009
    %v1011 = vpop.xlane.xlu0 %1010
    %v1012 = vsel %vm806, %v658, 0.0
    %1013 = vadd.xlane.f32.xlu0 %v1012
    %v1014 = vpop.xlane.xlu0 %1013
    %v1015 = vsel %vm806, %v659, 0.0
    %1016 = vadd.xlane.f32.xlu0 %v1015
    %v1017 = vpop.xlane.xlu0 %1016
    %v1018 = vsel %vm806, %v660, 0.0
    %1019 = vadd.xlane.f32.xlu0 %v1018
    %v1020 = vpop.xlane.xlu0 %1019
    %v1021 = vsel %vm806, %v661, 0.0
    %1022 = vadd.xlane.f32.xlu0 %v1021
    %v1023 = vpop.xlane.xlu0 %1022
    %v1024 = vsel %vm806, %v662, 0.0
    %1025 = vadd.xlane.f32.xlu0 %v1024
    %v1026 = vpop.xlane.xlu0 %1025
    %v1027 = vsel %vm806, %v663, 0.0
    %1028 = vadd.xlane.f32.xlu0 %v1027
    %v1029 = vpop.xlane.xlu0 %1028
    %v1030 = vsel %vm806, %v664, 0.0
    %1031 = vadd.xlane.f32.xlu0 %v1030
    %v1032 = vpop.xlane.xlu0 %1031
    %v1033 = vsel %vm806, %v665, 0.0
    %1034 = vadd.xlane.f32.xlu0 %v1033
    %v1035 = vpop.xlane.xlu0 %1034
    %v1036 = vsel %vm806, %v666, 0.0
    %1037 = vadd.xlane.f32.xlu0 %v1036
    %v1038 = vpop.xlane.xlu0 %1037
    %v1039 = vsel %vm806, %v667, 0.0
    %1040 = vadd.xlane.f32.xlu0 %v1039
    %v1041 = vpop.xlane.xlu0 %1040
    %v1042 = vsel %vm806, %v668, 0.0
    %1043 = vadd.xlane.f32.xlu0 %v1042
    %v1044 = vpop.xlane.xlu0 %1043
    %v1045 = vsel %vm806, %v669, 0.0
    %1046 = vadd.xlane.f32.xlu0 %v1045
    %v1047 = vpop.xlane.xlu0 %1046
    %v1048 = vsel %vm885, %v670, 0.0
    %1049 = vadd.xlane.f32.xlu0 %v1048
    %v1050 = vpop.xlane.xlu0 %1049
    %v1051 = vsel %vm806, %v671, 0.0
    %1052 = vadd.xlane.f32.xlu0 %v1051
    %v1053 = vpop.xlane.xlu0 %1052
    %v1054 = vsel %vm806, %v672, 0.0
    %1055 = vadd.xlane.f32.xlu0 %v1054
    %v1056 = vpop.xlane.xlu0 %1055
    %v1057 = vsel %vm806, %v673, 0.0
    %1058 = vadd.xlane.f32.xlu0 %v1057
    %v1059 = vpop.xlane.xlu0 %1058
    %v1060 = vsel %vm806, %v674, 0.0
    %1061 = vadd.xlane.f32.xlu0 %v1060
    %v1062 = vpop.xlane.xlu0 %1061
    %v1063 = vsel %vm806, %v675, 0.0
    %1064 = vadd.xlane.f32.xlu0 %v1063
    %v1065 = vpop.xlane.xlu0 %1064
    %v1066 = vsel %vm806, %v676, 0.0
    %1067 = vadd.xlane.f32.xlu0 %v1066
    %v1068 = vpop.xlane.xlu0 %1067
    %v1069 = vsel %vm806, %v677, 0.0
    %1070 = vadd.xlane.f32.xlu0 %v1069
    %v1071 = vpop.xlane.xlu0 %1070
    %v1072 = vsel %vm806, %v678, 0.0
    %1073 = vadd.xlane.f32.xlu0 %v1072
    %v1074 = vpop.xlane.xlu0 %1073
    %v1075 = vsel %vm806, %v679, 0.0
    %1076 = vadd.xlane.f32.xlu0 %v1075
    %v1077 = vpop.xlane.xlu0 %1076
    %v1078 = vsel %vm806, %v680, 0.0
    %1079 = vadd.xlane.f32.xlu0 %v1078
    %v1080 = vpop.xlane.xlu0 %1079
    %v1081 = vsel %vm806, %v681, 0.0
    %1082 = vadd.xlane.f32.xlu0 %v1081
    %v1083 = vpop.xlane.xlu0 %1082
    %v1084 = vsel %vm806, %v682, 0.0
    %1085 = vadd.xlane.f32.xlu0 %v1084
    %v1086 = vpop.xlane.xlu0 %1085
    %v1087 = vsel %vm806, %v683, 0.0
    %1088 = vadd.xlane.f32.xlu0 %v1087
    %v1089 = vpop.xlane.xlu0 %1088
    %v1090 = vsel %vm806, %v684, 0.0
    %1091 = vadd.xlane.f32.xlu0 %v1090
    %v1092 = vpop.xlane.xlu0 %1091
    %v1093 = vsel %vm806, %v685, 0.0
    %1094 = vadd.xlane.f32.xlu0 %v1093
    %v1095 = vpop.xlane.xlu0 %1094
    %v1096 = vsel %vm806, %v686, 0.0
    %1097 = vadd.xlane.f32.xlu0 %v1096
    %v1098 = vpop.xlane.xlu0 %1097
    %v1099 = vsel %vm806, %v687, 0.0
    %1100 = vadd.xlane.f32.xlu0 %v1099
    %v1101 = vpop.xlane.xlu0 %1100
    %v1102 = vsel %vm806, %v688, 0.0
    %1103 = vadd.xlane.f32.xlu0 %v1102
    %v1104 = vpop.xlane.xlu0 %1103
    %v1105 = vsel %vm806, %v689, 0.0
    %1106 = vadd.xlane.f32.xlu0 %v1105
    %v1107 = vpop.xlane.xlu0 %1106
    %v1108 = vsel %vm806, %v690, 0.0
    %1109 = vadd.xlane.f32.xlu0 %v1108
    %v1110 = vpop.xlane.xlu0 %1109
    %v1111 = vsel %vm806, %v691, 0.0
    %1112 = vadd.xlane.f32.xlu0 %v1111
    %v1113 = vpop.xlane.xlu0 %1112
    %v1114 = vsel %vm806, %v692, 0.0
    %1115 = vadd.xlane.f32.xlu0 %v1114
    %v1116 = vpop.xlane.xlu0 %1115
    %v1117 = vsel %vm806, %v693, 0.0
    %1118 = vadd.xlane.f32.xlu0 %v1117
    %v1119 = vpop.xlane.xlu0 %1118
    %v1120 = vsel %vm806, %v694, 0.0
    %1121 = vadd.xlane.f32.xlu0 %v1120
    %v1122 = vpop.xlane.xlu0 %1121
    %v1123 = vsel %vm806, %v695, 0.0
    %1124 = vadd.xlane.f32.xlu0 %v1123
    %v1125 = vpop.xlane.xlu0 %1124
    %v1126 = vsel %vm806, %v696, 0.0
    %1127 = vadd.xlane.f32.xlu0 %v1126
    %v1128 = vpop.xlane.xlu0 %1127
    %v1129 = vsel %vm885, %v697, 0.0
    %1130 = vadd.xlane.f32.xlu0 %v1129
    %v1131 = vpop.xlane.xlu0 %1130
    %v1132 = vsel %vm806, %v698, 0.0
    %1133 = vadd.xlane.f32.xlu0 %v1132
    %v1134 = vpop.xlane.xlu0 %1133
    %v1135 = vsel %vm806, %v699, 0.0
    %1136 = vadd.xlane.f32.xlu0 %v1135
    %v1137 = vpop.xlane.xlu0 %1136
    %v1138 = vsel %vm806, %v700, 0.0
    %1139 = vadd.xlane.f32.xlu0 %v1138
    %v1140 = vpop.xlane.xlu0 %1139
    %v1141 = vsel %vm806, %v701, 0.0
    %1142 = vadd.xlane.f32.xlu0 %v1141
    %v1143 = vpop.xlane.xlu0 %1142
    %v1144 = vsel %vm806, %v702, 0.0
    %1145 = vadd.xlane.f32.xlu0 %v1144
    %v1146 = vpop.xlane.xlu0 %1145
    %v1147 = vsel %vm806, %v703, 0.0
    %1148 = vadd.xlane.f32.xlu0 %v1147
    %v1149 = vpop.xlane.xlu0 %1148
    %v1150 = vsel %vm806, %v704, 0.0
    %1151 = vadd.xlane.f32.xlu0 %v1150
    %v1152 = vpop.xlane.xlu0 %1151
    %v1153 = vsel %vm806, %v705, 0.0
    %1154 = vadd.xlane.f32.xlu0 %v1153
    %v1155 = vpop.xlane.xlu0 %1154
    %v1156 = vsel %vm806, %v706, 0.0
    %1157 = vadd.xlane.f32.xlu0 %v1156
    %v1158 = vpop.xlane.xlu0 %1157
    %v1159 = vsel %vm806, %v707, 0.0
    %1160 = vadd.xlane.f32.xlu0 %v1159
    %v1161 = vpop.xlane.xlu0 %1160
    %v1162 = vsel %vm806, %v708, 0.0
    %1163 = vadd.xlane.f32.xlu0 %v1162
    %v1164 = vpop.xlane.xlu0 %1163
    %v1165 = vsel %vm806, %v709, 0.0
    %1166 = vadd.xlane.f32.xlu0 %v1165
    %v1167 = vpop.xlane.xlu0 %1166
    %v1168 = vsel %vm806, %v710, 0.0
    %1169 = vadd.xlane.f32.xlu0 %v1168
    %v1170 = vpop.xlane.xlu0 %1169
    %v1171 = vsel %vm806, %v711, 0.0
    %1172 = vadd.xlane.f32.xlu0 %v1171
    %v1173 = vpop.xlane.xlu0 %1172
    %v1174 = vsel %vm806, %v712, 0.0
    %1175 = vadd.xlane.f32.xlu0 %v1174
    %v1176 = vpop.xlane.xlu0 %1175
    %v1177 = vsel %vm806, %v713, 0.0
    %1178 = vadd.xlane.f32.xlu0 %v1177
    %v1179 = vpop.xlane.xlu0 %1178
    %v1180 = vsel %vm806, %v714, 0.0
    %1181 = vadd.xlane.f32.xlu0 %v1180
    %v1182 = vpop.xlane.xlu0 %1181
    %v1183 = vsel %vm806, %v715, 0.0
    %1184 = vadd.xlane.f32.xlu0 %v1183
    %v1185 = vpop.xlane.xlu0 %1184
    %v1186 = vsel %vm806, %v716, 0.0
    %1187 = vadd.xlane.f32.xlu0 %v1186
    %v1188 = vpop.xlane.xlu0 %1187
    %v1189 = vsel %vm806, %v717, 0.0
    %1190 = vadd.xlane.f32.xlu0 %v1189
    %v1191 = vpop.xlane.xlu0 %1190
    %v1192 = vsel %vm806, %v718, 0.0
    %1193 = vadd.xlane.f32.xlu0 %v1192
    %v1194 = vpop.xlane.xlu0 %1193
    %v1195 = vsel %vm806, %v719, 0.0
    %1196 = vadd.xlane.f32.xlu0 %v1195
    %v1197 = vpop.xlane.xlu0 %1196
    %v1198 = vsel %vm806, %v720, 0.0
    %1199 = vadd.xlane.f32.xlu0 %v1198
    %v1200 = vpop.xlane.xlu0 %1199
    %v1201 = vsel %vm806, %v721, 0.0
    %1202 = vadd.xlane.f32.xlu0 %v1201
    %v1203 = vpop.xlane.xlu0 %1202
    %v1204 = vsel %vm806, %v722, 0.0
    %1205 = vadd.xlane.f32.xlu0 %v1204
    %v1206 = vpop.xlane.xlu0 %1205
    %v1207 = vsel %vm806, %v723, 0.0
    %1208 = vadd.xlane.f32.xlu0 %v1207
    %v1209 = vpop.xlane.xlu0 %1208
    %v1210 = vsel %vm885, %v724, 0.0
    %1211 = vadd.xlane.f32.xlu0 %v1210
    %v1212 = vpop.xlane.xlu0 %1211
    %v1213 = vsel %vm806, %v725, 0.0
    %1214 = vadd.xlane.f32.xlu0 %v1213
    %v1215 = vpop.xlane.xlu0 %1214
    %v1216 = vsel %vm806, %v726, 0.0
    %1217 = vadd.xlane.f32.xlu0 %v1216
    %v1218 = vpop.xlane.xlu0 %1217
    %v1219 = vsel %vm806, %v727, 0.0
    %1220 = vadd.xlane.f32.xlu0 %v1219
    %v1221 = vpop.xlane.xlu0 %1220
    %v1222 = vsel %vm806, %v728, 0.0
    %1223 = vadd.xlane.f32.xlu0 %v1222
    %v1224 = vpop.xlane.xlu0 %1223
    %v1225 = vsel %vm806, %v729, 0.0
    %1226 = vadd.xlane.f32.xlu0 %v1225
    %v1227 = vpop.xlane.xlu0 %1226
    %v1228 = vsel %vm806, %v730, 0.0
    %1229 = vadd.xlane.f32.xlu0 %v1228
    %v1230 = vpop.xlane.xlu0 %1229
    %v1231 = vsel %vm806, %v731, 0.0
    %1232 = vadd.xlane.f32.xlu0 %v1231
    %v1233 = vpop.xlane.xlu0 %1232
    %v1234 = vsel %vm806, %v732, 0.0
    %1235 = vadd.xlane.f32.xlu0 %v1234
    %v1236 = vpop.xlane.xlu0 %1235
    %v1237 = vsel %vm806, %v733, 0.0
    %1238 = vadd.xlane.f32.xlu0 %v1237
    %v1239 = vpop.xlane.xlu0 %1238
    %v1240 = vsel %vm806, %v734, 0.0
    %1241 = vadd.xlane.f32.xlu0 %v1240
    %v1242 = vpop.xlane.xlu0 %1241
    %v1243 = vsel %vm806, %v735, 0.0
    %1244 = vadd.xlane.f32.xlu0 %v1243
    %v1245 = vpop.xlane.xlu0 %1244
    %v1246 = vsel %vm806, %v736, 0.0
    %1247 = vadd.xlane.f32.xlu0 %v1246
    %v1248 = vpop.xlane.xlu0 %1247
    %v1249 = vsel %vm806, %v737, 0.0
    %1250 = vadd.xlane.f32.xlu0 %v1249
    %v1251 = vpop.xlane.xlu0 %1250
    %v1252 = vsel %vm806, %v738, 0.0
    %1253 = vadd.xlane.f32.xlu0 %v1252
    %v1254 = vpop.xlane.xlu0 %1253
    %v1255 = vsel %vm806, %v739, 0.0
    %1256 = vadd.xlane.f32.xlu0 %v1255
    %v1257 = vpop.xlane.xlu0 %1256
    %v1258 = vsel %vm806, %v740, 0.0
    %1259 = vadd.xlane.f32.xlu0 %v1258
    %v1260 = vpop.xlane.xlu0 %1259
    %v1261 = vsel %vm806, %v741, 0.0
    %1262 = vadd.xlane.f32.xlu0 %v1261
    %v1263 = vpop.xlane.xlu0 %1262
    %v1264 = vsel %vm806, %v742, 0.0
    %1265 = vadd.xlane.f32.xlu0 %v1264
    %v1266 = vpop.xlane.xlu0 %1265
    %v1267 = vsel %vm806, %v743, 0.0
    %1268 = vadd.xlane.f32.xlu0 %v1267
    %v1269 = vpop.xlane.xlu0 %1268
    %v1270 = vsel %vm806, %v744, 0.0
    %1271 = vadd.xlane.f32.xlu0 %v1270
    %v1272 = vpop.xlane.xlu0 %1271
    %v1273 = vsel %vm806, %v745, 0.0
    %1274 = vadd.xlane.f32.xlu0 %v1273
    %v1275 = vpop.xlane.xlu0 %1274
    %v1276 = vsel %vm806, %v746, 0.0
    %1277 = vadd.xlane.f32.xlu0 %v1276
    %v1278 = vpop.xlane.xlu0 %1277
    %v1279 = vsel %vm806, %v747, 0.0
    %1280 = vadd.xlane.f32.xlu0 %v1279
    %v1281 = vpop.xlane.xlu0 %1280
    %v1282 = vsel %vm806, %v748, 0.0
    %1283 = vadd.xlane.f32.xlu0 %v1282
    %v1284 = vpop.xlane.xlu0 %1283
    %v1285 = vsel %vm806, %v749, 0.0
    %1286 = vadd.xlane.f32.xlu0 %v1285
    %v1287 = vpop.xlane.xlu0 %1286
    %v1288 = vsel %vm806, %v750, 0.0
    %1289 = vadd.xlane.f32.xlu0 %v1288
    %v1290 = vpop.xlane.xlu0 %1289
    %v1291 = vsel %vm885, %v751, 0.0
    %1292 = vadd.xlane.f32.xlu0 %v1291
    %v1293 = vpop.xlane.xlu0 %1292
    %v1294 = vsel %vm806, %v752, 0.0
    %1295 = vadd.xlane.f32.xlu0 %v1294
    %v1296 = vpop.xlane.xlu0 %1295
    %v1297 = vsel %vm806, %v753, 0.0
    %1298 = vadd.xlane.f32.xlu0 %v1297
    %v1299 = vpop.xlane.xlu0 %1298
    %v1300 = vsel %vm806, %v754, 0.0
    %1301 = vadd.xlane.f32.xlu0 %v1300
    %v1302 = vpop.xlane.xlu0 %1301
    %v1303 = vsel %vm806, %v755, 0.0
    %1304 = vadd.xlane.f32.xlu0 %v1303
    %v1305 = vpop.xlane.xlu0 %1304
    %v1306 = vsel %vm806, %v756, 0.0
    %1307 = vadd.xlane.f32.xlu0 %v1306
    %v1308 = vpop.xlane.xlu0 %1307
    %v1309 = vsel %vm806, %v757, 0.0
    %1310 = vadd.xlane.f32.xlu0 %v1309
    %v1311 = vpop.xlane.xlu0 %1310
    %v1312 = vsel %vm806, %v758, 0.0
    %1313 = vadd.xlane.f32.xlu0 %v1312
    %v1314 = vpop.xlane.xlu0 %1313
    %v1315 = vsel %vm806, %v759, 0.0
    %1316 = vadd.xlane.f32.xlu0 %v1315
    %v1317 = vpop.xlane.xlu0 %1316
    %v1318 = vsel %vm806, %v760, 0.0
    %1319 = vadd.xlane.f32.xlu0 %v1318
    %v1320 = vpop.xlane.xlu0 %1319
    %v1321 = vsel %vm806, %v761, 0.0
    %1322 = vadd.xlane.f32.xlu0 %v1321
    %v1323 = vpop.xlane.xlu0 %1322
    %v1324 = vsel %vm806, %v762, 0.0
    %1325 = vadd.xlane.f32.xlu0 %v1324
    %v1326 = vpop.xlane.xlu0 %1325
    %v1327 = vsel %vm806, %v763, 0.0
    %1328 = vadd.xlane.f32.xlu0 %v1327
    %v1329 = vpop.xlane.xlu0 %1328
    %v1330 = vsel %vm806, %v764, 0.0
    %1331 = vadd.xlane.f32.xlu0 %v1330
    %v1332 = vpop.xlane.xlu0 %1331
    %v1333 = vsel %vm806, %v765, 0.0
    %1334 = vadd.xlane.f32.xlu0 %v1333
    %v1335 = vpop.xlane.xlu0 %1334
    %v1336 = vsel %vm806, %v766, 0.0
    %1337 = vadd.xlane.f32.xlu0 %v1336
    %v1338 = vpop.xlane.xlu0 %1337
    %v1339 = vsel %vm806, %v767, 0.0
    %1340 = vadd.xlane.f32.xlu0 %v1339
    %v1341 = vpop.xlane.xlu0 %1340
    %v1342 = vsel %vm806, %v768, 0.0
    %1343 = vadd.xlane.f32.xlu0 %v1342
    %v1344 = vpop.xlane.xlu0 %1343
    %v1345 = vsel %vm806, %v769, 0.0
    %1346 = vadd.xlane.f32.xlu0 %v1345
    %v1347 = vpop.xlane.xlu0 %1346
    %v1348 = vsel %vm806, %v770, 0.0
    %1349 = vadd.xlane.f32.xlu0 %v1348
    %v1350 = vpop.xlane.xlu0 %1349
    %v1351 = vsel %vm806, %v771, 0.0
    %1352 = vadd.xlane.f32.xlu0 %v1351
    %v1353 = vpop.xlane.xlu0 %1352
    %v1354 = vsel %vm806, %v772, 0.0
    %1355 = vadd.xlane.f32.xlu0 %v1354
    %v1356 = vpop.xlane.xlu0 %1355
    %v1357 = vsel %vm806, %v773, 0.0
    %1358 = vadd.xlane.f32.xlu0 %v1357
    %v1359 = vpop.xlane.xlu0 %1358
    %v1360 = vsel %vm806, %v774, 0.0
    %1361 = vadd.xlane.f32.xlu0 %v1360
    %v1362 = vpop.xlane.xlu0 %1361
    %v1363 = vsel %vm806, %v775, 0.0
    %1364 = vadd.xlane.f32.xlu0 %v1363
    %v1365 = vpop.xlane.xlu0 %1364
    %v1366 = vsel %vm806, %v776, 0.0
    %1367 = vadd.xlane.f32.xlu0 %v1366
    %v1368 = vpop.xlane.xlu0 %1367
    %v1369 = vsel %vm806, %v777, 0.0
    %1370 = vadd.xlane.f32.xlu0 %v1369
    %v1371 = vpop.xlane.xlu0 %1370
    %v1372 = vsel %vm885, %v778, 0.0
    %1373 = vadd.xlane.f32.xlu0 %v1372
    %v1374 = vpop.xlane.xlu0 %1373
    %v1375 = vsel %vm806, %v779, 0.0
    %1376 = vadd.xlane.f32.xlu0 %v1375
    %v1377 = vpop.xlane.xlu0 %1376
    %v1378 = vsel %vm806, %v780, 0.0
    %1379 = vadd.xlane.f32.xlu0 %v1378
    %v1380 = vpop.xlane.xlu0 %1379
    %v1381 = vsel %vm806, %v781, 0.0
    %1382 = vadd.xlane.f32.xlu0 %v1381
    %v1383 = vpop.xlane.xlu0 %1382
    %v1384 = vsel %vm806, %v782, 0.0
    %1385 = vadd.xlane.f32.xlu0 %v1384
    %v1386 = vpop.xlane.xlu0 %1385
    %v1387 = vsel %vm806, %v783, 0.0
    %1388 = vadd.xlane.f32.xlu0 %v1387
    %v1389 = vpop.xlane.xlu0 %1388
    %v1390 = vsel %vm806, %v784, 0.0
    %1391 = vadd.xlane.f32.xlu0 %v1390
    %v1392 = vpop.xlane.xlu0 %1391
    %v1393 = vsel %vm806, %v785, 0.0
    %1394 = vadd.xlane.f32.xlu0 %v1393
    %v1395 = vpop.xlane.xlu0 %1394
    %v1396 = vsel %vm806, %v786, 0.0
    %1397 = vadd.xlane.f32.xlu0 %v1396
    %v1398 = vpop.xlane.xlu0 %1397
    %v1399 = vsel %vm806, %v787, 0.0
    %1400 = vadd.xlane.f32.xlu0 %v1399
    %v1401 = vpop.xlane.xlu0 %1400
    %v1402 = vsel %vm806, %v788, 0.0
    %1403 = vadd.xlane.f32.xlu0 %v1402
    %v1404 = vpop.xlane.xlu0 %1403
    %v1405 = vsel %vm806, %v789, 0.0
    %1406 = vadd.xlane.f32.xlu0 %v1405
    %v1407 = vpop.xlane.xlu0 %1406
    %v1408 = vsel %vm806, %v790, 0.0
    %1409 = vadd.xlane.f32.xlu0 %v1408
    %v1410 = vpop.xlane.xlu0 %1409
    %v1411 = vsel %vm806, %v791, 0.0
    %1412 = vadd.xlane.f32.xlu0 %v1411
    %v1413 = vpop.xlane.xlu0 %1412
    %v1414 = vsel %vm806, %v792, 0.0
    %1415 = vadd.xlane.f32.xlu0 %v1414
    %v1416 = vpop.xlane.xlu0 %1415
    %v1417 = vsel %vm806, %v793, 0.0
    %1418 = vadd.xlane.f32.xlu0 %v1417
    %v1419 = vpop.xlane.xlu0 %1418
    %v1420 = vsel %vm806, %v794, 0.0
    %1421 = vadd.xlane.f32.xlu0 %v1420
    %v1422 = vpop.xlane.xlu0 %1421
    %v1423 = vsel %vm806, %v795, 0.0
    %1424 = vadd.xlane.f32.xlu0 %v1423
    %v1425 = vpop.xlane.xlu0 %1424
    %v1426 = vsel %vm806, %v796, 0.0
    %1427 = vadd.xlane.f32.xlu0 %v1426
    %v1428 = vpop.xlane.xlu0 %1427
    %v1429 = vsel %vm806, %v797, 0.0
    %1430 = vadd.xlane.f32.xlu0 %v1429
    %v1431 = vpop.xlane.xlu0 %1430
    %v1432 = vsel %vm806, %v798, 0.0
    %1433 = vadd.xlane.f32.xlu0 %v1432
    %v1434 = vpop.xlane.xlu0 %1433
    %v1435 = vsel %vm806, %v799, 0.0
    %1436 = vadd.xlane.f32.xlu0 %v1435
    %v1437 = vpop.xlane.xlu0 %1436
    %v1438 = vsel %vm806, %v800, 0.0
    %1439 = vadd.xlane.f32.xlu0 %v1438
    %v1440 = vpop.xlane.xlu0 %1439
    %v1441 = vsel %vm806, %v801, 0.0
    %1442 = vadd.xlane.f32.xlu0 %v1441
    %v1443 = vpop.xlane.xlu0 %1442
    %v1444 = vsel %vm806, %v802, 0.0
    %1445 = vadd.xlane.f32.xlu0 %v1444
    %v1446 = vpop.xlane.xlu0 %1445
    %v1447 = vsel %vm806, %v803, 0.0
    %1448 = vadd.xlane.f32.xlu0 %v1447
    %v1449 = vpop.xlane.xlu0 %1448
    %v1450 = vsel %vm806, %v804, 0.0
    %1451 = vadd.xlane.f32.xlu0 %v1450
    %v1452 = vpop.xlane.xlu0 %1451
    %v1453 = vsel %vm885, %v805, 0.0
    %1454 = vadd.xlane.f32.xlu0 %v1453
    %v1455 = vpop.xlane.xlu0 %1454
    %v1672 = vlaneseq
    %v1673 = vand.u32 %v1672, 127
    %v1674 = vlaneseq
    %v1675 = vshrl.u32 %v1674, 7
    %v1676 = vsub.s32 %v1673, %v1675
    %v1677 = vrot.slane %v809, %v1676
    %v1678 = vadd.s32 %v1673, 4294967288
    %v1679 = vlaneseq
    %v1680 = vshrl.u32 %v1679, 7
    %v1681 = vsub.s32 %v1678, %v1680
    %v1682 = vrot.slane %v812, %v1681
    %vm1683 = vcmask 130112
    %v1684 = vsel %vm1683, %v1682, %v1677
    %v1685 = vadd.s32 %v1673, 4294967280
    %v1686 = vlaneseq
    %v1687 = vshrl.u32 %v1686, 7
    %v1688 = vsub.s32 %v1685, %v1687
    %v1689 = vrot.slane %v815, %v1688
    %vm1690 = vcmask 195712
    %v1691 = vsel %vm1690, %v1689, %v1684
    %v1692 = vadd.s32 %v1673, 4294967272
    %v1693 = vlaneseq
    %v1694 = vshrl.u32 %v1693, 7
    %v1695 = vsub.s32 %v1692, %v1694
    %v1696 = vrot.slane %v818, %v1695
    %vm1697 = vcmask 261312
    %v1698 = vsel %vm1697, %v1696, %v1691
    %v1699 = vadd.s32 %v1673, 4294967264
    %v1700 = vlaneseq
    %v1701 = vshrl.u32 %v1700, 7
    %v1702 = vsub.s32 %v1699, %v1701
    %v1703 = vrot.slane %v821, %v1702
    %vm1704 = vcmask 326912
    %v1705 = vsel %vm1704, %v1703, %v1698
    %v1706 = vadd.s32 %v1673, 4294967256
    %v1707 = vlaneseq
    %v1708 = vshrl.u32 %v1707, 7
    %v1709 = vsub.s32 %v1706, %v1708
    %v1710 = vrot.slane %v824, %v1709
    %vm1711 = vcmask 392512
    %v1712 = vsel %vm1711, %v1710, %v1705
    %v1713 = vadd.s32 %v1673, 4294967248
    %v1714 = vlaneseq
    %v1715 = vshrl.u32 %v1714, 7
    %v1716 = vsub.s32 %v1713, %v1715
    %v1717 = vrot.slane %v827, %v1716
    %vm1718 = vcmask 458112
    %v1719 = vsel %vm1718, %v1717, %v1712
    %v1720 = vadd.s32 %v1673, 4294967240
    %v1721 = vlaneseq
    %v1722 = vshrl.u32 %v1721, 7
    %v1723 = vsub.s32 %v1720, %v1722
    %v1724 = vrot.slane %v830, %v1723
    %vm1725 = vcmask 523712
    %v1726 = vsel %vm1725, %v1724, %v1719
    %v1727 = vadd.s32 %v1673, 4294967232
    %v1728 = vlaneseq
    %v1729 = vshrl.u32 %v1728, 7
    %v1730 = vsub.s32 %v1727, %v1729
    %v1731 = vrot.slane %v833, %v1730
    %vm1732 = vcmask 589312
    %v1733 = vsel %vm1732, %v1731, %v1726
    %v1734 = vadd.s32 %v1673, 4294967224
    %v1735 = vlaneseq
    %v1736 = vshrl.u32 %v1735, 7
    %v1737 = vsub.s32 %v1734, %v1736
    %v1738 = vrot.slane %v836, %v1737
    %vm1739 = vcmask 654912
    %v1740 = vsel %vm1739, %v1738, %v1733
    %v1741 = vadd.s32 %v1673, 4294967216
    %v1742 = vlaneseq
    %v1743 = vshrl.u32 %v1742, 7
    %v1744 = vsub.s32 %v1741, %v1743
    %v1745 = vrot.slane %v839, %v1744
    %vm1746 = vcmask 720512
    %v1747 = vsel %vm1746, %v1745, %v1740
    %v1748 = vadd.s32 %v1673, 4294967208
    %v1749 = vlaneseq
    %v1750 = vshrl.u32 %v1749, 7
    %v1751 = vsub.s32 %v1748, %v1750
    %v1752 = vrot.slane %v842, %v1751
    %vm1753 = vcmask 786112
    %v1754 = vsel %vm1753, %v1752, %v1747
    %v1755 = vadd.s32 %v1673, 4294967200
    %v1756 = vlaneseq
    %v1757 = vshrl.u32 %v1756, 7
    %v1758 = vsub.s32 %v1755, %v1757
    %v1759 = vrot.slane %v845, %v1758
    %vm1760 = vcmask 851712
    %v1761 = vsel %vm1760, %v1759, %v1754
    %v1762 = vadd.s32 %v1673, 4294967192
    %v1763 = vlaneseq
    %v1764 = vshrl.u32 %v1763, 7
    %v1765 = vsub.s32 %v1762, %v1764
    %v1766 = vrot.slane %v848, %v1765
    %vm1767 = vcmask 917312
    %v1768 = vsel %vm1767, %v1766, %v1761
    %v1769 = vadd.s32 %v1673, 4294967184
    %v1770 = vlaneseq
    %v1771 = vshrl.u32 %v1770, 7
    %v1772 = vsub.s32 %v1769, %v1771
    %v1773 = vrot.slane %v851, %v1772
    %vm1774 = vcmask 982912
    %v1775 = vsel %vm1774, %v1773, %v1768
    %v1776 = vadd.s32 %v1673, 4294967176
    %v1777 = vlaneseq
    %v1778 = vshrl.u32 %v1777, 7
    %v1779 = vsub.s32 %v1776, %v1778
    %v1780 = vrot.slane %v854, %v1779
    %vm1781 = vcmask 1048512
    %v1782 = vsel %vm1781, %v1780, %v1775
    %v1783 = vlaneseq
    %v1784 = vshrl.u32 %v1783, 7
    %v1785 = vsub.s32 %v1673, %v1784
    %v1786 = vrot.slane %v857, %v1785
    %v1787 = vlaneseq
    %v1788 = vshrl.u32 %v1787, 7
    %v1789 = vsub.s32 %v1678, %v1788
    %v1790 = vrot.slane %v860, %v1789
    %v1791 = vsel %vm1683, %v1790, %v1786
    %v1792 = vlaneseq
    %v1793 = vshrl.u32 %v1792, 7
    %v1794 = vsub.s32 %v1685, %v1793
    %v1795 = vrot.slane %v863, %v1794
    %v1796 = vsel %vm1690, %v1795, %v1791
    %v1797 = vlaneseq
    %v1798 = vshrl.u32 %v1797, 7
    %v1799 = vsub.s32 %v1692, %v1798
    %v1800 = vrot.slane %v866, %v1799
    %v1801 = vsel %vm1697, %v1800, %v1796
    %v1802 = vlaneseq
    %v1803 = vshrl.u32 %v1802, 7
    %v1804 = vsub.s32 %v1699, %v1803
    %v1805 = vrot.slane %v869, %v1804
    %v1806 = vsel %vm1704, %v1805, %v1801
    %v1807 = vlaneseq
    %v1808 = vshrl.u32 %v1807, 7
    %v1809 = vsub.s32 %v1706, %v1808
    %v1810 = vrot.slane %v872, %v1809
    %v1811 = vsel %vm1711, %v1810, %v1806
    %v1812 = vlaneseq
    %v1813 = vshrl.u32 %v1812, 7
    %v1814 = vsub.s32 %v1713, %v1813
    %v1815 = vrot.slane %v875, %v1814
    %v1816 = vsel %vm1718, %v1815, %v1811
    %v1817 = vlaneseq
    %v1818 = vshrl.u32 %v1817, 7
    %v1819 = vsub.s32 %v1720, %v1818
    %v1820 = vrot.slane %v878, %v1819
    %v1821 = vsel %vm1725, %v1820, %v1816
    %v1822 = vlaneseq
    %v1823 = vshrl.u32 %v1822, 7
    %v1824 = vsub.s32 %v1727, %v1823
    %v1825 = vrot.slane %v881, %v1824
    %v1826 = vsel %vm1732, %v1825, %v1821
    %v1827 = vlaneseq
    %v1828 = vshrl.u32 %v1827, 7
    %v1829 = vsub.s32 %v1734, %v1828
    %v1830 = vrot.slane %v884, %v1829
    %v1831 = vsel %vm1739, %v1830, %v1826
    %v1832 = vlaneseq
    %v1833 = vshrl.u32 %v1832, 7
    %v1834 = vsub.s32 %v1741, %v1833
    %v1835 = vrot.slane %v888, %v1834
    %v1836 = vsel %vm1746, %v1835, %v1831
    %v1837 = vlaneseq
    %v1838 = vshrl.u32 %v1837, 7
    %v1839 = vsub.s32 %v1673, %v1838
    %v1840 = vrot.slane %v891, %v1839
    %v1841 = vlaneseq
    %v1842 = vshrl.u32 %v1841, 7
    %v1843 = vsub.s32 %v1678, %v1842
    %v1844 = vrot.slane %v894, %v1843
    %v1845 = vsel %vm1683, %v1844, %v1840
    %v1846 = vlaneseq
    %v1847 = vshrl.u32 %v1846, 7
    %v1848 = vsub.s32 %v1685, %v1847
    %v1849 = vrot.slane %v897, %v1848
    %v1850 = vsel %vm1690, %v1849, %v1845
    %v1851 = vlaneseq
    %v1852 = vshrl.u32 %v1851, 7
    %v1853 = vsub.s32 %v1692, %v1852
    %v1854 = vrot.slane %v900, %v1853
    %v1855 = vsel %vm1697, %v1854, %v1850
    %v1856 = vlaneseq
    %v1857 = vshrl.u32 %v1856, 7
    %v1858 = vsub.s32 %v1699, %v1857
    %v1859 = vrot.slane %v903, %v1858
    %v1860 = vsel %vm1704, %v1859, %v1855
    %v1861 = vlaneseq
    %v1862 = vshrl.u32 %v1861, 7
    %v1863 = vsub.s32 %v1706, %v1862
    %v1864 = vrot.slane %v906, %v1863
    %v1865 = vsel %vm1711, %v1864, %v1860
    %v1866 = vlaneseq
    %v1867 = vshrl.u32 %v1866, 7
    %v1868 = vsub.s32 %v1713, %v1867
    %v1869 = vrot.slane %v909, %v1868
    %v1870 = vsel %vm1718, %v1869, %v1865
    %v1871 = vlaneseq
    %v1872 = vshrl.u32 %v1871, 7
    %v1873 = vsub.s32 %v1720, %v1872
    %v1874 = vrot.slane %v912, %v1873
    %v1875 = vsel %vm1725, %v1874, %v1870
    %v1876 = vlaneseq
    %v1877 = vshrl.u32 %v1876, 7
    %v1878 = vsub.s32 %v1727, %v1877
    %v1879 = vrot.slane %v915, %v1878
    %v1880 = vsel %vm1732, %v1879, %v1875
    %v1881 = vlaneseq
    %v1882 = vshrl.u32 %v1881, 7
    %v1883 = vsub.s32 %v1734, %v1882
    %v1884 = vrot.slane %v918, %v1883
    %v1885 = vsel %vm1739, %v1884, %v1880
    %v1886 = vlaneseq
    %v1887 = vshrl.u32 %v1886, 7
    %v1888 = vsub.s32 %v1741, %v1887
    %v1889 = vrot.slane %v921, %v1888
    %v1890 = vsel %vm1746, %v1889, %v1885
    %v1891 = vlaneseq
    %v1892 = vshrl.u32 %v1891, 7
    %v1893 = vsub.s32 %v1748, %v1892
    %v1894 = vrot.slane %v924, %v1893
    %v1895 = vsel %vm1753, %v1894, %v1890
    %v1896 = vlaneseq
    %v1897 = vshrl.u32 %v1896, 7
    %v1898 = vsub.s32 %v1755, %v1897
    %v1899 = vrot.slane %v927, %v1898
    %v1900 = vsel %vm1760, %v1899, %v1895
    %v1901 = vlaneseq
    %v1902 = vshrl.u32 %v1901, 7
    %v1903 = vsub.s32 %v1762, %v1902
    %v1904 = vrot.slane %v930, %v1903
    %v1905 = vsel %vm1767, %v1904, %v1900
    %v1906 = vlaneseq
    %v1907 = vshrl.u32 %v1906, 7
    %v1908 = vsub.s32 %v1769, %v1907
    %v1909 = vrot.slane %v933, %v1908
    %v1910 = vsel %vm1774, %v1909, %v1905
    %v1911 = vlaneseq
    %v1912 = vshrl.u32 %v1911, 7
    %v1913 = vsub.s32 %v1776, %v1912
    %v1914 = vrot.slane %v936, %v1913
    %v1915 = vsel %vm1781, %v1914, %v1910
    %v1916 = vlaneseq
    %v1917 = vshrl.u32 %v1916, 7
    %v1918 = vsub.s32 %v1673, %v1917
    %v1919 = vrot.slane %v939, %v1918
    %v1920 = vlaneseq
    %v1921 = vshrl.u32 %v1920, 7
    %v1922 = vsub.s32 %v1678, %v1921
    %v1923 = vrot.slane %v942, %v1922
    %v1924 = vsel %vm1683, %v1923, %v1919
    %v1925 = vlaneseq
    %v1926 = vshrl.u32 %v1925, 7
    %v1927 = vsub.s32 %v1685, %v1926
    %v1928 = vrot.slane %v945, %v1927
    %v1929 = vsel %vm1690, %v1928, %v1924
    %v1930 = vlaneseq
    %v1931 = vshrl.u32 %v1930, 7
    %v1932 = vsub.s32 %v1692, %v1931
    %v1933 = vrot.slane %v948, %v1932
    %v1934 = vsel %vm1697, %v1933, %v1929
    %v1935 = vlaneseq
    %v1936 = vshrl.u32 %v1935, 7
    %v1937 = vsub.s32 %v1699, %v1936
    %v1938 = vrot.slane %v951, %v1937
    %v1939 = vsel %vm1704, %v1938, %v1934
    %v1940 = vlaneseq
    %v1941 = vshrl.u32 %v1940, 7
    %v1942 = vsub.s32 %v1706, %v1941
    %v1943 = vrot.slane %v954, %v1942
    %v1944 = vsel %vm1711, %v1943, %v1939
    %v1945 = vlaneseq
    %v1946 = vshrl.u32 %v1945, 7
    %v1947 = vsub.s32 %v1713, %v1946
    %v1948 = vrot.slane %v957, %v1947
    %v1949 = vsel %vm1718, %v1948, %v1944
    %v1950 = vlaneseq
    %v1951 = vshrl.u32 %v1950, 7
    %v1952 = vsub.s32 %v1720, %v1951
    %v1953 = vrot.slane %v960, %v1952
    %v1954 = vsel %vm1725, %v1953, %v1949
    %v1955 = vlaneseq
    %v1956 = vshrl.u32 %v1955, 7
    %v1957 = vsub.s32 %v1727, %v1956
    %v1958 = vrot.slane %v963, %v1957
    %v1959 = vsel %vm1732, %v1958, %v1954
    %v1960 = vlaneseq
    %v1961 = vshrl.u32 %v1960, 7
    %v1962 = vsub.s32 %v1734, %v1961
    %v1963 = vrot.slane %v966, %v1962
    %v1964 = vsel %vm1739, %v1963, %v1959
    %v1965 = vlaneseq
    %v1966 = vshrl.u32 %v1965, 7
    %v1967 = vsub.s32 %v1741, %v1966
    %v1968 = vrot.slane %v969, %v1967
    %v1969 = vsel %vm1746, %v1968, %v1964
    %v1970 = vlaneseq
    %v1971 = vshrl.u32 %v1970, 7
    %v1972 = vsub.s32 %v1673, %v1971
    %v1973 = vrot.slane %v972, %v1972
    %v1974 = vlaneseq
    %v1975 = vshrl.u32 %v1974, 7
    %v1976 = vsub.s32 %v1678, %v1975
    %v1977 = vrot.slane %v975, %v1976
    %v1978 = vsel %vm1683, %v1977, %v1973
    %v1979 = vlaneseq
    %v1980 = vshrl.u32 %v1979, 7
    %v1981 = vsub.s32 %v1685, %v1980
    %v1982 = vrot.slane %v978, %v1981
    %v1983 = vsel %vm1690, %v1982, %v1978
    %v1984 = vlaneseq
    %v1985 = vshrl.u32 %v1984, 7
    %v1986 = vsub.s32 %v1692, %v1985
    %v1987 = vrot.slane %v981, %v1986
    %v1988 = vsel %vm1697, %v1987, %v1983
    %v1989 = vlaneseq
    %v1990 = vshrl.u32 %v1989, 7
    %v1991 = vsub.s32 %v1699, %v1990
    %v1992 = vrot.slane %v984, %v1991
    %v1993 = vsel %vm1704, %v1992, %v1988
    %v1994 = vlaneseq
    %v1995 = vshrl.u32 %v1994, 7
    %v1996 = vsub.s32 %v1706, %v1995
    %v1997 = vrot.slane %v987, %v1996
    %v1998 = vsel %vm1711, %v1997, %v1993
    %v1999 = vlaneseq
    %v2000 = vshrl.u32 %v1999, 7
    %v2001 = vsub.s32 %v1713, %v2000
    %v2002 = vrot.slane %v990, %v2001
    %v2003 = vsel %vm1718, %v2002, %v1998
    %v2004 = vlaneseq
    %v2005 = vshrl.u32 %v2004, 7
    %v2006 = vsub.s32 %v1720, %v2005
    %v2007 = vrot.slane %v993, %v2006
    %v2008 = vsel %vm1725, %v2007, %v2003
    %v2009 = vlaneseq
    %v2010 = vshrl.u32 %v2009, 7
    %v2011 = vsub.s32 %v1727, %v2010
    %v2012 = vrot.slane %v996, %v2011
    %v2013 = vsel %vm1732, %v2012, %v2008
    %v2014 = vlaneseq
    %v2015 = vshrl.u32 %v2014, 7
    %v2016 = vsub.s32 %v1734, %v2015
    %v2017 = vrot.slane %v999, %v2016
    %v2018 = vsel %vm1739, %v2017, %v2013
    %v2019 = vlaneseq
    %v2020 = vshrl.u32 %v2019, 7
    %v2021 = vsub.s32 %v1741, %v2020
    %v2022 = vrot.slane %v1002, %v2021
    %v2023 = vsel %vm1746, %v2022, %v2018
    %v2024 = vlaneseq
    %v2025 = vshrl.u32 %v2024, 7
    %v2026 = vsub.s32 %v1748, %v2025
    %v2027 = vrot.slane %v1005, %v2026
    %v2028 = vsel %vm1753, %v2027, %v2023
    %v2029 = vlaneseq
    %v2030 = vshrl.u32 %v2029, 7
    %v2031 = vsub.s32 %v1755, %v2030
    %v2032 = vrot.slane %v1008, %v2031
    %v2033 = vsel %vm1760, %v2032, %v2028
    %v2034 = vlaneseq
    %v2035 = vshrl.u32 %v2034, 7
    %v2036 = vsub.s32 %v1762, %v2035
    %v2037 = vrot.slane %v1011, %v2036
    %v2038 = vsel %vm1767, %v2037, %v2033
    %v2039 = vlaneseq
    %v2040 = vshrl.u32 %v2039, 7
    %v2041 = vsub.s32 %v1769, %v2040
    %v2042 = vrot.slane %v1014, %v2041
    %v2043 = vsel %vm1774, %v2042, %v2038
    %v2044 = vlaneseq
    %v2045 = vshrl.u32 %v2044, 7
    %v2046 = vsub.s32 %v1776, %v2045
    %v2047 = vrot.slane %v1017, %v2046
    %v2048 = vsel %vm1781, %v2047, %v2043
    %v2049 = vlaneseq
    %v2050 = vshrl.u32 %v2049, 7
    %v2051 = vsub.s32 %v1673, %v2050
    %v2052 = vrot.slane %v1020, %v2051
    %v2053 = vlaneseq
    %v2054 = vshrl.u32 %v2053, 7
    %v2055 = vsub.s32 %v1678, %v2054
    %v2056 = vrot.slane %v1023, %v2055
    %v2057 = vsel %vm1683, %v2056, %v2052
    %v2058 = vlaneseq
    %v2059 = vshrl.u32 %v2058, 7
    %v2060 = vsub.s32 %v1685, %v2059
    %v2061 = vrot.slane %v1026, %v2060
    %v2062 = vsel %vm1690, %v2061, %v2057
    %v2063 = vlaneseq
    %v2064 = vshrl.u32 %v2063, 7
    %v2065 = vsub.s32 %v1692, %v2064
    %v2066 = vrot.slane %v1029, %v2065
    %v2067 = vsel %vm1697, %v2066, %v2062
    %v2068 = vlaneseq
    %v2069 = vshrl.u32 %v2068, 7
    %v2070 = vsub.s32 %v1699, %v2069
    %v2071 = vrot.slane %v1032, %v2070
    %v2072 = vsel %vm1704, %v2071, %v2067
    %v2073 = vlaneseq
    %v2074 = vshrl.u32 %v2073, 7
    %v2075 = vsub.s32 %v1706, %v2074
    %v2076 = vrot.slane %v1035, %v2075
    %v2077 = vsel %vm1711, %v2076, %v2072
    %v2078 = vlaneseq
    %v2079 = vshrl.u32 %v2078, 7
    %v2080 = vsub.s32 %v1713, %v2079
    %v2081 = vrot.slane %v1038, %v2080
    %v2082 = vsel %vm1718, %v2081, %v2077
    %v2083 = vlaneseq
    %v2084 = vshrl.u32 %v2083, 7
    %v2085 = vsub.s32 %v1720, %v2084
    %v2086 = vrot.slane %v1041, %v2085
    %v2087 = vsel %vm1725, %v2086, %v2082
    %v2088 = vlaneseq
    %v2089 = vshrl.u32 %v2088, 7
    %v2090 = vsub.s32 %v1727, %v2089
    %v2091 = vrot.slane %v1044, %v2090
    %v2092 = vsel %vm1732, %v2091, %v2087
    %v2093 = vlaneseq
    %v2094 = vshrl.u32 %v2093, 7
    %v2095 = vsub.s32 %v1734, %v2094
    %v2096 = vrot.slane %v1047, %v2095
    %v2097 = vsel %vm1739, %v2096, %v2092
    %v2098 = vlaneseq
    %v2099 = vshrl.u32 %v2098, 7
    %v2100 = vsub.s32 %v1741, %v2099
    %v2101 = vrot.slane %v1050, %v2100
    %v2102 = vsel %vm1746, %v2101, %v2097
    %v2103 = vlaneseq
    %v2104 = vshrl.u32 %v2103, 7
    %v2105 = vsub.s32 %v1673, %v2104
    %v2106 = vrot.slane %v1053, %v2105
    %v2107 = vlaneseq
    %v2108 = vshrl.u32 %v2107, 7
    %v2109 = vsub.s32 %v1678, %v2108
    %v2110 = vrot.slane %v1056, %v2109
    %v2111 = vsel %vm1683, %v2110, %v2106
    %v2112 = vlaneseq
    %v2113 = vshrl.u32 %v2112, 7
    %v2114 = vsub.s32 %v1685, %v2113
    %v2115 = vrot.slane %v1059, %v2114
    %v2116 = vsel %vm1690, %v2115, %v2111
    %v2117 = vlaneseq
    %v2118 = vshrl.u32 %v2117, 7
    %v2119 = vsub.s32 %v1692, %v2118
    %v2120 = vrot.slane %v1062, %v2119
    %v2121 = vsel %vm1697, %v2120, %v2116
    %v2122 = vlaneseq
    %v2123 = vshrl.u32 %v2122, 7
    %v2124 = vsub.s32 %v1699, %v2123
    %v2125 = vrot.slane %v1065, %v2124
    %v2126 = vsel %vm1704, %v2125, %v2121
    %v2127 = vlaneseq
    %v2128 = vshrl.u32 %v2127, 7
    %v2129 = vsub.s32 %v1706, %v2128
    %v2130 = vrot.slane %v1068, %v2129
    %v2131 = vsel %vm1711, %v2130, %v2126
    %v2132 = vlaneseq
    %v2133 = vshrl.u32 %v2132, 7
    %v2134 = vsub.s32 %v1713, %v2133
    %v2135 = vrot.slane %v1071, %v2134
    %v2136 = vsel %vm1718, %v2135, %v2131
    %v2137 = vlaneseq
    %v2138 = vshrl.u32 %v2137, 7
    %v2139 = vsub.s32 %v1720, %v2138
    %v2140 = vrot.slane %v1074, %v2139
    %v2141 = vsel %vm1725, %v2140, %v2136
    %v2142 = vlaneseq
    %v2143 = vshrl.u32 %v2142, 7
    %v2144 = vsub.s32 %v1727, %v2143
    %v2145 = vrot.slane %v1077, %v2144
    %v2146 = vsel %vm1732, %v2145, %v2141
    %v2147 = vlaneseq
    %v2148 = vshrl.u32 %v2147, 7
    %v2149 = vsub.s32 %v1734, %v2148
    %v2150 = vrot.slane %v1080, %v2149
    %v2151 = vsel %vm1739, %v2150, %v2146
    %v2152 = vlaneseq
    %v2153 = vshrl.u32 %v2152, 7
    %v2154 = vsub.s32 %v1741, %v2153
    %v2155 = vrot.slane %v1083, %v2154
    %v2156 = vsel %vm1746, %v2155, %v2151
    %v2157 = vlaneseq
    %v2158 = vshrl.u32 %v2157, 7
    %v2159 = vsub.s32 %v1748, %v2158
    %v2160 = vrot.slane %v1086, %v2159
    %v2161 = vsel %vm1753, %v2160, %v2156
    %v2162 = vlaneseq
    %v2163 = vshrl.u32 %v2162, 7
    %v2164 = vsub.s32 %v1755, %v2163
    %v2165 = vrot.slane %v1089, %v2164
    %v2166 = vsel %vm1760, %v2165, %v2161
    %v2167 = vlaneseq
    %v2168 = vshrl.u32 %v2167, 7
    %v2169 = vsub.s32 %v1762, %v2168
    %v2170 = vrot.slane %v1092, %v2169
    %v2171 = vsel %vm1767, %v2170, %v2166
    %v2172 = vlaneseq
    %v2173 = vshrl.u32 %v2172, 7
    %v2174 = vsub.s32 %v1769, %v2173
    %v2175 = vrot.slane %v1095, %v2174
    %v2176 = vsel %vm1774, %v2175, %v2171
    %v2177 = vlaneseq
    %v2178 = vshrl.u32 %v2177, 7
    %v2179 = vsub.s32 %v1776, %v2178
    %v2180 = vrot.slane %v1098, %v2179
    %v2181 = vsel %vm1781, %v2180, %v2176
    %v2182 = vlaneseq
    %v2183 = vshrl.u32 %v2182, 7
    %v2184 = vsub.s32 %v1673, %v2183
    %v2185 = vrot.slane %v1101, %v2184
    %v2186 = vlaneseq
    %v2187 = vshrl.u32 %v2186, 7
    %v2188 = vsub.s32 %v1678, %v2187
    %v2189 = vrot.slane %v1104, %v2188
    %v2190 = vsel %vm1683, %v2189, %v2185
    %v2191 = vlaneseq
    %v2192 = vshrl.u32 %v2191, 7
    %v2193 = vsub.s32 %v1685, %v2192
    %v2194 = vrot.slane %v1107, %v2193
    %v2195 = vsel %vm1690, %v2194, %v2190
    %v2196 = vlaneseq
    %v2197 = vshrl.u32 %v2196, 7
    %v2198 = vsub.s32 %v1692, %v2197
    %v2199 = vrot.slane %v1110, %v2198
    %v2200 = vsel %vm1697, %v2199, %v2195
    %v2201 = vlaneseq
    %v2202 = vshrl.u32 %v2201, 7
    %v2203 = vsub.s32 %v1699, %v2202
    %v2204 = vrot.slane %v1113, %v2203
    %v2205 = vsel %vm1704, %v2204, %v2200
    %v2206 = vlaneseq
    %v2207 = vshrl.u32 %v2206, 7
    %v2208 = vsub.s32 %v1706, %v2207
    %v2209 = vrot.slane %v1116, %v2208
    %v2210 = vsel %vm1711, %v2209, %v2205
    %v2211 = vlaneseq
    %v2212 = vshrl.u32 %v2211, 7
    %v2213 = vsub.s32 %v1713, %v2212
    %v2214 = vrot.slane %v1119, %v2213
    %v2215 = vsel %vm1718, %v2214, %v2210
    %v2216 = vlaneseq
    %v2217 = vshrl.u32 %v2216, 7
    %v2218 = vsub.s32 %v1720, %v2217
    %v2219 = vrot.slane %v1122, %v2218
    %v2220 = vsel %vm1725, %v2219, %v2215
    %v2221 = vlaneseq
    %v2222 = vshrl.u32 %v2221, 7
    %v2223 = vsub.s32 %v1727, %v2222
    %v2224 = vrot.slane %v1125, %v2223
    %v2225 = vsel %vm1732, %v2224, %v2220
    %v2226 = vlaneseq
    %v2227 = vshrl.u32 %v2226, 7
    %v2228 = vsub.s32 %v1734, %v2227
    %v2229 = vrot.slane %v1128, %v2228
    %v2230 = vsel %vm1739, %v2229, %v2225
    %v2231 = vlaneseq
    %v2232 = vshrl.u32 %v2231, 7
    %v2233 = vsub.s32 %v1741, %v2232
    %v2234 = vrot.slane %v1131, %v2233
    %v2235 = vsel %vm1746, %v2234, %v2230
    %v2236 = vlaneseq
    %v2237 = vshrl.u32 %v2236, 7
    %v2238 = vsub.s32 %v1673, %v2237
    %v2239 = vrot.slane %v1134, %v2238
    %v2240 = vlaneseq
    %v2241 = vshrl.u32 %v2240, 7
    %v2242 = vsub.s32 %v1678, %v2241
    %v2243 = vrot.slane %v1137, %v2242
    %v2244 = vsel %vm1683, %v2243, %v2239
    %v2245 = vlaneseq
    %v2246 = vshrl.u32 %v2245, 7
    %v2247 = vsub.s32 %v1685, %v2246
    %v2248 = vrot.slane %v1140, %v2247
    %v2249 = vsel %vm1690, %v2248, %v2244
    %v2250 = vlaneseq
    %v2251 = vshrl.u32 %v2250, 7
    %v2252 = vsub.s32 %v1692, %v2251
    %v2253 = vrot.slane %v1143, %v2252
    %v2254 = vsel %vm1697, %v2253, %v2249
    %v2255 = vlaneseq
    %v2256 = vshrl.u32 %v2255, 7
    %v2257 = vsub.s32 %v1699, %v2256
    %v2258 = vrot.slane %v1146, %v2257
    %v2259 = vsel %vm1704, %v2258, %v2254
    %v2260 = vlaneseq
    %v2261 = vshrl.u32 %v2260, 7
    %v2262 = vsub.s32 %v1706, %v2261
    %v2263 = vrot.slane %v1149, %v2262
    %v2264 = vsel %vm1711, %v2263, %v2259
    %v2265 = vlaneseq
    %v2266 = vshrl.u32 %v2265, 7
    %v2267 = vsub.s32 %v1713, %v2266
    %v2268 = vrot.slane %v1152, %v2267
    %v2269 = vsel %vm1718, %v2268, %v2264
    %v2270 = vlaneseq
    %v2271 = vshrl.u32 %v2270, 7
    %v2272 = vsub.s32 %v1720, %v2271
    %v2273 = vrot.slane %v1155, %v2272
    %v2274 = vsel %vm1725, %v2273, %v2269
    %v2275 = vlaneseq
    %v2276 = vshrl.u32 %v2275, 7
    %v2277 = vsub.s32 %v1727, %v2276
    %v2278 = vrot.slane %v1158, %v2277
    %v2279 = vsel %vm1732, %v2278, %v2274
    %v2280 = vlaneseq
    %v2281 = vshrl.u32 %v2280, 7
    %v2282 = vsub.s32 %v1734, %v2281
    %v2283 = vrot.slane %v1161, %v2282
    %v2284 = vsel %vm1739, %v2283, %v2279
    %v2285 = vlaneseq
    %v2286 = vshrl.u32 %v2285, 7
    %v2287 = vsub.s32 %v1741, %v2286
    %v2288 = vrot.slane %v1164, %v2287
    %v2289 = vsel %vm1746, %v2288, %v2284
    %v2290 = vlaneseq
    %v2291 = vshrl.u32 %v2290, 7
    %v2292 = vsub.s32 %v1748, %v2291
    %v2293 = vrot.slane %v1167, %v2292
    %v2294 = vsel %vm1753, %v2293, %v2289
    %v2295 = vlaneseq
    %v2296 = vshrl.u32 %v2295, 7
    %v2297 = vsub.s32 %v1755, %v2296
    %v2298 = vrot.slane %v1170, %v2297
    %v2299 = vsel %vm1760, %v2298, %v2294
    %v2300 = vlaneseq
    %v2301 = vshrl.u32 %v2300, 7
    %v2302 = vsub.s32 %v1762, %v2301
    %v2303 = vrot.slane %v1173, %v2302
    %v2304 = vsel %vm1767, %v2303, %v2299
    %v2305 = vlaneseq
    %v2306 = vshrl.u32 %v2305, 7
    %v2307 = vsub.s32 %v1769, %v2306
    %v2308 = vrot.slane %v1176, %v2307
    %v2309 = vsel %vm1774, %v2308, %v2304
    %v2310 = vlaneseq
    %v2311 = vshrl.u32 %v2310, 7
    %v2312 = vsub.s32 %v1776, %v2311
    %v2313 = vrot.slane %v1179, %v2312
    %v2314 = vsel %vm1781, %v2313, %v2309
    %v2315 = vlaneseq
    %v2316 = vshrl.u32 %v2315, 7
    %v2317 = vsub.s32 %v1673, %v2316
    %v2318 = vrot.slane %v1182, %v2317
    %v2319 = vlaneseq
    %v2320 = vshrl.u32 %v2319, 7
    %v2321 = vsub.s32 %v1678, %v2320
    %v2322 = vrot.slane %v1185, %v2321
    %v2323 = vsel %vm1683, %v2322, %v2318
    %v2324 = vlaneseq
    %v2325 = vshrl.u32 %v2324, 7
    %v2326 = vsub.s32 %v1685, %v2325
    %v2327 = vrot.slane %v1188, %v2326
    %v2328 = vsel %vm1690, %v2327, %v2323
    %v2329 = vlaneseq
    %v2330 = vshrl.u32 %v2329, 7
    %v2331 = vsub.s32 %v1692, %v2330
    %v2332 = vrot.slane %v1191, %v2331
    %v2333 = vsel %vm1697, %v2332, %v2328
    %v2334 = vlaneseq
    %v2335 = vshrl.u32 %v2334, 7
    %v2336 = vsub.s32 %v1699, %v2335
    %v2337 = vrot.slane %v1194, %v2336
    %v2338 = vsel %vm1704, %v2337, %v2333
    %v2339 = vlaneseq
    %v2340 = vshrl.u32 %v2339, 7
    %v2341 = vsub.s32 %v1706, %v2340
    %v2342 = vrot.slane %v1197, %v2341
    %v2343 = vsel %vm1711, %v2342, %v2338
    %v2344 = vlaneseq
    %v2345 = vshrl.u32 %v2344, 7
    %v2346 = vsub.s32 %v1713, %v2345
    %v2347 = vrot.slane %v1200, %v2346
    %v2348 = vsel %vm1718, %v2347, %v2343
    %v2349 = vlaneseq
    %v2350 = vshrl.u32 %v2349, 7
    %v2351 = vsub.s32 %v1720, %v2350
    %v2352 = vrot.slane %v1203, %v2351
    %v2353 = vsel %vm1725, %v2352, %v2348
    %v2354 = vlaneseq
    %v2355 = vshrl.u32 %v2354, 7
    %v2356 = vsub.s32 %v1727, %v2355
    %v2357 = vrot.slane %v1206, %v2356
    %v2358 = vsel %vm1732, %v2357, %v2353
    %v2359 = vlaneseq
    %v2360 = vshrl.u32 %v2359, 7
    %v2361 = vsub.s32 %v1734, %v2360
    %v2362 = vrot.slane %v1209, %v2361
    %v2363 = vsel %vm1739, %v2362, %v2358
    %v2364 = vlaneseq
    %v2365 = vshrl.u32 %v2364, 7
    %v2366 = vsub.s32 %v1741, %v2365
    %v2367 = vrot.slane %v1212, %v2366
    %v2368 = vsel %vm1746, %v2367, %v2363
    %v2369 = vlaneseq
    %v2370 = vshrl.u32 %v2369, 7
    %v2371 = vsub.s32 %v1673, %v2370
    %v2372 = vrot.slane %v1215, %v2371
    %v2373 = vlaneseq
    %v2374 = vshrl.u32 %v2373, 7
    %v2375 = vsub.s32 %v1678, %v2374
    %v2376 = vrot.slane %v1218, %v2375
    %v2377 = vsel %vm1683, %v2376, %v2372
    %v2378 = vlaneseq
    %v2379 = vshrl.u32 %v2378, 7
    %v2380 = vsub.s32 %v1685, %v2379
    %v2381 = vrot.slane %v1221, %v2380
    %v2382 = vsel %vm1690, %v2381, %v2377
    %v2383 = vlaneseq
    %v2384 = vshrl.u32 %v2383, 7
    %v2385 = vsub.s32 %v1692, %v2384
    %v2386 = vrot.slane %v1224, %v2385
    %v2387 = vsel %vm1697, %v2386, %v2382
    %v2388 = vlaneseq
    %v2389 = vshrl.u32 %v2388, 7
    %v2390 = vsub.s32 %v1699, %v2389
    %v2391 = vrot.slane %v1227, %v2390
    %v2392 = vsel %vm1704, %v2391, %v2387
    %v2393 = vlaneseq
    %v2394 = vshrl.u32 %v2393, 7
    %v2395 = vsub.s32 %v1706, %v2394
    %v2396 = vrot.slane %v1230, %v2395
    %v2397 = vsel %vm1711, %v2396, %v2392
    %v2398 = vlaneseq
    %v2399 = vshrl.u32 %v2398, 7
    %v2400 = vsub.s32 %v1713, %v2399
    %v2401 = vrot.slane %v1233, %v2400
    %v2402 = vsel %vm1718, %v2401, %v2397
    %v2403 = vlaneseq
    %v2404 = vshrl.u32 %v2403, 7
    %v2405 = vsub.s32 %v1720, %v2404
    %v2406 = vrot.slane %v1236, %v2405
    %v2407 = vsel %vm1725, %v2406, %v2402
    %v2408 = vlaneseq
    %v2409 = vshrl.u32 %v2408, 7
    %v2410 = vsub.s32 %v1727, %v2409
    %v2411 = vrot.slane %v1239, %v2410
    %v2412 = vsel %vm1732, %v2411, %v2407
    %v2413 = vlaneseq
    %v2414 = vshrl.u32 %v2413, 7
    %v2415 = vsub.s32 %v1734, %v2414
    %v2416 = vrot.slane %v1242, %v2415
    %v2417 = vsel %vm1739, %v2416, %v2412
    %v2418 = vlaneseq
    %v2419 = vshrl.u32 %v2418, 7
    %v2420 = vsub.s32 %v1741, %v2419
    %v2421 = vrot.slane %v1245, %v2420
    %v2422 = vsel %vm1746, %v2421, %v2417
    %v2423 = vlaneseq
    %v2424 = vshrl.u32 %v2423, 7
    %v2425 = vsub.s32 %v1748, %v2424
    %v2426 = vrot.slane %v1248, %v2425
    %v2427 = vsel %vm1753, %v2426, %v2422
    %v2428 = vlaneseq
    %v2429 = vshrl.u32 %v2428, 7
    %v2430 = vsub.s32 %v1755, %v2429
    %v2431 = vrot.slane %v1251, %v2430
    %v2432 = vsel %vm1760, %v2431, %v2427
    %v2433 = vlaneseq
    %v2434 = vshrl.u32 %v2433, 7
    %v2435 = vsub.s32 %v1762, %v2434
    %v2436 = vrot.slane %v1254, %v2435
    %v2437 = vsel %vm1767, %v2436, %v2432
    %v2438 = vlaneseq
    %v2439 = vshrl.u32 %v2438, 7
    %v2440 = vsub.s32 %v1769, %v2439
    %v2441 = vrot.slane %v1257, %v2440
    %v2442 = vsel %vm1774, %v2441, %v2437
    %v2443 = vlaneseq
    %v2444 = vshrl.u32 %v2443, 7
    %v2445 = vsub.s32 %v1776, %v2444
    %v2446 = vrot.slane %v1260, %v2445
    %v2447 = vsel %vm1781, %v2446, %v2442
    %v2448 = vlaneseq
    %v2449 = vshrl.u32 %v2448, 7
    %v2450 = vsub.s32 %v1673, %v2449
    %v2451 = vrot.slane %v1263, %v2450
    %v2452 = vlaneseq
    %v2453 = vshrl.u32 %v2452, 7
    %v2454 = vsub.s32 %v1678, %v2453
    %v2455 = vrot.slane %v1266, %v2454
    %v2456 = vsel %vm1683, %v2455, %v2451
    %v2457 = vlaneseq
    %v2458 = vshrl.u32 %v2457, 7
    %v2459 = vsub.s32 %v1685, %v2458
    %v2460 = vrot.slane %v1269, %v2459
    %v2461 = vsel %vm1690, %v2460, %v2456
    %v2462 = vlaneseq
    %v2463 = vshrl.u32 %v2462, 7
    %v2464 = vsub.s32 %v1692, %v2463
    %v2465 = vrot.slane %v1272, %v2464
    %v2466 = vsel %vm1697, %v2465, %v2461
    %v2467 = vlaneseq
    %v2468 = vshrl.u32 %v2467, 7
    %v2469 = vsub.s32 %v1699, %v2468
    %v2470 = vrot.slane %v1275, %v2469
    %v2471 = vsel %vm1704, %v2470, %v2466
    %v2472 = vlaneseq
    %v2473 = vshrl.u32 %v2472, 7
    %v2474 = vsub.s32 %v1706, %v2473
    %v2475 = vrot.slane %v1278, %v2474
    %v2476 = vsel %vm1711, %v2475, %v2471
    %v2477 = vlaneseq
    %v2478 = vshrl.u32 %v2477, 7
    %v2479 = vsub.s32 %v1713, %v2478
    %v2480 = vrot.slane %v1281, %v2479
    %v2481 = vsel %vm1718, %v2480, %v2476
    %v2482 = vlaneseq
    %v2483 = vshrl.u32 %v2482, 7
    %v2484 = vsub.s32 %v1720, %v2483
    %v2485 = vrot.slane %v1284, %v2484
    %v2486 = vsel %vm1725, %v2485, %v2481
    %v2487 = vlaneseq
    %v2488 = vshrl.u32 %v2487, 7
    %v2489 = vsub.s32 %v1727, %v2488
    %v2490 = vrot.slane %v1287, %v2489
    %v2491 = vsel %vm1732, %v2490, %v2486
    %v2492 = vlaneseq
    %v2493 = vshrl.u32 %v2492, 7
    %v2494 = vsub.s32 %v1734, %v2493
    %v2495 = vrot.slane %v1290, %v2494
    %v2496 = vsel %vm1739, %v2495, %v2491
    %v2497 = vlaneseq
    %v2498 = vshrl.u32 %v2497, 7
    %v2499 = vsub.s32 %v1741, %v2498
    %v2500 = vrot.slane %v1293, %v2499
    %v2501 = vsel %vm1746, %v2500, %v2496
    %v2502 = vlaneseq
    %v2503 = vshrl.u32 %v2502, 7
    %v2504 = vsub.s32 %v1673, %v2503
    %v2505 = vrot.slane %v1296, %v2504
    %v2506 = vlaneseq
    %v2507 = vshrl.u32 %v2506, 7
    %v2508 = vsub.s32 %v1678, %v2507
    %v2509 = vrot.slane %v1299, %v2508
    %v2510 = vsel %vm1683, %v2509, %v2505
    %v2511 = vlaneseq
    %v2512 = vshrl.u32 %v2511, 7
    %v2513 = vsub.s32 %v1685, %v2512
    %v2514 = vrot.slane %v1302, %v2513
    %v2515 = vsel %vm1690, %v2514, %v2510
    %v2516 = vlaneseq
    %v2517 = vshrl.u32 %v2516, 7
    %v2518 = vsub.s32 %v1692, %v2517
    %v2519 = vrot.slane %v1305, %v2518
    %v2520 = vsel %vm1697, %v2519, %v2515
    %v2521 = vlaneseq
    %v2522 = vshrl.u32 %v2521, 7
    %v2523 = vsub.s32 %v1699, %v2522
    %v2524 = vrot.slane %v1308, %v2523
    %v2525 = vsel %vm1704, %v2524, %v2520
    %v2526 = vlaneseq
    %v2527 = vshrl.u32 %v2526, 7
    %v2528 = vsub.s32 %v1706, %v2527
    %v2529 = vrot.slane %v1311, %v2528
    %v2530 = vsel %vm1711, %v2529, %v2525
    %v2531 = vlaneseq
    %v2532 = vshrl.u32 %v2531, 7
    %v2533 = vsub.s32 %v1713, %v2532
    %v2534 = vrot.slane %v1314, %v2533
    %v2535 = vsel %vm1718, %v2534, %v2530
    %v2536 = vlaneseq
    %v2537 = vshrl.u32 %v2536, 7
    %v2538 = vsub.s32 %v1720, %v2537
    %v2539 = vrot.slane %v1317, %v2538
    %v2540 = vsel %vm1725, %v2539, %v2535
    %v2541 = vlaneseq
    %v2542 = vshrl.u32 %v2541, 7
    %v2543 = vsub.s32 %v1727, %v2542
    %v2544 = vrot.slane %v1320, %v2543
    %v2545 = vsel %vm1732, %v2544, %v2540
    %v2546 = vlaneseq
    %v2547 = vshrl.u32 %v2546, 7
    %v2548 = vsub.s32 %v1734, %v2547
    %v2549 = vrot.slane %v1323, %v2548
    %v2550 = vsel %vm1739, %v2549, %v2545
    %v2551 = vlaneseq
    %v2552 = vshrl.u32 %v2551, 7
    %v2553 = vsub.s32 %v1741, %v2552
    %v2554 = vrot.slane %v1326, %v2553
    %v2555 = vsel %vm1746, %v2554, %v2550
    %v2556 = vlaneseq
    %v2557 = vshrl.u32 %v2556, 7
    %v2558 = vsub.s32 %v1748, %v2557
    %v2559 = vrot.slane %v1329, %v2558
    %v2560 = vsel %vm1753, %v2559, %v2555
    %v2561 = vlaneseq
    %v2562 = vshrl.u32 %v2561, 7
    %v2563 = vsub.s32 %v1755, %v2562
    %v2564 = vrot.slane %v1332, %v2563
    %v2565 = vsel %vm1760, %v2564, %v2560
    %v2566 = vlaneseq
    %v2567 = vshrl.u32 %v2566, 7
    %v2568 = vsub.s32 %v1762, %v2567
    %v2569 = vrot.slane %v1335, %v2568
    %v2570 = vsel %vm1767, %v2569, %v2565
    %v2571 = vlaneseq
    %v2572 = vshrl.u32 %v2571, 7
    %v2573 = vsub.s32 %v1769, %v2572
    %v2574 = vrot.slane %v1338, %v2573
    %v2575 = vsel %vm1774, %v2574, %v2570
    %v2576 = vlaneseq
    %v2577 = vshrl.u32 %v2576, 7
    %v2578 = vsub.s32 %v1776, %v2577
    %v2579 = vrot.slane %v1341, %v2578
    %v2580 = vsel %vm1781, %v2579, %v2575
    %v2581 = vlaneseq
    %v2582 = vshrl.u32 %v2581, 7
    %v2583 = vsub.s32 %v1673, %v2582
    %v2584 = vrot.slane %v1344, %v2583
    %v2585 = vlaneseq
    %v2586 = vshrl.u32 %v2585, 7
    %v2587 = vsub.s32 %v1678, %v2586
    %v2588 = vrot.slane %v1347, %v2587
    %v2589 = vsel %vm1683, %v2588, %v2584
    %v2590 = vlaneseq
    %v2591 = vshrl.u32 %v2590, 7
    %v2592 = vsub.s32 %v1685, %v2591
    %v2593 = vrot.slane %v1350, %v2592
    %v2594 = vsel %vm1690, %v2593, %v2589
    %v2595 = vlaneseq
    %v2596 = vshrl.u32 %v2595, 7
    %v2597 = vsub.s32 %v1692, %v2596
    %v2598 = vrot.slane %v1353, %v2597
    %v2599 = vsel %vm1697, %v2598, %v2594
    %v2600 = vlaneseq
    %v2601 = vshrl.u32 %v2600, 7
    %v2602 = vsub.s32 %v1699, %v2601
    %v2603 = vrot.slane %v1356, %v2602
    %v2604 = vsel %vm1704, %v2603, %v2599
    %v2605 = vlaneseq
    %v2606 = vshrl.u32 %v2605, 7
    %v2607 = vsub.s32 %v1706, %v2606
    %v2608 = vrot.slane %v1359, %v2607
    %v2609 = vsel %vm1711, %v2608, %v2604
    %v2610 = vlaneseq
    %v2611 = vshrl.u32 %v2610, 7
    %v2612 = vsub.s32 %v1713, %v2611
    %v2613 = vrot.slane %v1362, %v2612
    %v2614 = vsel %vm1718, %v2613, %v2609
    %v2615 = vlaneseq
    %v2616 = vshrl.u32 %v2615, 7
    %v2617 = vsub.s32 %v1720, %v2616
    %v2618 = vrot.slane %v1365, %v2617
    %v2619 = vsel %vm1725, %v2618, %v2614
    %v2620 = vlaneseq
    %v2621 = vshrl.u32 %v2620, 7
    %v2622 = vsub.s32 %v1727, %v2621
    %v2623 = vrot.slane %v1368, %v2622
    %v2624 = vsel %vm1732, %v2623, %v2619
    %v2625 = vlaneseq
    %v2626 = vshrl.u32 %v2625, 7
    %v2627 = vsub.s32 %v1734, %v2626
    %v2628 = vrot.slane %v1371, %v2627
    %v2629 = vsel %vm1739, %v2628, %v2624
    %v2630 = vlaneseq
    %v2631 = vshrl.u32 %v2630, 7
    %v2632 = vsub.s32 %v1741, %v2631
    %v2633 = vrot.slane %v1374, %v2632
    %v2634 = vsel %vm1746, %v2633, %v2629
    %v2635 = vlaneseq
    %v2636 = vshrl.u32 %v2635, 7
    %v2637 = vsub.s32 %v1673, %v2636
    %v2638 = vrot.slane %v1377, %v2637
    %v2639 = vlaneseq
    %v2640 = vshrl.u32 %v2639, 7
    %v2641 = vsub.s32 %v1678, %v2640
    %v2642 = vrot.slane %v1380, %v2641
    %v2643 = vsel %vm1683, %v2642, %v2638
    %v2644 = vlaneseq
    %v2645 = vshrl.u32 %v2644, 7
    %v2646 = vsub.s32 %v1685, %v2645
    %v2647 = vrot.slane %v1383, %v2646
    %v2648 = vsel %vm1690, %v2647, %v2643
    %v2649 = vlaneseq
    %v2650 = vshrl.u32 %v2649, 7
    %v2651 = vsub.s32 %v1692, %v2650
    %v2652 = vrot.slane %v1386, %v2651
    %v2653 = vsel %vm1697, %v2652, %v2648
    %v2654 = vlaneseq
    %v2655 = vshrl.u32 %v2654, 7
    %v2656 = vsub.s32 %v1699, %v2655
    %v2657 = vrot.slane %v1389, %v2656
    %v2658 = vsel %vm1704, %v2657, %v2653
    %v2659 = vlaneseq
    %v2660 = vshrl.u32 %v2659, 7
    %v2661 = vsub.s32 %v1706, %v2660
    %v2662 = vrot.slane %v1392, %v2661
    %v2663 = vsel %vm1711, %v2662, %v2658
    %v2664 = vlaneseq
    %v2665 = vshrl.u32 %v2664, 7
    %v2666 = vsub.s32 %v1713, %v2665
    %v2667 = vrot.slane %v1395, %v2666
    %v2668 = vsel %vm1718, %v2667, %v2663
    %v2669 = vlaneseq
    %v2670 = vshrl.u32 %v2669, 7
    %v2671 = vsub.s32 %v1720, %v2670
    %v2672 = vrot.slane %v1398, %v2671
    %v2673 = vsel %vm1725, %v2672, %v2668
    %v2674 = vlaneseq
    %v2675 = vshrl.u32 %v2674, 7
    %v2676 = vsub.s32 %v1727, %v2675
    %v2677 = vrot.slane %v1401, %v2676
    %v2678 = vsel %vm1732, %v2677, %v2673
    %v2679 = vlaneseq
    %v2680 = vshrl.u32 %v2679, 7
    %v2681 = vsub.s32 %v1734, %v2680
    %v2682 = vrot.slane %v1404, %v2681
    %v2683 = vsel %vm1739, %v2682, %v2678
    %v2684 = vlaneseq
    %v2685 = vshrl.u32 %v2684, 7
    %v2686 = vsub.s32 %v1741, %v2685
    %v2687 = vrot.slane %v1407, %v2686
    %v2688 = vsel %vm1746, %v2687, %v2683
    %v2689 = vlaneseq
    %v2690 = vshrl.u32 %v2689, 7
    %v2691 = vsub.s32 %v1748, %v2690
    %v2692 = vrot.slane %v1410, %v2691
    %v2693 = vsel %vm1753, %v2692, %v2688
    %v2694 = vlaneseq
    %v2695 = vshrl.u32 %v2694, 7
    %v2696 = vsub.s32 %v1755, %v2695
    %v2697 = vrot.slane %v1413, %v2696
    %v2698 = vsel %vm1760, %v2697, %v2693
    %v2699 = vlaneseq
    %v2700 = vshrl.u32 %v2699, 7
    %v2701 = vsub.s32 %v1762, %v2700
    %v2702 = vrot.slane %v1416, %v2701
    %v2703 = vsel %vm1767, %v2702, %v2698
    %v2704 = vlaneseq
    %v2705 = vshrl.u32 %v2704, 7
    %v2706 = vsub.s32 %v1769, %v2705
    %v2707 = vrot.slane %v1419, %v2706
    %v2708 = vsel %vm1774, %v2707, %v2703
    %v2709 = vlaneseq
    %v2710 = vshrl.u32 %v2709, 7
    %v2711 = vsub.s32 %v1776, %v2710
    %v2712 = vrot.slane %v1422, %v2711
    %v2713 = vsel %vm1781, %v2712, %v2708
    %v2714 = vlaneseq
    %v2715 = vshrl.u32 %v2714, 7
    %v2716 = vsub.s32 %v1673, %v2715
    %v2717 = vrot.slane %v1425, %v2716
    %v2718 = vlaneseq
    %v2719 = vshrl.u32 %v2718, 7
    %v2720 = vsub.s32 %v1678, %v2719
    %v2721 = vrot.slane %v1428, %v2720
    %v2722 = vsel %vm1683, %v2721, %v2717
    %v2723 = vlaneseq
    %v2724 = vshrl.u32 %v2723, 7
    %v2725 = vsub.s32 %v1685, %v2724
    %v2726 = vrot.slane %v1431, %v2725
    %v2727 = vsel %vm1690, %v2726, %v2722
    %v2728 = vlaneseq
    %v2729 = vshrl.u32 %v2728, 7
    %v2730 = vsub.s32 %v1692, %v2729
    %v2731 = vrot.slane %v1434, %v2730
    %v2732 = vsel %vm1697, %v2731, %v2727
    %v2733 = vlaneseq
    %v2734 = vshrl.u32 %v2733, 7
    %v2735 = vsub.s32 %v1699, %v2734
    %v2736 = vrot.slane %v1437, %v2735
    %v2737 = vsel %vm1704, %v2736, %v2732
    %v2738 = vlaneseq
    %v2739 = vshrl.u32 %v2738, 7
    %v2740 = vsub.s32 %v1706, %v2739
    %v2741 = vrot.slane %v1440, %v2740
    %v2742 = vsel %vm1711, %v2741, %v2737
    %v2743 = vlaneseq
    %v2744 = vshrl.u32 %v2743, 7
    %v2745 = vsub.s32 %v1713, %v2744
    %v2746 = vrot.slane %v1443, %v2745
    %v2747 = vsel %vm1718, %v2746, %v2742
    %v2748 = vlaneseq
    %v2749 = vshrl.u32 %v2748, 7
    %v2750 = vsub.s32 %v1720, %v2749
    %v2751 = vrot.slane %v1446, %v2750
    %v2752 = vsel %vm1725, %v2751, %v2747
    %v2753 = vlaneseq
    %v2754 = vshrl.u32 %v2753, 7
    %v2755 = vsub.s32 %v1727, %v2754
    %v2756 = vrot.slane %v1449, %v2755
    %v2757 = vsel %vm1732, %v2756, %v2752
    %v2758 = vlaneseq
    %v2759 = vshrl.u32 %v2758, 7
    %v2760 = vsub.s32 %v1734, %v2759
    %v2761 = vrot.slane %v1452, %v2760
    %v2762 = vsel %vm1739, %v2761, %v2757
    %v2763 = vlaneseq
    %v2764 = vshrl.u32 %v2763, 7
    %v2765 = vsub.s32 %v1741, %v2764
    %v2766 = vrot.slane %v1455, %v2765
    %v2767 = vsel %vm1746, %v2766, %v2762
    %vm2768 = vcmask 1041409
    %v2769 = vsel %vm2768, %v1915, %v1782
    %vm2770 = vcmask 1042434
    %v2771 = vsel %vm2770, %v2048, %v2769
    %vm2772 = vcmask 1043459
    %v2773 = vsel %vm2772, %v2181, %v2771
    %vm2774 = vcmask 1044484
    %v2775 = vsel %vm2774, %v2314, %v2773
    %vm2776 = vcmask 1045509
    %v2777 = vsel %vm2776, %v2447, %v2775
    %vm2778 = vcmask 1046534
    %v2779 = vsel %vm2778, %v2580, %v2777
    %vm2780 = vcmask 1047559
    %v2781 = vsel %vm2780, %v2713, %v2779
    %v2782 = vsel %vm2768, %v1969, %v1836
    %v2783 = vsel %vm2770, %v2102, %v2782
    %v2784 = vsel %vm2772, %v2235, %v2783
    %v2785 = vsel %vm2774, %v2368, %v2784
    %v2786 = vsel %vm2776, %v2501, %v2785
    %v2787 = vsel %vm2778, %v2634, %v2786
    %v2788 = vsel %vm2780, %v2767, %v2787
    %vm2791 = vcmask 670720
    %v2792 = vsel %vm2791, %v2788, 0.0
    %v2793 = vadd.f32 %v2781, %v2792
    %2794 = vadd.xlane.f32.xlu0 %v2793
    %v2795 = vpop.xlane.xlu0 %2794
    %v2797 = vlaneseq
    %v2798 = vshrl.u32 %v2797, 7
    %v2799 = vsub.s32 0, %v2798
    %v2800 = vrot.slane %v243, %v2799
    %2802 = vbcast.lane.b32.xlu0 %v2800, 256
    %v2803 = vpop.permute.xlu0 %2802
    %v2805 = vadd.f32 %v2795, %v2803
    %2807 = vset.pattern.permute.xlu0 0
    %2808 = vperm.xlu0 %2807, %v2805
    %v2809 = vpop.permute.xlu0 %2808
    %v2810 = vlaneseq
    %v2811 = vshrl.u32 %v2810, 7
    %v2812 = vsub.s32 %v1673, %v2811
    %v2813 = vrot.slane %v2809, %v2812
    %vm2815 = vcmask 57344
    %2816 = vst.msk [vmem:[#allocation2] sm:$0x1] %vm2815, %v2813
    %s2817 = scalar_lea.vmem %s0, 216
    %v2818 = vld [vmem:[%s2817] sm:$0xff]
    %v2819 = vld [vmem:[%s2817 + $0x8] sm:$0xff]
    %v2820 = vld [vmem:[%s2817 + $0x10] sm:$0xff]
    %v2821 = vld [vmem:[%s2817 + $0x18] sm:$0xff]
    %v2822 = vld [vmem:[%s2817 + $0x20] sm:$0xff]
    %v2823 = vld [vmem:[%s2817 + $0x28] sm:$0xff]
    %v2824 = vld [vmem:[%s2817 + $0x30] sm:$0xff]
    %v2825 = vld [vmem:[%s2817 + $0x38] sm:$0xff]
    %v2826 = vld [vmem:[%s2817 + $0x40] sm:$0xff]
    %v2827 = vld [vmem:[%s2817 + $0x48] sm:$0xff]
    %v2828 = vld [vmem:[%s2817 + $0x50] sm:$0xff]
    %v2829 = vld [vmem:[%s2817 + $0x58] sm:$0xff]
    %v2830 = vld [vmem:[%s2817 + $0x60] sm:$0xff]
    %v2831 = vld [vmem:[%s2817 + $0x68] sm:$0xff]
    %v2832 = vld [vmem:[%s2817 + $0x70] sm:$0xff]
    %v2833 = vld [vmem:[%s2817 + $0x78] sm:$0xff]
    %v2834 = vld [vmem:[%s2817 + $0x80] sm:$0xff]
    %v2835 = vld [vmem:[%s2817 + $0x88] sm:$0xff]
    %v2836 = vld [vmem:[%s2817 + $0x90] sm:$0xff]
    %v2837 = vld [vmem:[%s2817 + $0x98] sm:$0xff]
    %v2838 = vld [vmem:[%s2817 + $0xa0] sm:$0xff]
    %v2839 = vld [vmem:[%s2817 + $0xa8] sm:$0xff]
    %v2840 = vld [vmem:[%s2817 + $0xb0] sm:$0xff]
    %v2841 = vld [vmem:[%s2817 + $0xb8] sm:$0xff]
    %v2842 = vld [vmem:[%s2817 + $0xc0] sm:$0xff]
    %v2843 = vld [vmem:[%s2817 + $0xc8] sm:$0xff]
    %v2844 = vld [vmem:[%s2817 + $0xd0] sm:$0x3]
    %v2846 = vsel %vm277, %v2818, 0
    %v2849 = vsel %vm277, %v2819, 0
    %v2852 = vsel %vm277, %v2820, 0
    %v2855 = vsel %vm277, %v2821, 0
    %v2858 = vsel %vm277, %v2822, 0
    %v2861 = vsel %vm277, %v2823, 0
    %v2864 = vsel %vm277, %v2824, 0
    %v2867 = vsel %vm277, %v2825, 0
    %v2870 = vsel %vm277, %v2826, 0
    %v2873 = vsel %vm277, %v2827, 0
    %v2876 = vsel %vm277, %v2828, 0
    %v2879 = vsel %vm277, %v2829, 0
    %v2882 = vsel %vm277, %v2830, 0
    %v2885 = vsel %vm277, %v2831, 0
    %v2888 = vsel %vm277, %v2832, 0
    %v2891 = vsel %vm277, %v2833, 0
    %v2894 = vsel %vm277, %v2834, 0
    %v2897 = vsel %vm277, %v2835, 0
    %v2900 = vsel %vm277, %v2836, 0
    %v2903 = vsel %vm277, %v2837, 0
    %v2906 = vsel %vm277, %v2838, 0
    %v2909 = vsel %vm277, %v2839, 0
    %v2912 = vsel %vm277, %v2840, 0
    %v2915 = vsel %vm277, %v2841, 0
    %v2918 = vsel %vm277, %v2842, 0
    %v2921 = vsel %vm277, %v2843, 0
    %v2924 = vsel %vm277, %v2844, 0
    %2926 = vmatprep.subr.mxu0 0.0
    %2927 = vmatpush1.msra.mxu0 0.0
    %2928 = vmatprep.subr.mxu0 0.0
    %2929 = vmatpush1.msra.mxu0 0.0
    %2930 = vmatprep.subr.mxu0 0.0
    %2931 = vmatpush1.msra.mxu0 0.0
    %2932 = vmatprep.subr.mxu0 0.0
    %2933 = vmatpush1.msra.mxu0 0.0
    %2934 = vmatprep.subr.mxu0 0.0
    %2935 = vmatpush1.msra.mxu0 0.0
    %2936 = vmatprep.subr.mxu0 0.0
    %2937 = vmatpush1.msra.mxu0 0.0
    %2938 = vmatprep.subr.mxu0 0.0
    %2939 = vmatpush1.msra.mxu0 0.0
    %2940 = vmatprep.subr.mxu0 0.0
    %2941 = vmatpush1.msra.mxu0 0.0
    %2942 = vmatprep.subr.mxu0 0.0
    %2943 = vmatpush1.msra.mxu0 0.0
    %2944 = vmatprep.subr.mxu0 0.0
    %2945 = vmatpush1.msra.mxu0 0.0
    %2946 = vmatprep.subr.mxu0 0.0
    %2947 = vmatpush1.msra.mxu0 0.0
    %2948 = vmatprep.subr.mxu0 0.0
    %2949 = vmatpush1.msra.mxu0 %v361
    %2950 = vmatprep.subr.mxu0 0.0
    %2951 = vmatpush1.msra.mxu0 %v24
    %2952 = vmatprep.subr.mxu0 0.0
    %2953 = vmatpush1.msra.mxu0 %v23
    %2954 = vmatprep.subr.mxu0 0.0
    %2955 = vmatpush1.msra.mxu0 %v22
    %2956 = vmatprep.subr.mxu0 0.0
    %2957 = vmatpush1.msra.mxu0 %v21
    %2958 = vmatprep.subr.mxu0 0.0
    %2959 = vmatpush2.msra.mxu0 0.0
    %2960 = vmatprep.subr.mxu0 0.0
    %2961 = vmatpush2.msra.mxu0 0.0
    %2962 = vmatprep.subr.mxu0 0.0
    %2963 = vmatpush2.msra.mxu0 0.0
    %2964 = vmatprep.subr.mxu0 0.0
    %2965 = vmatpush2.msra.mxu0 0.0
    %2966 = vmatprep.subr.mxu0 0.0
    %2967 = vmatpush2.msra.mxu0 0.0
    %2968 = vmatprep.subr.mxu0 0.0
    %2969 = vmatpush2.msra.mxu0 0.0
    %2970 = vmatprep.subr.mxu0 0.0
    %2971 = vmatpush2.msra.mxu0 0.0
    %2972 = vmatprep.subr.mxu0 0.0
    %2973 = vmatpush2.msra.mxu0 0.0
    %2974 = vmatprep.subr.mxu0 0.0
    %2975 = vmatpush2.msra.mxu0 0.0
    %2976 = vmatprep.subr.mxu0 0.0
    %2977 = vmatpush2.msra.mxu0 0.0
    %2978 = vmatprep.subr.mxu0 0.0
    %2979 = vmatpush2.msra.mxu0 0.0
    %2980 = vmatprep.subr.mxu0 0.0
    %2981 = vmatpush2.msra.mxu0 0.0
    %2982 = vmatprep.subr.mxu0 0.0
    %2983 = vmatpush2.msra.mxu0 0.0
    %2984 = vmatprep.subr.mxu0 0.0
    %2985 = vmatpush2.msra.mxu0 0.0
    %2986 = vmatprep.subr.mxu0 0.0
    %2987 = vmatpush2.msra.mxu0 0.0
    %2988 = vmatprep.subr.mxu0 0.0
    %2989 = vmatpush2.msra.mxu0 0.0
    %2990 = vmatprep.mubr.f32.mxu0 0.0
    %2991 = vmatmul.mubr.f32.gmra.mxu0 %v2846
    %v2992 = vpop.f32.mrf.mxu0
    %v2993 = vadd.f32 %v275, %v2992
    %v2994 = vpop.f32.mrf.mxu0
    %2995 = vmatprep.mubr.f32.mxu0 0.0
    %2996 = vmatmul.mubr.f32.gmra.mxu0 %v2849
    %v2997 = vpop.f32.mrf.mxu0
    %v2998 = vadd.f32 %v275, %v2997
    %v2999 = vpop.f32.mrf.mxu0
    %3000 = vmatprep.mubr.f32.mxu0 0.0
    %3001 = vmatmul.mubr.f32.gmra.mxu0 %v2852
    %v3002 = vpop.f32.mrf.mxu0
    %v3003 = vadd.f32 %v275, %v3002
    %v3004 = vpop.f32.mrf.mxu0
    %3005 = vmatprep.mubr.f32.mxu0 0.0
    %3006 = vmatmul.mubr.f32.gmra.mxu0 %v2855
    %v3007 = vpop.f32.mrf.mxu0
    %v3008 = vadd.f32 %v275, %v3007
    %v3009 = vpop.f32.mrf.mxu0
    %3010 = vmatprep.mubr.f32.mxu0 0.0
    %3011 = vmatmul.mubr.f32.gmra.mxu0 %v2858
    %v3012 = vpop.f32.mrf.mxu0
    %v3013 = vadd.f32 %v275, %v3012
    %v3014 = vpop.f32.mrf.mxu0
    %3015 = vmatprep.mubr.f32.mxu0 0.0
    %3016 = vmatmul.mubr.f32.gmra.mxu0 %v2861
    %v3017 = vpop.f32.mrf.mxu0
    %v3018 = vadd.f32 %v275, %v3017
    %v3019 = vpop.f32.mrf.mxu0
    %3020 = vmatprep.mubr.f32.mxu0 0.0
    %3021 = vmatmul.mubr.f32.gmra.mxu0 %v2864
    %v3022 = vpop.f32.mrf.mxu0
    %v3023 = vadd.f32 %v275, %v3022
    %v3024 = vpop.f32.mrf.mxu0
    %3025 = vmatprep.mubr.f32.mxu0 0.0
    %3026 = vmatmul.mubr.f32.gmra.mxu0 %v2867
    %v3027 = vpop.f32.mrf.mxu0
    %v3028 = vadd.f32 %v275, %v3027
    %v3029 = vpop.f32.mrf.mxu0
    %3030 = vmatprep.mubr.f32.mxu0 0.0
    %3031 = vmatmul.mubr.f32.gmra.mxu0 %v2870
    %v3032 = vpop.f32.mrf.mxu0
    %v3033 = vadd.f32 %v275, %v3032
    %v3034 = vpop.f32.mrf.mxu0
    %3035 = vmatprep.mubr.f32.mxu0 0.0
    %3036 = vmatmul.mubr.f32.gmra.mxu0 %v2873
    %v3037 = vpop.f32.mrf.mxu0
    %v3038 = vadd.f32 %v275, %v3037
    %v3039 = vpop.f32.mrf.mxu0
    %3040 = vmatprep.mubr.f32.mxu0 0.0
    %3041 = vmatmul.mubr.f32.gmra.mxu0 %v2876
    %v3042 = vpop.f32.mrf.mxu0
    %v3043 = vadd.f32 %v275, %v3042
    %v3044 = vpop.f32.mrf.mxu0
    %3045 = vmatprep.mubr.f32.mxu0 0.0
    %3046 = vmatmul.mubr.f32.gmra.mxu0 %v2879
    %v3047 = vpop.f32.mrf.mxu0
    %v3048 = vadd.f32 %v275, %v3047
    %v3049 = vpop.f32.mrf.mxu0
    %3050 = vmatprep.mubr.f32.mxu0 0.0
    %3051 = vmatmul.mubr.f32.gmra.mxu0 %v2882
    %v3052 = vpop.f32.mrf.mxu0
    %v3053 = vadd.f32 %v275, %v3052
    %v3054 = vpop.f32.mrf.mxu0
    %3055 = vmatprep.mubr.f32.mxu0 0.0
    %3056 = vmatmul.mubr.f32.gmra.mxu0 %v2885
    %v3057 = vpop.f32.mrf.mxu0
    %v3058 = vadd.f32 %v275, %v3057
    %v3059 = vpop.f32.mrf.mxu0
    %3060 = vmatprep.mubr.f32.mxu0 0.0
    %3061 = vmatmul.mubr.f32.gmra.mxu0 %v2888
    %v3062 = vpop.f32.mrf.mxu0
    %v3063 = vadd.f32 %v275, %v3062
    %v3064 = vpop.f32.mrf.mxu0
    %3065 = vmatprep.mubr.f32.mxu0 0.0
    %3066 = vmatmul.mubr.f32.gmra.mxu0 %v2891
    %v3067 = vpop.f32.mrf.mxu0
    %v3068 = vadd.f32 %v275, %v3067
    %v3069 = vpop.f32.mrf.mxu0
    %3070 = vmatprep.mubr.f32.mxu0 0.0
    %3071 = vmatmul.mubr.f32.gmra.mxu0 %v2894
    %v3072 = vpop.f32.mrf.mxu0
    %v3073 = vadd.f32 %v275, %v3072
    %v3074 = vpop.f32.mrf.mxu0
    %3075 = vmatprep.mubr.f32.mxu0 0.0
    %3076 = vmatmul.mubr.f32.gmra.mxu0 %v2897
    %v3077 = vpop.f32.mrf.mxu0
    %v3078 = vadd.f32 %v275, %v3077
    %v3079 = vpop.f32.mrf.mxu0
    %3080 = vmatprep.mubr.f32.mxu0 0.0
    %3081 = vmatmul.mubr.f32.gmra.mxu0 %v2900
    %v3082 = vpop.f32.mrf.mxu0
    %v3083 = vadd.f32 %v275, %v3082
    %v3084 = vpop.f32.mrf.mxu0
    %3085 = vmatprep.mubr.f32.mxu0 0.0
    %3086 = vmatmul.mubr.f32.gmra.mxu0 %v2903
    %v3087 = vpop.f32.mrf.mxu0
    %v3088 = vadd.f32 %v275, %v3087
    %v3089 = vpop.f32.mrf.mxu0
    %3090 = vmatprep.mubr.f32.mxu0 0.0
    %3091 = vmatmul.mubr.f32.gmra.mxu0 %v2906
    %v3092 = vpop.f32.mrf.mxu0
    %v3093 = vadd.f32 %v275, %v3092
    %v3094 = vpop.f32.mrf.mxu0
    %3095 = vmatprep.mubr.f32.mxu0 0.0
    %3096 = vmatmul.mubr.f32.gmra.mxu0 %v2909
    %v3097 = vpop.f32.mrf.mxu0
    %v3098 = vadd.f32 %v275, %v3097
    %v3099 = vpop.f32.mrf.mxu0
    %3100 = vmatprep.mubr.f32.mxu0 0.0
    %3101 = vmatmul.mubr.f32.gmra.mxu0 %v2912
    %v3102 = vpop.f32.mrf.mxu0
    %v3103 = vadd.f32 %v275, %v3102
    %v3104 = vpop.f32.mrf.mxu0
    %3105 = vmatprep.mubr.f32.mxu0 0.0
    %3106 = vmatmul.mubr.f32.gmra.mxu0 %v2915
    %v3107 = vpop.f32.mrf.mxu0
    %v3108 = vadd.f32 %v275, %v3107
    %v3109 = vpop.f32.mrf.mxu0
    %3110 = vmatprep.mubr.f32.mxu0 0.0
    %3111 = vmatmul.mubr.f32.gmra.mxu0 %v2918
    %v3112 = vpop.f32.mrf.mxu0
    %v3113 = vadd.f32 %v275, %v3112
    %v3114 = vpop.f32.mrf.mxu0
    %3115 = vmatprep.mubr.f32.mxu0 0.0
    %3116 = vmatmul.mubr.f32.gmra.mxu0 %v2921
    %v3117 = vpop.f32.mrf.mxu0
    %v3118 = vadd.f32 %v275, %v3117
    %v3119 = vpop.f32.mrf.mxu0
    %3120 = vmatprep.mubr.f32.mxu0 0.0
    %3121 = vmatmul.mubr.f32.gmra.mxu0 %v2924
    %v3122 = vpop.f32.mrf.mxu0
    %v3123 = vadd.f32 %v275, %v3122
    %v3124 = vpop.f32.mrf.mxu0
    %3125 = vdwg.mxu0
    %v3126 = vmax.f32 %v2993, 0.0
    %v3127 = vmax.f32 %v2998, 0.0
    %v3128 = vmax.f32 %v3003, 0.0
    %v3129 = vmax.f32 %v3008, 0.0
    %v3130 = vmax.f32 %v3013, 0.0
    %v3131 = vmax.f32 %v3018, 0.0
    %v3132 = vmax.f32 %v3023, 0.0
    %v3133 = vmax.f32 %v3028, 0.0
    %v3134 = vmax.f32 %v3033, 0.0
    %v3135 = vmax.f32 %v3038, 0.0
    %v3136 = vmax.f32 %v3043, 0.0
    %v3137 = vmax.f32 %v3048, 0.0
    %v3138 = vmax.f32 %v3053, 0.0
    %v3139 = vmax.f32 %v3058, 0.0
    %v3140 = vmax.f32 %v3063, 0.0
    %v3141 = vmax.f32 %v3068, 0.0
    %v3142 = vmax.f32 %v3073, 0.0
    %v3143 = vmax.f32 %v3078, 0.0
    %v3144 = vmax.f32 %v3083, 0.0
    %v3145 = vmax.f32 %v3088, 0.0
    %v3146 = vmax.f32 %v3093, 0.0
    %v3147 = vmax.f32 %v3098, 0.0
    %v3148 = vmax.f32 %v3103, 0.0
    %v3149 = vmax.f32 %v3108, 0.0
    %v3150 = vmax.f32 %v3113, 0.0
    %v3151 = vmax.f32 %v3118, 0.0
    %v3152 = vmax.f32 %v3123, 0.0
    %v3153 = vmul.f32 %v3126, %v27
    %v3154 = vmul.f32 %v3127, %v28
    %v3155 = vmul.f32 %v3128, %v29
    %v3156 = vmul.f32 %v3129, %v30
    %v3157 = vmul.f32 %v3130, %v31
    %v3158 = vmul.f32 %v3131, %v32
    %v3159 = vmul.f32 %v3132, %v33
    %v3160 = vmul.f32 %v3133, %v34
    %v3161 = vmul.f32 %v3134, %v35
    %v3162 = vmul.f32 %v3135, %v36
    %v3163 = vmul.f32 %v3136, %v37
    %v3164 = vmul.f32 %v3137, %v38
    %v3165 = vmul.f32 %v3138, %v39
    %v3166 = vmul.f32 %v3139, %v40
    %v3167 = vmul.f32 %v3140, %v41
    %v3168 = vmul.f32 %v3141, %v42
    %v3169 = vmul.f32 %v3142, %v43
    %v3170 = vmul.f32 %v3143, %v44
    %v3171 = vmul.f32 %v3144, %v45
    %v3172 = vmul.f32 %v3145, %v46
    %v3173 = vmul.f32 %v3146, %v47
    %v3174 = vmul.f32 %v3147, %v48
    %v3175 = vmul.f32 %v3148, %v49
    %v3176 = vmul.f32 %v3149, %v50
    %v3177 = vmul.f32 %v3150, %v51
    %v3178 = vmul.f32 %v3151, %v52
    %v3179 = vmul.f32 %v3152, %v53
    %v3180 = vmul.f32 %v3126, %v54
    %v3181 = vmul.f32 %v3127, %v55
    %v3182 = vmul.f32 %v3128, %v56
    %v3183 = vmul.f32 %v3129, %v57
    %v3184 = vmul.f32 %v3130, %v58
    %v3185 = vmul.f32 %v3131, %v59
    %v3186 = vmul.f32 %v3132, %v60
    %v3187 = vmul.f32 %v3133, %v61
    %v3188 = vmul.f32 %v3134, %v62
    %v3189 = vmul.f32 %v3135, %v63
    %v3190 = vmul.f32 %v3136, %v64
    %v3191 = vmul.f32 %v3137, %v65
    %v3192 = vmul.f32 %v3138, %v66
    %v3193 = vmul.f32 %v3139, %v67
    %v3194 = vmul.f32 %v3140, %v68
    %v3195 = vmul.f32 %v3141, %v69
    %v3196 = vmul.f32 %v3142, %v70
    %v3197 = vmul.f32 %v3143, %v71
    %v3198 = vmul.f32 %v3144, %v72
    %v3199 = vmul.f32 %v3145, %v73
    %v3200 = vmul.f32 %v3146, %v74
    %v3201 = vmul.f32 %v3147, %v75
    %v3202 = vmul.f32 %v3148, %v76
    %v3203 = vmul.f32 %v3149, %v77
    %v3204 = vmul.f32 %v3150, %v78
    %v3205 = vmul.f32 %v3151, %v79
    %v3206 = vmul.f32 %v3152, %v80
    %v3207 = vmul.f32 %v3126, %v81
    %v3208 = vmul.f32 %v3127, %v82
    %v3209 = vmul.f32 %v3128, %v83
    %v3210 = vmul.f32 %v3129, %v84
    %v3211 = vmul.f32 %v3130, %v85
    %v3212 = vmul.f32 %v3131, %v86
    %v3213 = vmul.f32 %v3132, %v87
    %v3214 = vmul.f32 %v3133, %v88
    %v3215 = vmul.f32 %v3134, %v89
    %v3216 = vmul.f32 %v3135, %v90
    %v3217 = vmul.f32 %v3136, %v91
    %v3218 = vmul.f32 %v3137, %v92
    %v3219 = vmul.f32 %v3138, %v93
    %v3220 = vmul.f32 %v3139, %v94
    %v3221 = vmul.f32 %v3140, %v95
    %v3222 = vmul.f32 %v3141, %v96
    %v3223 = vmul.f32 %v3142, %v97
    %v3224 = vmul.f32 %v3143, %v98
    %v3225 = vmul.f32 %v3144, %v99
    %v3226 = vmul.f32 %v3145, %v100
    %v3227 = vmul.f32 %v3146, %v101
    %v3228 = vmul.f32 %v3147, %v102
    %v3229 = vmul.f32 %v3148, %v103
    %v3230 = vmul.f32 %v3149, %v104
    %v3231 = vmul.f32 %v3150, %v105
    %v3232 = vmul.f32 %v3151, %v106
    %v3233 = vmul.f32 %v3152, %v107
    %v3234 = vmul.f32 %v3126, %v108
    %v3235 = vmul.f32 %v3127, %v109
    %v3236 = vmul.f32 %v3128, %v110
    %v3237 = vmul.f32 %v3129, %v111
    %v3238 = vmul.f32 %v3130, %v112
    %v3239 = vmul.f32 %v3131, %v113
    %v3240 = vmul.f32 %v3132, %v114
    %v3241 = vmul.f32 %v3133, %v115
    %v3242 = vmul.f32 %v3134, %v116
    %v3243 = vmul.f32 %v3135, %v117
    %v3244 = vmul.f32 %v3136, %v118
    %v3245 = vmul.f32 %v3137, %v119
    %v3246 = vmul.f32 %v3138, %v120
    %v3247 = vmul.f32 %v3139, %v121
    %v3248 = vmul.f32 %v3140, %v122
    %v3249 = vmul.f32 %v3141, %v123
    %v3250 = vmul.f32 %v3142, %v124
    %v3251 = vmul.f32 %v3143, %v125
    %v3252 = vmul.f32 %v3144, %v126
    %v3253 = vmul.f32 %v3145, %v127
    %v3254 = vmul.f32 %v3146, %v128
    %v3255 = vmul.f32 %v3147, %v129
    %v3256 = vmul.f32 %v3148, %v130
    %v3257 = vmul.f32 %v3149, %v131
    %v3258 = vmul.f32 %v3150, %v132
    %v3259 = vmul.f32 %v3151, %v133
    %v3260 = vmul.f32 %v3152, %v134
    %v3261 = vmul.f32 %v3126, %v135
    %v3262 = vmul.f32 %v3127, %v136
    %v3263 = vmul.f32 %v3128, %v137
    %v3264 = vmul.f32 %v3129, %v138
    %v3265 = vmul.f32 %v3130, %v139
    %v3266 = vmul.f32 %v3131, %v140
    %v3267 = vmul.f32 %v3132, %v141
    %v3268 = vmul.f32 %v3133, %v142
    %v3269 = vmul.f32 %v3134, %v143
    %v3270 = vmul.f32 %v3135, %v144
    %v3271 = vmul.f32 %v3136, %v145
    %v3272 = vmul.f32 %v3137, %v146
    %v3273 = vmul.f32 %v3138, %v147
    %v3274 = vmul.f32 %v3139, %v148
    %v3275 = vmul.f32 %v3140, %v149
    %v3276 = vmul.f32 %v3141, %v150
    %v3277 = vmul.f32 %v3142, %v151
    %v3278 = vmul.f32 %v3143, %v152
    %v3279 = vmul.f32 %v3144, %v153
    %v3280 = vmul.f32 %v3145, %v154
    %v3281 = vmul.f32 %v3146, %v155
    %v3282 = vmul.f32 %v3147, %v156
    %v3283 = vmul.f32 %v3148, %v157
    %v3284 = vmul.f32 %v3149, %v158
    %v3285 = vmul.f32 %v3150, %v159
    %v3286 = vmul.f32 %v3151, %v160
    %v3287 = vmul.f32 %v3152, %v161
    %v3288 = vmul.f32 %v3126, %v162
    %v3289 = vmul.f32 %v3127, %v163
    %v3290 = vmul.f32 %v3128, %v164
    %v3291 = vmul.f32 %v3129, %v165
    %v3292 = vmul.f32 %v3130, %v166
    %v3293 = vmul.f32 %v3131, %v167
    %v3294 = vmul.f32 %v3132, %v168
    %v3295 = vmul.f32 %v3133, %v169
    %v3296 = vmul.f32 %v3134, %v170
    %v3297 = vmul.f32 %v3135, %v171
    %v3298 = vmul.f32 %v3136, %v172
    %v3299 = vmul.f32 %v3137, %v173
    %v3300 = vmul.f32 %v3138, %v174
    %v3301 = vmul.f32 %v3139, %v175
    %v3302 = vmul.f32 %v3140, %v176
    %v3303 = vmul.f32 %v3141, %v177
    %v3304 = vmul.f32 %v3142, %v178
    %v3305 = vmul.f32 %v3143, %v179
    %v3306 = vmul.f32 %v3144, %v180
    %v3307 = vmul.f32 %v3145, %v181
    %v3308 = vmul.f32 %v3146, %v182
    %v3309 = vmul.f32 %v3147, %v183
    %v3310 = vmul.f32 %v3148, %v184
    %v3311 = vmul.f32 %v3149, %v185
    %v3312 = vmul.f32 %v3150, %v186
    %v3313 = vmul.f32 %v3151, %v187
    %v3314 = vmul.f32 %v3152, %v188
    %v3315 = vmul.f32 %v3126, %v189
    %v3316 = vmul.f32 %v3127, %v190
    %v3317 = vmul.f32 %v3128, %v191
    %v3318 = vmul.f32 %v3129, %v192
    %v3319 = vmul.f32 %v3130, %v193
    %v3320 = vmul.f32 %v3131, %v194
    %v3321 = vmul.f32 %v3132, %v195
    %v3322 = vmul.f32 %v3133, %v196
    %v3323 = vmul.f32 %v3134, %v197
    %v3324 = vmul.f32 %v3135, %v198
    %v3325 = vmul.f32 %v3136, %v199
    %v3326 = vmul.f32 %v3137, %v200
    %v3327 = vmul.f32 %v3138, %v201
    %v3328 = vmul.f32 %v3139, %v202
    %v3329 = vmul.f32 %v3140, %v203
    %v3330 = vmul.f32 %v3141, %v204
    %v3331 = vmul.f32 %v3142, %v205
    %v3332 = vmul.f32 %v3143, %v206
    %v3333 = vmul.f32 %v3144, %v207
    %v3334 = vmul.f32 %v3145, %v208
    %v3335 = vmul.f32 %v3146, %v209
    %v3336 = vmul.f32 %v3147, %v210
    %v3337 = vmul.f32 %v3148, %v211
    %v3338 = vmul.f32 %v3149, %v212
    %v3339 = vmul.f32 %v3150, %v213
    %v3340 = vmul.f32 %v3151, %v214
    %v3341 = vmul.f32 %v3152, %v215
    %v3342 = vmul.f32 %v3126, %v216
    %v3343 = vmul.f32 %v3127, %v217
    %v3344 = vmul.f32 %v3128, %v218
    %v3345 = vmul.f32 %v3129, %v219
    %v3346 = vmul.f32 %v3130, %v220
    %v3347 = vmul.f32 %v3131, %v221
    %v3348 = vmul.f32 %v3132, %v222
    %v3349 = vmul.f32 %v3133, %v223
    %v3350 = vmul.f32 %v3134, %v224
    %v3351 = vmul.f32 %v3135, %v225
    %v3352 = vmul.f32 %v3136, %v226
    %v3353 = vmul.f32 %v3137, %v227
    %v3354 = vmul.f32 %v3138, %v228
    %v3355 = vmul.f32 %v3139, %v229
    %v3356 = vmul.f32 %v3140, %v230
    %v3357 = vmul.f32 %v3141, %v231
    %v3358 = vmul.f32 %v3142, %v232
    %v3359 = vmul.f32 %v3143, %v233
    %v3360 = vmul.f32 %v3144, %v234
    %v3361 = vmul.f32 %v3145, %v235
    %v3362 = vmul.f32 %v3146, %v236
    %v3363 = vmul.f32 %v3147, %v237
    %v3364 = vmul.f32 %v3148, %v238
    %v3365 = vmul.f32 %v3149, %v239
    %v3366 = vmul.f32 %v3150, %v240
    %v3367 = vmul.f32 %v3151, %v241
    %v3368 = vmul.f32 %v3152, %v242
    %v3369 = vsel %vm806, %v3153, 0.0
    %3370 = vadd.xlane.f32.xlu0 %v3369
    %v3371 = vpop.xlane.xlu0 %3370
    %v3372 = vsel %vm806, %v3154, 0.0
    %3373 = vadd.xlane.f32.xlu0 %v3372
    %v3374 = vpop.xlane.xlu0 %3373
    %v3375 = vsel %vm806, %v3155, 0.0
    %3376 = vadd.xlane.f32.xlu0 %v3375
    %v3377 = vpop.xlane.xlu0 %3376
    %v3378 = vsel %vm806, %v3156, 0.0
    %3379 = vadd.xlane.f32.xlu0 %v3378
    %v3380 = vpop.xlane.xlu0 %3379
    %v3381 = vsel %vm806, %v3157, 0.0
    %3382 = vadd.xlane.f32.xlu0 %v3381
    %v3383 = vpop.xlane.xlu0 %3382
    %v3384 = vsel %vm806, %v3158, 0.0
    %3385 = vadd.xlane.f32.xlu0 %v3384
    %v3386 = vpop.xlane.xlu0 %3385
    %v3387 = vsel %vm806, %v3159, 0.0
    %3388 = vadd.xlane.f32.xlu0 %v3387
    %v3389 = vpop.xlane.xlu0 %3388
    %v3390 = vsel %vm806, %v3160, 0.0
    %3391 = vadd.xlane.f32.xlu0 %v3390
    %v3392 = vpop.xlane.xlu0 %3391
    %v3393 = vsel %vm806, %v3161, 0.0
    %3394 = vadd.xlane.f32.xlu0 %v3393
    %v3395 = vpop.xlane.xlu0 %3394
    %v3396 = vsel %vm806, %v3162, 0.0
    %3397 = vadd.xlane.f32.xlu0 %v3396
    %v3398 = vpop.xlane.xlu0 %3397
    %v3399 = vsel %vm806, %v3163, 0.0
    %3400 = vadd.xlane.f32.xlu0 %v3399
    %v3401 = vpop.xlane.xlu0 %3400
    %v3402 = vsel %vm806, %v3164, 0.0
    %3403 = vadd.xlane.f32.xlu0 %v3402
    %v3404 = vpop.xlane.xlu0 %3403
    %v3405 = vsel %vm806, %v3165, 0.0
    %3406 = vadd.xlane.f32.xlu0 %v3405
    %v3407 = vpop.xlane.xlu0 %3406
    %v3408 = vsel %vm806, %v3166, 0.0
    %3409 = vadd.xlane.f32.xlu0 %v3408
    %v3410 = vpop.xlane.xlu0 %3409
    %v3411 = vsel %vm806, %v3167, 0.0
    %3412 = vadd.xlane.f32.xlu0 %v3411
    %v3413 = vpop.xlane.xlu0 %3412
    %v3414 = vsel %vm806, %v3168, 0.0
    %3415 = vadd.xlane.f32.xlu0 %v3414
    %v3416 = vpop.xlane.xlu0 %3415
    %v3417 = vsel %vm806, %v3169, 0.0
    %3418 = vadd.xlane.f32.xlu0 %v3417
    %v3419 = vpop.xlane.xlu0 %3418
    %v3420 = vsel %vm806, %v3170, 0.0
    %3421 = vadd.xlane.f32.xlu0 %v3420
    %v3422 = vpop.xlane.xlu0 %3421
    %v3423 = vsel %vm806, %v3171, 0.0
    %3424 = vadd.xlane.f32.xlu0 %v3423
    %v3425 = vpop.xlane.xlu0 %3424
    %v3426 = vsel %vm806, %v3172, 0.0
    %3427 = vadd.xlane.f32.xlu0 %v3426
    %v3428 = vpop.xlane.xlu0 %3427
    %v3429 = vsel %vm806, %v3173, 0.0
    %3430 = vadd.xlane.f32.xlu0 %v3429
    %v3431 = vpop.xlane.xlu0 %3430
    %v3432 = vsel %vm806, %v3174, 0.0
    %3433 = vadd.xlane.f32.xlu0 %v3432
    %v3434 = vpop.xlane.xlu0 %3433
    %v3435 = vsel %vm806, %v3175, 0.0
    %3436 = vadd.xlane.f32.xlu0 %v3435
    %v3437 = vpop.xlane.xlu0 %3436
    %v3438 = vsel %vm806, %v3176, 0.0
    %3439 = vadd.xlane.f32.xlu0 %v3438
    %v3440 = vpop.xlane.xlu0 %3439
    %v3441 = vsel %vm806, %v3177, 0.0
    %3442 = vadd.xlane.f32.xlu0 %v3441
    %v3443 = vpop.xlane.xlu0 %3442
    %v3444 = vsel %vm806, %v3178, 0.0
    %3445 = vadd.xlane.f32.xlu0 %v3444
    %v3446 = vpop.xlane.xlu0 %3445
    %v3447 = vsel %vm885, %v3179, 0.0
    %3448 = vadd.xlane.f32.xlu0 %v3447
    %v3449 = vpop.xlane.xlu0 %3448
    %v3450 = vsel %vm806, %v3180, 0.0
    %3451 = vadd.xlane.f32.xlu0 %v3450
    %v3452 = vpop.xlane.xlu0 %3451
    %v3453 = vsel %vm806, %v3181, 0.0
    %3454 = vadd.xlane.f32.xlu0 %v3453
    %v3455 = vpop.xlane.xlu0 %3454
    %v3456 = vsel %vm806, %v3182, 0.0
    %3457 = vadd.xlane.f32.xlu0 %v3456
    %v3458 = vpop.xlane.xlu0 %3457
    %v3459 = vsel %vm806, %v3183, 0.0
    %3460 = vadd.xlane.f32.xlu0 %v3459
    %v3461 = vpop.xlane.xlu0 %3460
    %v3462 = vsel %vm806, %v3184, 0.0
    %3463 = vadd.xlane.f32.xlu0 %v3462
    %v3464 = vpop.xlane.xlu0 %3463
    %v3465 = vsel %vm806, %v3185, 0.0
    %3466 = vadd.xlane.f32.xlu0 %v3465
    %v3467 = vpop.xlane.xlu0 %3466
    %v3468 = vsel %vm806, %v3186, 0.0
    %3469 = vadd.xlane.f32.xlu0 %v3468
    %v3470 = vpop.xlane.xlu0 %3469
    %v3471 = vsel %vm806, %v3187, 0.0
    %3472 = vadd.xlane.f32.xlu0 %v3471
    %v3473 = vpop.xlane.xlu0 %3472
    %v3474 = vsel %vm806, %v3188, 0.0
    %3475 = vadd.xlane.f32.xlu0 %v3474
    %v3476 = vpop.xlane.xlu0 %3475
    %v3477 = vsel %vm806, %v3189, 0.0
    %3478 = vadd.xlane.f32.xlu0 %v3477
    %v3479 = vpop.xlane.xlu0 %3478
    %v3480 = vsel %vm806, %v3190, 0.0
    %3481 = vadd.xlane.f32.xlu0 %v3480
    %v3482 = vpop.xlane.xlu0 %3481
    %v3483 = vsel %vm806, %v3191, 0.0
    %3484 = vadd.xlane.f32.xlu0 %v3483
    %v3485 = vpop.xlane.xlu0 %3484
    %v3486 = vsel %vm806, %v3192, 0.0
    %3487 = vadd.xlane.f32.xlu0 %v3486
    %v3488 = vpop.xlane.xlu0 %3487
    %v3489 = vsel %vm806, %v3193, 0.0
    %3490 = vadd.xlane.f32.xlu0 %v3489
    %v3491 = vpop.xlane.xlu0 %3490
    %v3492 = vsel %vm806, %v3194, 0.0
    %3493 = vadd.xlane.f32.xlu0 %v3492
    %v3494 = vpop.xlane.xlu0 %3493
    %v3495 = vsel %vm806, %v3195, 0.0
    %3496 = vadd.xlane.f32.xlu0 %v3495
    %v3497 = vpop.xlane.xlu0 %3496
    %v3498 = vsel %vm806, %v3196, 0.0
    %3499 = vadd.xlane.f32.xlu0 %v3498
    %v3500 = vpop.xlane.xlu0 %3499
    %v3501 = vsel %vm806, %v3197, 0.0
    %3502 = vadd.xlane.f32.xlu0 %v3501
    %v3503 = vpop.xlane.xlu0 %3502
    %v3504 = vsel %vm806, %v3198, 0.0
    %3505 = vadd.xlane.f32.xlu0 %v3504
    %v3506 = vpop.xlane.xlu0 %3505
    %v3507 = vsel %vm806, %v3199, 0.0
    %3508 = vadd.xlane.f32.xlu0 %v3507
    %v3509 = vpop.xlane.xlu0 %3508
    %v3510 = vsel %vm806, %v3200, 0.0
    %3511 = vadd.xlane.f32.xlu0 %v3510
    %v3512 = vpop.xlane.xlu0 %3511
    %v3513 = vsel %vm806, %v3201, 0.0
    %3514 = vadd.xlane.f32.xlu0 %v3513
    %v3515 = vpop.xlane.xlu0 %3514
    %v3516 = vsel %vm806, %v3202, 0.0
    %3517 = vadd.xlane.f32.xlu0 %v3516
    %v3518 = vpop.xlane.xlu0 %3517
    %v3519 = vsel %vm806, %v3203, 0.0
    %3520 = vadd.xlane.f32.xlu0 %v3519
    %v3521 = vpop.xlane.xlu0 %3520
    %v3522 = vsel %vm806, %v3204, 0.0
    %3523 = vadd.xlane.f32.xlu0 %v3522
    %v3524 = vpop.xlane.xlu0 %3523
    %v3525 = vsel %vm806, %v3205, 0.0
    %3526 = vadd.xlane.f32.xlu0 %v3525
    %v3527 = vpop.xlane.xlu0 %3526
    %v3528 = vsel %vm885, %v3206, 0.0
    %3529 = vadd.xlane.f32.xlu0 %v3528
    %v3530 = vpop.xlane.xlu0 %3529
    %v3531 = vsel %vm806, %v3207, 0.0
    %3532 = vadd.xlane.f32.xlu0 %v3531
    %v3533 = vpop.xlane.xlu0 %3532
    %v3534 = vsel %vm806, %v3208, 0.0
    %3535 = vadd.xlane.f32.xlu0 %v3534
    %v3536 = vpop.xlane.xlu0 %3535
    %v3537 = vsel %vm806, %v3209, 0.0
    %3538 = vadd.xlane.f32.xlu0 %v3537
    %v3539 = vpop.xlane.xlu0 %3538
    %v3540 = vsel %vm806, %v3210, 0.0
    %3541 = vadd.xlane.f32.xlu0 %v3540
    %v3542 = vpop.xlane.xlu0 %3541
    %v3543 = vsel %vm806, %v3211, 0.0
    %3544 = vadd.xlane.f32.xlu0 %v3543
    %v3545 = vpop.xlane.xlu0 %3544
    %v3546 = vsel %vm806, %v3212, 0.0
    %3547 = vadd.xlane.f32.xlu0 %v3546
    %v3548 = vpop.xlane.xlu0 %3547
    %v3549 = vsel %vm806, %v3213, 0.0
    %3550 = vadd.xlane.f32.xlu0 %v3549
    %v3551 = vpop.xlane.xlu0 %3550
    %v3552 = vsel %vm806, %v3214, 0.0
    %3553 = vadd.xlane.f32.xlu0 %v3552
    %v3554 = vpop.xlane.xlu0 %3553
    %v3555 = vsel %vm806, %v3215, 0.0
    %3556 = vadd.xlane.f32.xlu0 %v3555
    %v3557 = vpop.xlane.xlu0 %3556
    %v3558 = vsel %vm806, %v3216, 0.0
    %3559 = vadd.xlane.f32.xlu0 %v3558
    %v3560 = vpop.xlane.xlu0 %3559
    %v3561 = vsel %vm806, %v3217, 0.0
    %3562 = vadd.xlane.f32.xlu0 %v3561
    %v3563 = vpop.xlane.xlu0 %3562
    %v3564 = vsel %vm806, %v3218, 0.0
    %3565 = vadd.xlane.f32.xlu0 %v3564
    %v3566 = vpop.xlane.xlu0 %3565
    %v3567 = vsel %vm806, %v3219, 0.0
    %3568 = vadd.xlane.f32.xlu0 %v3567
    %v3569 = vpop.xlane.xlu0 %3568
    %v3570 = vsel %vm806, %v3220, 0.0
    %3571 = vadd.xlane.f32.xlu0 %v3570
    %v3572 = vpop.xlane.xlu0 %3571
    %v3573 = vsel %vm806, %v3221, 0.0
    %3574 = vadd.xlane.f32.xlu0 %v3573
    %v3575 = vpop.xlane.xlu0 %3574
    %v3576 = vsel %vm806, %v3222, 0.0
    %3577 = vadd.xlane.f32.xlu0 %v3576
    %v3578 = vpop.xlane.xlu0 %3577
    %v3579 = vsel %vm806, %v3223, 0.0
    %3580 = vadd.xlane.f32.xlu0 %v3579
    %v3581 = vpop.xlane.xlu0 %3580
    %v3582 = vsel %vm806, %v3224, 0.0
    %3583 = vadd.xlane.f32.xlu0 %v3582
    %v3584 = vpop.xlane.xlu0 %3583
    %v3585 = vsel %vm806, %v3225, 0.0
    %3586 = vadd.xlane.f32.xlu0 %v3585
    %v3587 = vpop.xlane.xlu0 %3586
    %v3588 = vsel %vm806, %v3226, 0.0
    %3589 = vadd.xlane.f32.xlu0 %v3588
    %v3590 = vpop.xlane.xlu0 %3589
    %v3591 = vsel %vm806, %v3227, 0.0
    %3592 = vadd.xlane.f32.xlu0 %v3591
    %v3593 = vpop.xlane.xlu0 %3592
    %v3594 = vsel %vm806, %v3228, 0.0
    %3595 = vadd.xlane.f32.xlu0 %v3594
    %v3596 = vpop.xlane.xlu0 %3595
    %v3597 = vsel %vm806, %v3229, 0.0
    %3598 = vadd.xlane.f32.xlu0 %v3597
    %v3599 = vpop.xlane.xlu0 %3598
    %v3600 = vsel %vm806, %v3230, 0.0
    %3601 = vadd.xlane.f32.xlu0 %v3600
    %v3602 = vpop.xlane.xlu0 %3601
    %v3603 = vsel %vm806, %v3231, 0.0
    %3604 = vadd.xlane.f32.xlu0 %v3603
    %v3605 = vpop.xlane.xlu0 %3604
    %v3606 = vsel %vm806, %v3232, 0.0
    %3607 = vadd.xlane.f32.xlu0 %v3606
    %v3608 = vpop.xlane.xlu0 %3607
    %v3609 = vsel %vm885, %v3233, 0.0
    %3610 = vadd.xlane.f32.xlu0 %v3609
    %v3611 = vpop.xlane.xlu0 %3610
    %v3612 = vsel %vm806, %v3234, 0.0
    %3613 = vadd.xlane.f32.xlu0 %v3612
    %v3614 = vpop.xlane.xlu0 %3613
    %v3615 = vsel %vm806, %v3235, 0.0
    %3616 = vadd.xlane.f32.xlu0 %v3615
    %v3617 = vpop.xlane.xlu0 %3616
    %v3618 = vsel %vm806, %v3236, 0.0
    %3619 = vadd.xlane.f32.xlu0 %v3618
    %v3620 = vpop.xlane.xlu0 %3619
    %v3621 = vsel %vm806, %v3237, 0.0
    %3622 = vadd.xlane.f32.xlu0 %v3621
    %v3623 = vpop.xlane.xlu0 %3622
    %v3624 = vsel %vm806, %v3238, 0.0
    %3625 = vadd.xlane.f32.xlu0 %v3624
    %v3626 = vpop.xlane.xlu0 %3625
    %v3627 = vsel %vm806, %v3239, 0.0
    %3628 = vadd.xlane.f32.xlu0 %v3627
    %v3629 = vpop.xlane.xlu0 %3628
    %v3630 = vsel %vm806, %v3240, 0.0
    %3631 = vadd.xlane.f32.xlu0 %v3630
    %v3632 = vpop.xlane.xlu0 %3631
    %v3633 = vsel %vm806, %v3241, 0.0
    %3634 = vadd.xlane.f32.xlu0 %v3633
    %v3635 = vpop.xlane.xlu0 %3634
    %v3636 = vsel %vm806, %v3242, 0.0
    %3637 = vadd.xlane.f32.xlu0 %v3636
    %v3638 = vpop.xlane.xlu0 %3637
    %v3639 = vsel %vm806, %v3243, 0.0
    %3640 = vadd.xlane.f32.xlu0 %v3639
    %v3641 = vpop.xlane.xlu0 %3640
    %v3642 = vsel %vm806, %v3244, 0.0
    %3643 = vadd.xlane.f32.xlu0 %v3642
    %v3644 = vpop.xlane.xlu0 %3643
    %v3645 = vsel %vm806, %v3245, 0.0
    %3646 = vadd.xlane.f32.xlu0 %v3645
    %v3647 = vpop.xlane.xlu0 %3646
    %v3648 = vsel %vm806, %v3246, 0.0
    %3649 = vadd.xlane.f32.xlu0 %v3648
    %v3650 = vpop.xlane.xlu0 %3649
    %v3651 = vsel %vm806, %v3247, 0.0
    %3652 = vadd.xlane.f32.xlu0 %v3651
    %v3653 = vpop.xlane.xlu0 %3652
    %v3654 = vsel %vm806, %v3248, 0.0
    %3655 = vadd.xlane.f32.xlu0 %v3654
    %v3656 = vpop.xlane.xlu0 %3655
    %v3657 = vsel %vm806, %v3249, 0.0
    %3658 = vadd.xlane.f32.xlu0 %v3657
    %v3659 = vpop.xlane.xlu0 %3658
    %v3660 = vsel %vm806, %v3250, 0.0
    %3661 = vadd.xlane.f32.xlu0 %v3660
    %v3662 = vpop.xlane.xlu0 %3661
    %v3663 = vsel %vm806, %v3251, 0.0
    %3664 = vadd.xlane.f32.xlu0 %v3663
    %v3665 = vpop.xlane.xlu0 %3664
    %v3666 = vsel %vm806, %v3252, 0.0
    %3667 = vadd.xlane.f32.xlu0 %v3666
    %v3668 = vpop.xlane.xlu0 %3667
    %v3669 = vsel %vm806, %v3253, 0.0
    %3670 = vadd.xlane.f32.xlu0 %v3669
    %v3671 = vpop.xlane.xlu0 %3670
    %v3672 = vsel %vm806, %v3254, 0.0
    %3673 = vadd.xlane.f32.xlu0 %v3672
    %v3674 = vpop.xlane.xlu0 %3673
    %v3675 = vsel %vm806, %v3255, 0.0
    %3676 = vadd.xlane.f32.xlu0 %v3675
    %v3677 = vpop.xlane.xlu0 %3676
    %v3678 = vsel %vm806, %v3256, 0.0
    %3679 = vadd.xlane.f32.xlu0 %v3678
    %v3680 = vpop.xlane.xlu0 %3679
    %v3681 = vsel %vm806, %v3257, 0.0
    %3682 = vadd.xlane.f32.xlu0 %v3681
    %v3683 = vpop.xlane.xlu0 %3682
    %v3684 = vsel %vm806, %v3258, 0.0
    %3685 = vadd.xlane.f32.xlu0 %v3684
    %v3686 = vpop.xlane.xlu0 %3685
    %v3687 = vsel %vm806, %v3259, 0.0
    %3688 = vadd.xlane.f32.xlu0 %v3687
    %v3689 = vpop.xlane.xlu0 %3688
    %v3690 = vsel %vm885, %v3260, 0.0
    %3691 = vadd.xlane.f32.xlu0 %v3690
    %v3692 = vpop.xlane.xlu0 %3691
    %v3693 = vsel %vm806, %v3261, 0.0
    %3694 = vadd.xlane.f32.xlu0 %v3693
    %v3695 = vpop.xlane.xlu0 %3694
    %v3696 = vsel %vm806, %v3262, 0.0
    %3697 = vadd.xlane.f32.xlu0 %v3696
    %v3698 = vpop.xlane.xlu0 %3697
    %v3699 = vsel %vm806, %v3263, 0.0
    %3700 = vadd.xlane.f32.xlu0 %v3699
    %v3701 = vpop.xlane.xlu0 %3700
    %v3702 = vsel %vm806, %v3264, 0.0
    %3703 = vadd.xlane.f32.xlu0 %v3702
    %v3704 = vpop.xlane.xlu0 %3703
    %v3705 = vsel %vm806, %v3265, 0.0
    %3706 = vadd.xlane.f32.xlu0 %v3705
    %v3707 = vpop.xlane.xlu0 %3706
    %v3708 = vsel %vm806, %v3266, 0.0
    %3709 = vadd.xlane.f32.xlu0 %v3708
    %v3710 = vpop.xlane.xlu0 %3709
    %v3711 = vsel %vm806, %v3267, 0.0
    %3712 = vadd.xlane.f32.xlu0 %v3711
    %v3713 = vpop.xlane.xlu0 %3712
    %v3714 = vsel %vm806, %v3268, 0.0
    %3715 = vadd.xlane.f32.xlu0 %v3714
    %v3716 = vpop.xlane.xlu0 %3715
    %v3717 = vsel %vm806, %v3269, 0.0
    %3718 = vadd.xlane.f32.xlu0 %v3717
    %v3719 = vpop.xlane.xlu0 %3718
    %v3720 = vsel %vm806, %v3270, 0.0
    %3721 = vadd.xlane.f32.xlu0 %v3720
    %v3722 = vpop.xlane.xlu0 %3721
    %v3723 = vsel %vm806, %v3271, 0.0
    %3724 = vadd.xlane.f32.xlu0 %v3723
    %v3725 = vpop.xlane.xlu0 %3724
    %v3726 = vsel %vm806, %v3272, 0.0
    %3727 = vadd.xlane.f32.xlu0 %v3726
    %v3728 = vpop.xlane.xlu0 %3727
    %v3729 = vsel %vm806, %v3273, 0.0
    %3730 = vadd.xlane.f32.xlu0 %v3729
    %v3731 = vpop.xlane.xlu0 %3730
    %v3732 = vsel %vm806, %v3274, 0.0
    %3733 = vadd.xlane.f32.xlu0 %v3732
    %v3734 = vpop.xlane.xlu0 %3733
    %v3735 = vsel %vm806, %v3275, 0.0
    %3736 = vadd.xlane.f32.xlu0 %v3735
    %v3737 = vpop.xlane.xlu0 %3736
    %v3738 = vsel %vm806, %v3276, 0.0
    %3739 = vadd.xlane.f32.xlu0 %v3738
    %v3740 = vpop.xlane.xlu0 %3739
    %v3741 = vsel %vm806, %v3277, 0.0
    %3742 = vadd.xlane.f32.xlu0 %v3741
    %v3743 = vpop.xlane.xlu0 %3742
    %v3744 = vsel %vm806, %v3278, 0.0
    %3745 = vadd.xlane.f32.xlu0 %v3744
    %v3746 = vpop.xlane.xlu0 %3745
    %v3747 = vsel %vm806, %v3279, 0.0
    %3748 = vadd.xlane.f32.xlu0 %v3747
    %v3749 = vpop.xlane.xlu0 %3748
    %v3750 = vsel %vm806, %v3280, 0.0
    %3751 = vadd.xlane.f32.xlu0 %v3750
    %v3752 = vpop.xlane.xlu0 %3751
    %v3753 = vsel %vm806, %v3281, 0.0
    %3754 = vadd.xlane.f32.xlu0 %v3753
    %v3755 = vpop.xlane.xlu0 %3754
    %v3756 = vsel %vm806, %v3282, 0.0
    %3757 = vadd.xlane.f32.xlu0 %v3756
    %v3758 = vpop.xlane.xlu0 %3757
    %v3759 = vsel %vm806, %v3283, 0.0
    %3760 = vadd.xlane.f32.xlu0 %v3759
    %v3761 = vpop.xlane.xlu0 %3760
    %v3762 = vsel %vm806, %v3284, 0.0
    %3763 = vadd.xlane.f32.xlu0 %v3762
    %v3764 = vpop.xlane.xlu0 %3763
    %v3765 = vsel %vm806, %v3285, 0.0
    %3766 = vadd.xlane.f32.xlu0 %v3765
    %v3767 = vpop.xlane.xlu0 %3766
    %v3768 = vsel %vm806, %v3286, 0.0
    %3769 = vadd.xlane.f32.xlu0 %v3768
    %v3770 = vpop.xlane.xlu0 %3769
    %v3771 = vsel %vm885, %v3287, 0.0
    %3772 = vadd.xlane.f32.xlu0 %v3771
    %v3773 = vpop.xlane.xlu0 %3772
    %v3774 = vsel %vm806, %v3288, 0.0
    %3775 = vadd.xlane.f32.xlu0 %v3774
    %v3776 = vpop.xlane.xlu0 %3775
    %v3777 = vsel %vm806, %v3289, 0.0
    %3778 = vadd.xlane.f32.xlu0 %v3777
    %v3779 = vpop.xlane.xlu0 %3778
    %v3780 = vsel %vm806, %v3290, 0.0
    %3781 = vadd.xlane.f32.xlu0 %v3780
    %v3782 = vpop.xlane.xlu0 %3781
    %v3783 = vsel %vm806, %v3291, 0.0
    %3784 = vadd.xlane.f32.xlu0 %v3783
    %v3785 = vpop.xlane.xlu0 %3784
    %v3786 = vsel %vm806, %v3292, 0.0
    %3787 = vadd.xlane.f32.xlu0 %v3786
    %v3788 = vpop.xlane.xlu0 %3787
    %v3789 = vsel %vm806, %v3293, 0.0
    %3790 = vadd.xlane.f32.xlu0 %v3789
    %v3791 = vpop.xlane.xlu0 %3790
    %v3792 = vsel %vm806, %v3294, 0.0
    %3793 = vadd.xlane.f32.xlu0 %v3792
    %v3794 = vpop.xlane.xlu0 %3793
    %v3795 = vsel %vm806, %v3295, 0.0
    %3796 = vadd.xlane.f32.xlu0 %v3795
    %v3797 = vpop.xlane.xlu0 %3796
    %v3798 = vsel %vm806, %v3296, 0.0
    %3799 = vadd.xlane.f32.xlu0 %v3798
    %v3800 = vpop.xlane.xlu0 %3799
    %v3801 = vsel %vm806, %v3297, 0.0
    %3802 = vadd.xlane.f32.xlu0 %v3801
    %v3803 = vpop.xlane.xlu0 %3802
    %v3804 = vsel %vm806, %v3298, 0.0
    %3805 = vadd.xlane.f32.xlu0 %v3804
    %v3806 = vpop.xlane.xlu0 %3805
    %v3807 = vsel %vm806, %v3299, 0.0
    %3808 = vadd.xlane.f32.xlu0 %v3807
    %v3809 = vpop.xlane.xlu0 %3808
    %v3810 = vsel %vm806, %v3300, 0.0
    %3811 = vadd.xlane.f32.xlu0 %v3810
    %v3812 = vpop.xlane.xlu0 %3811
    %v3813 = vsel %vm806, %v3301, 0.0
    %3814 = vadd.xlane.f32.xlu0 %v3813
    %v3815 = vpop.xlane.xlu0 %3814
    %v3816 = vsel %vm806, %v3302, 0.0
    %3817 = vadd.xlane.f32.xlu0 %v3816
    %v3818 = vpop.xlane.xlu0 %3817
    %v3819 = vsel %vm806, %v3303, 0.0
    %3820 = vadd.xlane.f32.xlu0 %v3819
    %v3821 = vpop.xlane.xlu0 %3820
    %v3822 = vsel %vm806, %v3304, 0.0
    %3823 = vadd.xlane.f32.xlu0 %v3822
    %v3824 = vpop.xlane.xlu0 %3823
    %v3825 = vsel %vm806, %v3305, 0.0
    %3826 = vadd.xlane.f32.xlu0 %v3825
    %v3827 = vpop.xlane.xlu0 %3826
    %v3828 = vsel %vm806, %v3306, 0.0
    %3829 = vadd.xlane.f32.xlu0 %v3828
    %v3830 = vpop.xlane.xlu0 %3829
    %v3831 = vsel %vm806, %v3307, 0.0
    %3832 = vadd.xlane.f32.xlu0 %v3831
    %v3833 = vpop.xlane.xlu0 %3832
    %v3834 = vsel %vm806, %v3308, 0.0
    %3835 = vadd.xlane.f32.xlu0 %v3834
    %v3836 = vpop.xlane.xlu0 %3835
    %v3837 = vsel %vm806, %v3309, 0.0
    %3838 = vadd.xlane.f32.xlu0 %v3837
    %v3839 = vpop.xlane.xlu0 %3838
    %v3840 = vsel %vm806, %v3310, 0.0
    %3841 = vadd.xlane.f32.xlu0 %v3840
    %v3842 = vpop.xlane.xlu0 %3841
    %v3843 = vsel %vm806, %v3311, 0.0
    %3844 = vadd.xlane.f32.xlu0 %v3843
    %v3845 = vpop.xlane.xlu0 %3844
    %v3846 = vsel %vm806, %v3312, 0.0
    %3847 = vadd.xlane.f32.xlu0 %v3846
    %v3848 = vpop.xlane.xlu0 %3847
    %v3849 = vsel %vm806, %v3313, 0.0
    %3850 = vadd.xlane.f32.xlu0 %v3849
    %v3851 = vpop.xlane.xlu0 %3850
    %v3852 = vsel %vm885, %v3314, 0.0
    %3853 = vadd.xlane.f32.xlu0 %v3852
    %v3854 = vpop.xlane.xlu0 %3853
    %v3855 = vsel %vm806, %v3315, 0.0
    %3856 = vadd.xlane.f32.xlu0 %v3855
    %v3857 = vpop.xlane.xlu0 %3856
    %v3858 = vsel %vm806, %v3316, 0.0
    %3859 = vadd.xlane.f32.xlu0 %v3858
    %v3860 = vpop.xlane.xlu0 %3859
    %v3861 = vsel %vm806, %v3317, 0.0
    %3862 = vadd.xlane.f32.xlu0 %v3861
    %v3863 = vpop.xlane.xlu0 %3862
    %v3864 = vsel %vm806, %v3318, 0.0
    %3865 = vadd.xlane.f32.xlu0 %v3864
    %v3866 = vpop.xlane.xlu0 %3865
    %v3867 = vsel %vm806, %v3319, 0.0
    %3868 = vadd.xlane.f32.xlu0 %v3867
    %v3869 = vpop.xlane.xlu0 %3868
    %v3870 = vsel %vm806, %v3320, 0.0
    %3871 = vadd.xlane.f32.xlu0 %v3870
    %v3872 = vpop.xlane.xlu0 %3871
    %v3873 = vsel %vm806, %v3321, 0.0
    %3874 = vadd.xlane.f32.xlu0 %v3873
    %v3875 = vpop.xlane.xlu0 %3874
    %v3876 = vsel %vm806, %v3322, 0.0
    %3877 = vadd.xlane.f32.xlu0 %v3876
    %v3878 = vpop.xlane.xlu0 %3877
    %v3879 = vsel %vm806, %v3323, 0.0
    %3880 = vadd.xlane.f32.xlu0 %v3879
    %v3881 = vpop.xlane.xlu0 %3880
    %v3882 = vsel %vm806, %v3324, 0.0
    %3883 = vadd.xlane.f32.xlu0 %v3882
    %v3884 = vpop.xlane.xlu0 %3883
    %v3885 = vsel %vm806, %v3325, 0.0
    %3886 = vadd.xlane.f32.xlu0 %v3885
    %v3887 = vpop.xlane.xlu0 %3886
    %v3888 = vsel %vm806, %v3326, 0.0
    %3889 = vadd.xlane.f32.xlu0 %v3888
    %v3890 = vpop.xlane.xlu0 %3889
    %v3891 = vsel %vm806, %v3327, 0.0
    %3892 = vadd.xlane.f32.xlu0 %v3891
    %v3893 = vpop.xlane.xlu0 %3892
    %v3894 = vsel %vm806, %v3328, 0.0
    %3895 = vadd.xlane.f32.xlu0 %v3894
    %v3896 = vpop.xlane.xlu0 %3895
    %v3897 = vsel %vm806, %v3329, 0.0
    %3898 = vadd.xlane.f32.xlu0 %v3897
    %v3899 = vpop.xlane.xlu0 %3898
    %v3900 = vsel %vm806, %v3330, 0.0
    %3901 = vadd.xlane.f32.xlu0 %v3900
    %v3902 = vpop.xlane.xlu0 %3901
    %v3903 = vsel %vm806, %v3331, 0.0
    %3904 = vadd.xlane.f32.xlu0 %v3903
    %v3905 = vpop.xlane.xlu0 %3904
    %v3906 = vsel %vm806, %v3332, 0.0
    %3907 = vadd.xlane.f32.xlu0 %v3906
    %v3908 = vpop.xlane.xlu0 %3907
    %v3909 = vsel %vm806, %v3333, 0.0
    %3910 = vadd.xlane.f32.xlu0 %v3909
    %v3911 = vpop.xlane.xlu0 %3910
    %v3912 = vsel %vm806, %v3334, 0.0
    %3913 = vadd.xlane.f32.xlu0 %v3912
    %v3914 = vpop.xlane.xlu0 %3913
    %v3915 = vsel %vm806, %v3335, 0.0
    %3916 = vadd.xlane.f32.xlu0 %v3915
    %v3917 = vpop.xlane.xlu0 %3916
    %v3918 = vsel %vm806, %v3336, 0.0
    %3919 = vadd.xlane.f32.xlu0 %v3918
    %v3920 = vpop.xlane.xlu0 %3919
    %v3921 = vsel %vm806, %v3337, 0.0
    %3922 = vadd.xlane.f32.xlu0 %v3921
    %v3923 = vpop.xlane.xlu0 %3922
    %v3924 = vsel %vm806, %v3338, 0.0
    %3925 = vadd.xlane.f32.xlu0 %v3924
    %v3926 = vpop.xlane.xlu0 %3925
    %v3927 = vsel %vm806, %v3339, 0.0
    %3928 = vadd.xlane.f32.xlu0 %v3927
    %v3929 = vpop.xlane.xlu0 %3928
    %v3930 = vsel %vm806, %v3340, 0.0
    %3931 = vadd.xlane.f32.xlu0 %v3930
    %v3932 = vpop.xlane.xlu0 %3931
    %v3933 = vsel %vm885, %v3341, 0.0
    %3934 = vadd.xlane.f32.xlu0 %v3933
    %v3935 = vpop.xlane.xlu0 %3934
    %v3936 = vsel %vm806, %v3342, 0.0
    %3937 = vadd.xlane.f32.xlu0 %v3936
    %v3938 = vpop.xlane.xlu0 %3937
    %v3939 = vsel %vm806, %v3343, 0.0
    %3940 = vadd.xlane.f32.xlu0 %v3939
    %v3941 = vpop.xlane.xlu0 %3940
    %v3942 = vsel %vm806, %v3344, 0.0
    %3943 = vadd.xlane.f32.xlu0 %v3942
    %v3944 = vpop.xlane.xlu0 %3943
    %v3945 = vsel %vm806, %v3345, 0.0
    %3946 = vadd.xlane.f32.xlu0 %v3945
    %v3947 = vpop.xlane.xlu0 %3946
    %v3948 = vsel %vm806, %v3346, 0.0
    %3949 = vadd.xlane.f32.xlu0 %v3948
    %v3950 = vpop.xlane.xlu0 %3949
    %v3951 = vsel %vm806, %v3347, 0.0
    %3952 = vadd.xlane.f32.xlu0 %v3951
    %v3953 = vpop.xlane.xlu0 %3952
    %v3954 = vsel %vm806, %v3348, 0.0
    %3955 = vadd.xlane.f32.xlu0 %v3954
    %v3956 = vpop.xlane.xlu0 %3955
    %v3957 = vsel %vm806, %v3349, 0.0
    %3958 = vadd.xlane.f32.xlu0 %v3957
    %v3959 = vpop.xlane.xlu0 %3958
    %v3960 = vsel %vm806, %v3350, 0.0
    %3961 = vadd.xlane.f32.xlu0 %v3960
    %v3962 = vpop.xlane.xlu0 %3961
    %v3963 = vsel %vm806, %v3351, 0.0
    %3964 = vadd.xlane.f32.xlu0 %v3963
    %v3965 = vpop.xlane.xlu0 %3964
    %v3966 = vsel %vm806, %v3352, 0.0
    %3967 = vadd.xlane.f32.xlu0 %v3966
    %v3968 = vpop.xlane.xlu0 %3967
    %v3969 = vsel %vm806, %v3353, 0.0
    %3970 = vadd.xlane.f32.xlu0 %v3969
    %v3971 = vpop.xlane.xlu0 %3970
    %v3972 = vsel %vm806, %v3354, 0.0
    %3973 = vadd.xlane.f32.xlu0 %v3972
    %v3974 = vpop.xlane.xlu0 %3973
    %v3975 = vsel %vm806, %v3355, 0.0
    %3976 = vadd.xlane.f32.xlu0 %v3975
    %v3977 = vpop.xlane.xlu0 %3976
    %v3978 = vsel %vm806, %v3356, 0.0
    %3979 = vadd.xlane.f32.xlu0 %v3978
    %v3980 = vpop.xlane.xlu0 %3979
    %v3981 = vsel %vm806, %v3357, 0.0
    %3982 = vadd.xlane.f32.xlu0 %v3981
    %v3983 = vpop.xlane.xlu0 %3982
    %v3984 = vsel %vm806, %v3358, 0.0
    %3985 = vadd.xlane.f32.xlu0 %v3984
    %v3986 = vpop.xlane.xlu0 %3985
    %v3987 = vsel %vm806, %v3359, 0.0
    %3988 = vadd.xlane.f32.xlu0 %v3987
    %v3989 = vpop.xlane.xlu0 %3988
    %v3990 = vsel %vm806, %v3360, 0.0
    %3991 = vadd.xlane.f32.xlu0 %v3990
    %v3992 = vpop.xlane.xlu0 %3991
    %v3993 = vsel %vm806, %v3361, 0.0
    %3994 = vadd.xlane.f32.xlu0 %v3993
    %v3995 = vpop.xlane.xlu0 %3994
    %v3996 = vsel %vm806, %v3362, 0.0
    %3997 = vadd.xlane.f32.xlu0 %v3996
    %v3998 = vpop.xlane.xlu0 %3997
    %v3999 = vsel %vm806, %v3363, 0.0
    %4000 = vadd.xlane.f32.xlu0 %v3999
    %v4001 = vpop.xlane.xlu0 %4000
    %v4002 = vsel %vm806, %v3364, 0.0
    %4003 = vadd.xlane.f32.xlu0 %v4002
    %v4004 = vpop.xlane.xlu0 %4003
    %v4005 = vsel %vm806, %v3365, 0.0
    %4006 = vadd.xlane.f32.xlu0 %v4005
    %v4007 = vpop.xlane.xlu0 %4006
    %v4008 = vsel %vm806, %v3366, 0.0
    %4009 = vadd.xlane.f32.xlu0 %v4008
    %v4010 = vpop.xlane.xlu0 %4009
    %v4011 = vsel %vm806, %v3367, 0.0
    %4012 = vadd.xlane.f32.xlu0 %v4011
    %v4013 = vpop.xlane.xlu0 %4012
    %v4014 = vsel %vm885, %v3368, 0.0
    %4015 = vadd.xlane.f32.xlu0 %v4014
    %v4016 = vpop.xlane.xlu0 %4015
    %v4233 = vlaneseq
    %v4234 = vshrl.u32 %v4233, 7
    %v4235 = vsub.s32 %v1673, %v4234
    %v4236 = vrot.slane %v3371, %v4235
    %v4237 = vlaneseq
    %v4238 = vshrl.u32 %v4237, 7
    %v4239 = vsub.s32 %v1678, %v4238
    %v4240 = vrot.slane %v3374, %v4239
    %v4241 = vsel %vm1683, %v4240, %v4236
    %v4242 = vlaneseq
    %v4243 = vshrl.u32 %v4242, 7
    %v4244 = vsub.s32 %v1685, %v4243
    %v4245 = vrot.slane %v3377, %v4244
    %v4246 = vsel %vm1690, %v4245, %v4241
    %v4247 = vlaneseq
    %v4248 = vshrl.u32 %v4247, 7
    %v4249 = vsub.s32 %v1692, %v4248
    %v4250 = vrot.slane %v3380, %v4249
    %v4251 = vsel %vm1697, %v4250, %v4246
    %v4252 = vlaneseq
    %v4253 = vshrl.u32 %v4252, 7
    %v4254 = vsub.s32 %v1699, %v4253
    %v4255 = vrot.slane %v3383, %v4254
    %v4256 = vsel %vm1704, %v4255, %v4251
    %v4257 = vlaneseq
    %v4258 = vshrl.u32 %v4257, 7
    %v4259 = vsub.s32 %v1706, %v4258
    %v4260 = vrot.slane %v3386, %v4259
    %v4261 = vsel %vm1711, %v4260, %v4256
    %v4262 = vlaneseq
    %v4263 = vshrl.u32 %v4262, 7
    %v4264 = vsub.s32 %v1713, %v4263
    %v4265 = vrot.slane %v3389, %v4264
    %v4266 = vsel %vm1718, %v4265, %v4261
    %v4267 = vlaneseq
    %v4268 = vshrl.u32 %v4267, 7
    %v4269 = vsub.s32 %v1720, %v4268
    %v4270 = vrot.slane %v3392, %v4269
    %v4271 = vsel %vm1725, %v4270, %v4266
    %v4272 = vlaneseq
    %v4273 = vshrl.u32 %v4272, 7
    %v4274 = vsub.s32 %v1727, %v4273
    %v4275 = vrot.slane %v3395, %v4274
    %v4276 = vsel %vm1732, %v4275, %v4271
    %v4277 = vlaneseq
    %v4278 = vshrl.u32 %v4277, 7
    %v4279 = vsub.s32 %v1734, %v4278
    %v4280 = vrot.slane %v3398, %v4279
    %v4281 = vsel %vm1739, %v4280, %v4276
    %v4282 = vlaneseq
    %v4283 = vshrl.u32 %v4282, 7
    %v4284 = vsub.s32 %v1741, %v4283
    %v4285 = vrot.slane %v3401, %v4284
    %v4286 = vsel %vm1746, %v4285, %v4281
    %v4287 = vlaneseq
    %v4288 = vshrl.u32 %v4287, 7
    %v4289 = vsub.s32 %v1748, %v4288
    %v4290 = vrot.slane %v3404, %v4289
    %v4291 = vsel %vm1753, %v4290, %v4286
    %v4292 = vlaneseq
    %v4293 = vshrl.u32 %v4292, 7
    %v4294 = vsub.s32 %v1755, %v4293
    %v4295 = vrot.slane %v3407, %v4294
    %v4296 = vsel %vm1760, %v4295, %v4291
    %v4297 = vlaneseq
    %v4298 = vshrl.u32 %v4297, 7
    %v4299 = vsub.s32 %v1762, %v4298
    %v4300 = vrot.slane %v3410, %v4299
    %v4301 = vsel %vm1767, %v4300, %v4296
    %v4302 = vlaneseq
    %v4303 = vshrl.u32 %v4302, 7
    %v4304 = vsub.s32 %v1769, %v4303
    %v4305 = vrot.slane %v3413, %v4304
    %v4306 = vsel %vm1774, %v4305, %v4301
    %v4307 = vlaneseq
    %v4308 = vshrl.u32 %v4307, 7
    %v4309 = vsub.s32 %v1776, %v4308
    %v4310 = vrot.slane %v3416, %v4309
    %v4311 = vsel %vm1781, %v4310, %v4306
    %v4312 = vlaneseq
    %v4313 = vshrl.u32 %v4312, 7
    %v4314 = vsub.s32 %v1673, %v4313
    %v4315 = vrot.slane %v3419, %v4314
    %v4316 = vlaneseq
    %v4317 = vshrl.u32 %v4316, 7
    %v4318 = vsub.s32 %v1678, %v4317
    %v4319 = vrot.slane %v3422, %v4318
    %v4320 = vsel %vm1683, %v4319, %v4315
    %v4321 = vlaneseq
    %v4322 = vshrl.u32 %v4321, 7
    %v4323 = vsub.s32 %v1685, %v4322
    %v4324 = vrot.slane %v3425, %v4323
    %v4325 = vsel %vm1690, %v4324, %v4320
    %v4326 = vlaneseq
    %v4327 = vshrl.u32 %v4326, 7
    %v4328 = vsub.s32 %v1692, %v4327
    %v4329 = vrot.slane %v3428, %v4328
    %v4330 = vsel %vm1697, %v4329, %v4325
    %v4331 = vlaneseq
    %v4332 = vshrl.u32 %v4331, 7
    %v4333 = vsub.s32 %v1699, %v4332
    %v4334 = vrot.slane %v3431, %v4333
    %v4335 = vsel %vm1704, %v4334, %v4330
    %v4336 = vlaneseq
    %v4337 = vshrl.u32 %v4336, 7
    %v4338 = vsub.s32 %v1706, %v4337
    %v4339 = vrot.slane %v3434, %v4338
    %v4340 = vsel %vm1711, %v4339, %v4335
    %v4341 = vlaneseq
    %v4342 = vshrl.u32 %v4341, 7
    %v4343 = vsub.s32 %v1713, %v4342
    %v4344 = vrot.slane %v3437, %v4343
    %v4345 = vsel %vm1718, %v4344, %v4340
    %v4346 = vlaneseq
    %v4347 = vshrl.u32 %v4346, 7
    %v4348 = vsub.s32 %v1720, %v4347
    %v4349 = vrot.slane %v3440, %v4348
    %v4350 = vsel %vm1725, %v4349, %v4345
    %v4351 = vlaneseq
    %v4352 = vshrl.u32 %v4351, 7
    %v4353 = vsub.s32 %v1727, %v4352
    %v4354 = vrot.slane %v3443, %v4353
    %v4355 = vsel %vm1732, %v4354, %v4350
    %v4356 = vlaneseq
    %v4357 = vshrl.u32 %v4356, 7
    %v4358 = vsub.s32 %v1734, %v4357
    %v4359 = vrot.slane %v3446, %v4358
    %v4360 = vsel %vm1739, %v4359, %v4355
    %v4361 = vlaneseq
    %v4362 = vshrl.u32 %v4361, 7
    %v4363 = vsub.s32 %v1741, %v4362
    %v4364 = vrot.slane %v3449, %v4363
    %v4365 = vsel %vm1746, %v4364, %v4360
    %v4366 = vlaneseq
    %v4367 = vshrl.u32 %v4366, 7
    %v4368 = vsub.s32 %v1673, %v4367
    %v4369 = vrot.slane %v3452, %v4368
    %v4370 = vlaneseq
    %v4371 = vshrl.u32 %v4370, 7
    %v4372 = vsub.s32 %v1678, %v4371
    %v4373 = vrot.slane %v3455, %v4372
    %v4374 = vsel %vm1683, %v4373, %v4369
    %v4375 = vlaneseq
    %v4376 = vshrl.u32 %v4375, 7
    %v4377 = vsub.s32 %v1685, %v4376
    %v4378 = vrot.slane %v3458, %v4377
    %v4379 = vsel %vm1690, %v4378, %v4374
    %v4380 = vlaneseq
    %v4381 = vshrl.u32 %v4380, 7
    %v4382 = vsub.s32 %v1692, %v4381
    %v4383 = vrot.slane %v3461, %v4382
    %v4384 = vsel %vm1697, %v4383, %v4379
    %v4385 = vlaneseq
    %v4386 = vshrl.u32 %v4385, 7
    %v4387 = vsub.s32 %v1699, %v4386
    %v4388 = vrot.slane %v3464, %v4387
    %v4389 = vsel %vm1704, %v4388, %v4384
    %v4390 = vlaneseq
    %v4391 = vshrl.u32 %v4390, 7
    %v4392 = vsub.s32 %v1706, %v4391
    %v4393 = vrot.slane %v3467, %v4392
    %v4394 = vsel %vm1711, %v4393, %v4389
    %v4395 = vlaneseq
    %v4396 = vshrl.u32 %v4395, 7
    %v4397 = vsub.s32 %v1713, %v4396
    %v4398 = vrot.slane %v3470, %v4397
    %v4399 = vsel %vm1718, %v4398, %v4394
    %v4400 = vlaneseq
    %v4401 = vshrl.u32 %v4400, 7
    %v4402 = vsub.s32 %v1720, %v4401
    %v4403 = vrot.slane %v3473, %v4402
    %v4404 = vsel %vm1725, %v4403, %v4399
    %v4405 = vlaneseq
    %v4406 = vshrl.u32 %v4405, 7
    %v4407 = vsub.s32 %v1727, %v4406
    %v4408 = vrot.slane %v3476, %v4407
    %v4409 = vsel %vm1732, %v4408, %v4404
    %v4410 = vlaneseq
    %v4411 = vshrl.u32 %v4410, 7
    %v4412 = vsub.s32 %v1734, %v4411
    %v4413 = vrot.slane %v3479, %v4412
    %v4414 = vsel %vm1739, %v4413, %v4409
    %v4415 = vlaneseq
    %v4416 = vshrl.u32 %v4415, 7
    %v4417 = vsub.s32 %v1741, %v4416
    %v4418 = vrot.slane %v3482, %v4417
    %v4419 = vsel %vm1746, %v4418, %v4414
    %v4420 = vlaneseq
    %v4421 = vshrl.u32 %v4420, 7
    %v4422 = vsub.s32 %v1748, %v4421
    %v4423 = vrot.slane %v3485, %v4422
    %v4424 = vsel %vm1753, %v4423, %v4419
    %v4425 = vlaneseq
    %v4426 = vshrl.u32 %v4425, 7
    %v4427 = vsub.s32 %v1755, %v4426
    %v4428 = vrot.slane %v3488, %v4427
    %v4429 = vsel %vm1760, %v4428, %v4424
    %v4430 = vlaneseq
    %v4431 = vshrl.u32 %v4430, 7
    %v4432 = vsub.s32 %v1762, %v4431
    %v4433 = vrot.slane %v3491, %v4432
    %v4434 = vsel %vm1767, %v4433, %v4429
    %v4435 = vlaneseq
    %v4436 = vshrl.u32 %v4435, 7
    %v4437 = vsub.s32 %v1769, %v4436
    %v4438 = vrot.slane %v3494, %v4437
    %v4439 = vsel %vm1774, %v4438, %v4434
    %v4440 = vlaneseq
    %v4441 = vshrl.u32 %v4440, 7
    %v4442 = vsub.s32 %v1776, %v4441
    %v4443 = vrot.slane %v3497, %v4442
    %v4444 = vsel %vm1781, %v4443, %v4439
    %v4445 = vlaneseq
    %v4446 = vshrl.u32 %v4445, 7
    %v4447 = vsub.s32 %v1673, %v4446
    %v4448 = vrot.slane %v3500, %v4447
    %v4449 = vlaneseq
    %v4450 = vshrl.u32 %v4449, 7
    %v4451 = vsub.s32 %v1678, %v4450
    %v4452 = vrot.slane %v3503, %v4451
    %v4453 = vsel %vm1683, %v4452, %v4448
    %v4454 = vlaneseq
    %v4455 = vshrl.u32 %v4454, 7
    %v4456 = vsub.s32 %v1685, %v4455
    %v4457 = vrot.slane %v3506, %v4456
    %v4458 = vsel %vm1690, %v4457, %v4453
    %v4459 = vlaneseq
    %v4460 = vshrl.u32 %v4459, 7
    %v4461 = vsub.s32 %v1692, %v4460
    %v4462 = vrot.slane %v3509, %v4461
    %v4463 = vsel %vm1697, %v4462, %v4458
    %v4464 = vlaneseq
    %v4465 = vshrl.u32 %v4464, 7
    %v4466 = vsub.s32 %v1699, %v4465
    %v4467 = vrot.slane %v3512, %v4466
    %v4468 = vsel %vm1704, %v4467, %v4463
    %v4469 = vlaneseq
    %v4470 = vshrl.u32 %v4469, 7
    %v4471 = vsub.s32 %v1706, %v4470
    %v4472 = vrot.slane %v3515, %v4471
    %v4473 = vsel %vm1711, %v4472, %v4468
    %v4474 = vlaneseq
    %v4475 = vshrl.u32 %v4474, 7
    %v4476 = vsub.s32 %v1713, %v4475
    %v4477 = vrot.slane %v3518, %v4476
    %v4478 = vsel %vm1718, %v4477, %v4473
    %v4479 = vlaneseq
    %v4480 = vshrl.u32 %v4479, 7
    %v4481 = vsub.s32 %v1720, %v4480
    %v4482 = vrot.slane %v3521, %v4481
    %v4483 = vsel %vm1725, %v4482, %v4478
    %v4484 = vlaneseq
    %v4485 = vshrl.u32 %v4484, 7
    %v4486 = vsub.s32 %v1727, %v4485
    %v4487 = vrot.slane %v3524, %v4486
    %v4488 = vsel %vm1732, %v4487, %v4483
    %v4489 = vlaneseq
    %v4490 = vshrl.u32 %v4489, 7
    %v4491 = vsub.s32 %v1734, %v4490
    %v4492 = vrot.slane %v3527, %v4491
    %v4493 = vsel %vm1739, %v4492, %v4488
    %v4494 = vlaneseq
    %v4495 = vshrl.u32 %v4494, 7
    %v4496 = vsub.s32 %v1741, %v4495
    %v4497 = vrot.slane %v3530, %v4496
    %v4498 = vsel %vm1746, %v4497, %v4493
    %v4499 = vlaneseq
    %v4500 = vshrl.u32 %v4499, 7
    %v4501 = vsub.s32 %v1673, %v4500
    %v4502 = vrot.slane %v3533, %v4501
    %v4503 = vlaneseq
    %v4504 = vshrl.u32 %v4503, 7
    %v4505 = vsub.s32 %v1678, %v4504
    %v4506 = vrot.slane %v3536, %v4505
    %v4507 = vsel %vm1683, %v4506, %v4502
    %v4508 = vlaneseq
    %v4509 = vshrl.u32 %v4508, 7
    %v4510 = vsub.s32 %v1685, %v4509
    %v4511 = vrot.slane %v3539, %v4510
    %v4512 = vsel %vm1690, %v4511, %v4507
    %v4513 = vlaneseq
    %v4514 = vshrl.u32 %v4513, 7
    %v4515 = vsub.s32 %v1692, %v4514
    %v4516 = vrot.slane %v3542, %v4515
    %v4517 = vsel %vm1697, %v4516, %v4512
    %v4518 = vlaneseq
    %v4519 = vshrl.u32 %v4518, 7
    %v4520 = vsub.s32 %v1699, %v4519
    %v4521 = vrot.slane %v3545, %v4520
    %v4522 = vsel %vm1704, %v4521, %v4517
    %v4523 = vlaneseq
    %v4524 = vshrl.u32 %v4523, 7
    %v4525 = vsub.s32 %v1706, %v4524
    %v4526 = vrot.slane %v3548, %v4525
    %v4527 = vsel %vm1711, %v4526, %v4522
    %v4528 = vlaneseq
    %v4529 = vshrl.u32 %v4528, 7
    %v4530 = vsub.s32 %v1713, %v4529
    %v4531 = vrot.slane %v3551, %v4530
    %v4532 = vsel %vm1718, %v4531, %v4527
    %v4533 = vlaneseq
    %v4534 = vshrl.u32 %v4533, 7
    %v4535 = vsub.s32 %v1720, %v4534
    %v4536 = vrot.slane %v3554, %v4535
    %v4537 = vsel %vm1725, %v4536, %v4532
    %v4538 = vlaneseq
    %v4539 = vshrl.u32 %v4538, 7
    %v4540 = vsub.s32 %v1727, %v4539
    %v4541 = vrot.slane %v3557, %v4540
    %v4542 = vsel %vm1732, %v4541, %v4537
    %v4543 = vlaneseq
    %v4544 = vshrl.u32 %v4543, 7
    %v4545 = vsub.s32 %v1734, %v4544
    %v4546 = vrot.slane %v3560, %v4545
    %v4547 = vsel %vm1739, %v4546, %v4542
    %v4548 = vlaneseq
    %v4549 = vshrl.u32 %v4548, 7
    %v4550 = vsub.s32 %v1741, %v4549
    %v4551 = vrot.slane %v3563, %v4550
    %v4552 = vsel %vm1746, %v4551, %v4547
    %v4553 = vlaneseq
    %v4554 = vshrl.u32 %v4553, 7
    %v4555 = vsub.s32 %v1748, %v4554
    %v4556 = vrot.slane %v3566, %v4555
    %v4557 = vsel %vm1753, %v4556, %v4552
    %v4558 = vlaneseq
    %v4559 = vshrl.u32 %v4558, 7
    %v4560 = vsub.s32 %v1755, %v4559
    %v4561 = vrot.slane %v3569, %v4560
    %v4562 = vsel %vm1760, %v4561, %v4557
    %v4563 = vlaneseq
    %v4564 = vshrl.u32 %v4563, 7
    %v4565 = vsub.s32 %v1762, %v4564
    %v4566 = vrot.slane %v3572, %v4565
    %v4567 = vsel %vm1767, %v4566, %v4562
    %v4568 = vlaneseq
    %v4569 = vshrl.u32 %v4568, 7
    %v4570 = vsub.s32 %v1769, %v4569
    %v4571 = vrot.slane %v3575, %v4570
    %v4572 = vsel %vm1774, %v4571, %v4567
    %v4573 = vlaneseq
    %v4574 = vshrl.u32 %v4573, 7
    %v4575 = vsub.s32 %v1776, %v4574
    %v4576 = vrot.slane %v3578, %v4575
    %v4577 = vsel %vm1781, %v4576, %v4572
    %v4578 = vlaneseq
    %v4579 = vshrl.u32 %v4578, 7
    %v4580 = vsub.s32 %v1673, %v4579
    %v4581 = vrot.slane %v3581, %v4580
    %v4582 = vlaneseq
    %v4583 = vshrl.u32 %v4582, 7
    %v4584 = vsub.s32 %v1678, %v4583
    %v4585 = vrot.slane %v3584, %v4584
    %v4586 = vsel %vm1683, %v4585, %v4581
    %v4587 = vlaneseq
    %v4588 = vshrl.u32 %v4587, 7
    %v4589 = vsub.s32 %v1685, %v4588
    %v4590 = vrot.slane %v3587, %v4589
    %v4591 = vsel %vm1690, %v4590, %v4586
    %v4592 = vlaneseq
    %v4593 = vshrl.u32 %v4592, 7
    %v4594 = vsub.s32 %v1692, %v4593
    %v4595 = vrot.slane %v3590, %v4594
    %v4596 = vsel %vm1697, %v4595, %v4591
    %v4597 = vlaneseq
    %v4598 = vshrl.u32 %v4597, 7
    %v4599 = vsub.s32 %v1699, %v4598
    %v4600 = vrot.slane %v3593, %v4599
    %v4601 = vsel %vm1704, %v4600, %v4596
    %v4602 = vlaneseq
    %v4603 = vshrl.u32 %v4602, 7
    %v4604 = vsub.s32 %v1706, %v4603
    %v4605 = vrot.slane %v3596, %v4604
    %v4606 = vsel %vm1711, %v4605, %v4601
    %v4607 = vlaneseq
    %v4608 = vshrl.u32 %v4607, 7
    %v4609 = vsub.s32 %v1713, %v4608
    %v4610 = vrot.slane %v3599, %v4609
    %v4611 = vsel %vm1718, %v4610, %v4606
    %v4612 = vlaneseq
    %v4613 = vshrl.u32 %v4612, 7
    %v4614 = vsub.s32 %v1720, %v4613
    %v4615 = vrot.slane %v3602, %v4614
    %v4616 = vsel %vm1725, %v4615, %v4611
    %v4617 = vlaneseq
    %v4618 = vshrl.u32 %v4617, 7
    %v4619 = vsub.s32 %v1727, %v4618
    %v4620 = vrot.slane %v3605, %v4619
    %v4621 = vsel %vm1732, %v4620, %v4616
    %v4622 = vlaneseq
    %v4623 = vshrl.u32 %v4622, 7
    %v4624 = vsub.s32 %v1734, %v4623
    %v4625 = vrot.slane %v3608, %v4624
    %v4626 = vsel %vm1739, %v4625, %v4621
    %v4627 = vlaneseq
    %v4628 = vshrl.u32 %v4627, 7
    %v4629 = vsub.s32 %v1741, %v4628
    %v4630 = vrot.slane %v3611, %v4629
    %v4631 = vsel %vm1746, %v4630, %v4626
    %v4632 = vlaneseq
    %v4633 = vshrl.u32 %v4632, 7
    %v4634 = vsub.s32 %v1673, %v4633
    %v4635 = vrot.slane %v3614, %v4634
    %v4636 = vlaneseq
    %v4637 = vshrl.u32 %v4636, 7
    %v4638 = vsub.s32 %v1678, %v4637
    %v4639 = vrot.slane %v3617, %v4638
    %v4640 = vsel %vm1683, %v4639, %v4635
    %v4641 = vlaneseq
    %v4642 = vshrl.u32 %v4641, 7
    %v4643 = vsub.s32 %v1685, %v4642
    %v4644 = vrot.slane %v3620, %v4643
    %v4645 = vsel %vm1690, %v4644, %v4640
    %v4646 = vlaneseq
    %v4647 = vshrl.u32 %v4646, 7
    %v4648 = vsub.s32 %v1692, %v4647
    %v4649 = vrot.slane %v3623, %v4648
    %v4650 = vsel %vm1697, %v4649, %v4645
    %v4651 = vlaneseq
    %v4652 = vshrl.u32 %v4651, 7
    %v4653 = vsub.s32 %v1699, %v4652
    %v4654 = vrot.slane %v3626, %v4653
    %v4655 = vsel %vm1704, %v4654, %v4650
    %v4656 = vlaneseq
    %v4657 = vshrl.u32 %v4656, 7
    %v4658 = vsub.s32 %v1706, %v4657
    %v4659 = vrot.slane %v3629, %v4658
    %v4660 = vsel %vm1711, %v4659, %v4655
    %v4661 = vlaneseq
    %v4662 = vshrl.u32 %v4661, 7
    %v4663 = vsub.s32 %v1713, %v4662
    %v4664 = vrot.slane %v3632, %v4663
    %v4665 = vsel %vm1718, %v4664, %v4660
    %v4666 = vlaneseq
    %v4667 = vshrl.u32 %v4666, 7
    %v4668 = vsub.s32 %v1720, %v4667
    %v4669 = vrot.slane %v3635, %v4668
    %v4670 = vsel %vm1725, %v4669, %v4665
    %v4671 = vlaneseq
    %v4672 = vshrl.u32 %v4671, 7
    %v4673 = vsub.s32 %v1727, %v4672
    %v4674 = vrot.slane %v3638, %v4673
    %v4675 = vsel %vm1732, %v4674, %v4670
    %v4676 = vlaneseq
    %v4677 = vshrl.u32 %v4676, 7
    %v4678 = vsub.s32 %v1734, %v4677
    %v4679 = vrot.slane %v3641, %v4678
    %v4680 = vsel %vm1739, %v4679, %v4675
    %v4681 = vlaneseq
    %v4682 = vshrl.u32 %v4681, 7
    %v4683 = vsub.s32 %v1741, %v4682
    %v4684 = vrot.slane %v3644, %v4683
    %v4685 = vsel %vm1746, %v4684, %v4680
    %v4686 = vlaneseq
    %v4687 = vshrl.u32 %v4686, 7
    %v4688 = vsub.s32 %v1748, %v4687
    %v4689 = vrot.slane %v3647, %v4688
    %v4690 = vsel %vm1753, %v4689, %v4685
    %v4691 = vlaneseq
    %v4692 = vshrl.u32 %v4691, 7
    %v4693 = vsub.s32 %v1755, %v4692
    %v4694 = vrot.slane %v3650, %v4693
    %v4695 = vsel %vm1760, %v4694, %v4690
    %v4696 = vlaneseq
    %v4697 = vshrl.u32 %v4696, 7
    %v4698 = vsub.s32 %v1762, %v4697
    %v4699 = vrot.slane %v3653, %v4698
    %v4700 = vsel %vm1767, %v4699, %v4695
    %v4701 = vlaneseq
    %v4702 = vshrl.u32 %v4701, 7
    %v4703 = vsub.s32 %v1769, %v4702
    %v4704 = vrot.slane %v3656, %v4703
    %v4705 = vsel %vm1774, %v4704, %v4700
    %v4706 = vlaneseq
    %v4707 = vshrl.u32 %v4706, 7
    %v4708 = vsub.s32 %v1776, %v4707
    %v4709 = vrot.slane %v3659, %v4708
    %v4710 = vsel %vm1781, %v4709, %v4705
    %v4711 = vlaneseq
    %v4712 = vshrl.u32 %v4711, 7
    %v4713 = vsub.s32 %v1673, %v4712
    %v4714 = vrot.slane %v3662, %v4713
    %v4715 = vlaneseq
    %v4716 = vshrl.u32 %v4715, 7
    %v4717 = vsub.s32 %v1678, %v4716
    %v4718 = vrot.slane %v3665, %v4717
    %v4719 = vsel %vm1683, %v4718, %v4714
    %v4720 = vlaneseq
    %v4721 = vshrl.u32 %v4720, 7
    %v4722 = vsub.s32 %v1685, %v4721
    %v4723 = vrot.slane %v3668, %v4722
    %v4724 = vsel %vm1690, %v4723, %v4719
    %v4725 = vlaneseq
    %v4726 = vshrl.u32 %v4725, 7
    %v4727 = vsub.s32 %v1692, %v4726
    %v4728 = vrot.slane %v3671, %v4727
    %v4729 = vsel %vm1697, %v4728, %v4724
    %v4730 = vlaneseq
    %v4731 = vshrl.u32 %v4730, 7
    %v4732 = vsub.s32 %v1699, %v4731
    %v4733 = vrot.slane %v3674, %v4732
    %v4734 = vsel %vm1704, %v4733, %v4729
    %v4735 = vlaneseq
    %v4736 = vshrl.u32 %v4735, 7
    %v4737 = vsub.s32 %v1706, %v4736
    %v4738 = vrot.slane %v3677, %v4737
    %v4739 = vsel %vm1711, %v4738, %v4734
    %v4740 = vlaneseq
    %v4741 = vshrl.u32 %v4740, 7
    %v4742 = vsub.s32 %v1713, %v4741
    %v4743 = vrot.slane %v3680, %v4742
    %v4744 = vsel %vm1718, %v4743, %v4739
    %v4745 = vlaneseq
    %v4746 = vshrl.u32 %v4745, 7
    %v4747 = vsub.s32 %v1720, %v4746
    %v4748 = vrot.slane %v3683, %v4747
    %v4749 = vsel %vm1725, %v4748, %v4744
    %v4750 = vlaneseq
    %v4751 = vshrl.u32 %v4750, 7
    %v4752 = vsub.s32 %v1727, %v4751
    %v4753 = vrot.slane %v3686, %v4752
    %v4754 = vsel %vm1732, %v4753, %v4749
    %v4755 = vlaneseq
    %v4756 = vshrl.u32 %v4755, 7
    %v4757 = vsub.s32 %v1734, %v4756
    %v4758 = vrot.slane %v3689, %v4757
    %v4759 = vsel %vm1739, %v4758, %v4754
    %v4760 = vlaneseq
    %v4761 = vshrl.u32 %v4760, 7
    %v4762 = vsub.s32 %v1741, %v4761
    %v4763 = vrot.slane %v3692, %v4762
    %v4764 = vsel %vm1746, %v4763, %v4759
    %v4765 = vlaneseq
    %v4766 = vshrl.u32 %v4765, 7
    %v4767 = vsub.s32 %v1673, %v4766
    %v4768 = vrot.slane %v3695, %v4767
    %v4769 = vlaneseq
    %v4770 = vshrl.u32 %v4769, 7
    %v4771 = vsub.s32 %v1678, %v4770
    %v4772 = vrot.slane %v3698, %v4771
    %v4773 = vsel %vm1683, %v4772, %v4768
    %v4774 = vlaneseq
    %v4775 = vshrl.u32 %v4774, 7
    %v4776 = vsub.s32 %v1685, %v4775
    %v4777 = vrot.slane %v3701, %v4776
    %v4778 = vsel %vm1690, %v4777, %v4773
    %v4779 = vlaneseq
    %v4780 = vshrl.u32 %v4779, 7
    %v4781 = vsub.s32 %v1692, %v4780
    %v4782 = vrot.slane %v3704, %v4781
    %v4783 = vsel %vm1697, %v4782, %v4778
    %v4784 = vlaneseq
    %v4785 = vshrl.u32 %v4784, 7
    %v4786 = vsub.s32 %v1699, %v4785
    %v4787 = vrot.slane %v3707, %v4786
    %v4788 = vsel %vm1704, %v4787, %v4783
    %v4789 = vlaneseq
    %v4790 = vshrl.u32 %v4789, 7
    %v4791 = vsub.s32 %v1706, %v4790
    %v4792 = vrot.slane %v3710, %v4791
    %v4793 = vsel %vm1711, %v4792, %v4788
    %v4794 = vlaneseq
    %v4795 = vshrl.u32 %v4794, 7
    %v4796 = vsub.s32 %v1713, %v4795
    %v4797 = vrot.slane %v3713, %v4796
    %v4798 = vsel %vm1718, %v4797, %v4793
    %v4799 = vlaneseq
    %v4800 = vshrl.u32 %v4799, 7
    %v4801 = vsub.s32 %v1720, %v4800
    %v4802 = vrot.slane %v3716, %v4801
    %v4803 = vsel %vm1725, %v4802, %v4798
    %v4804 = vlaneseq
    %v4805 = vshrl.u32 %v4804, 7
    %v4806 = vsub.s32 %v1727, %v4805
    %v4807 = vrot.slane %v3719, %v4806
    %v4808 = vsel %vm1732, %v4807, %v4803
    %v4809 = vlaneseq
    %v4810 = vshrl.u32 %v4809, 7
    %v4811 = vsub.s32 %v1734, %v4810
    %v4812 = vrot.slane %v3722, %v4811
    %v4813 = vsel %vm1739, %v4812, %v4808
    %v4814 = vlaneseq
    %v4815 = vshrl.u32 %v4814, 7
    %v4816 = vsub.s32 %v1741, %v4815
    %v4817 = vrot.slane %v3725, %v4816
    %v4818 = vsel %vm1746, %v4817, %v4813
    %v4819 = vlaneseq
    %v4820 = vshrl.u32 %v4819, 7
    %v4821 = vsub.s32 %v1748, %v4820
    %v4822 = vrot.slane %v3728, %v4821
    %v4823 = vsel %vm1753, %v4822, %v4818
    %v4824 = vlaneseq
    %v4825 = vshrl.u32 %v4824, 7
    %v4826 = vsub.s32 %v1755, %v4825
    %v4827 = vrot.slane %v3731, %v4826
    %v4828 = vsel %vm1760, %v4827, %v4823
    %v4829 = vlaneseq
    %v4830 = vshrl.u32 %v4829, 7
    %v4831 = vsub.s32 %v1762, %v4830
    %v4832 = vrot.slane %v3734, %v4831
    %v4833 = vsel %vm1767, %v4832, %v4828
    %v4834 = vlaneseq
    %v4835 = vshrl.u32 %v4834, 7
    %v4836 = vsub.s32 %v1769, %v4835
    %v4837 = vrot.slane %v3737, %v4836
    %v4838 = vsel %vm1774, %v4837, %v4833
    %v4839 = vlaneseq
    %v4840 = vshrl.u32 %v4839, 7
    %v4841 = vsub.s32 %v1776, %v4840
    %v4842 = vrot.slane %v3740, %v4841
    %v4843 = vsel %vm1781, %v4842, %v4838
    %v4844 = vlaneseq
    %v4845 = vshrl.u32 %v4844, 7
    %v4846 = vsub.s32 %v1673, %v4845
    %v4847 = vrot.slane %v3743, %v4846
    %v4848 = vlaneseq
    %v4849 = vshrl.u32 %v4848, 7
    %v4850 = vsub.s32 %v1678, %v4849
    %v4851 = vrot.slane %v3746, %v4850
    %v4852 = vsel %vm1683, %v4851, %v4847
    %v4853 = vlaneseq
    %v4854 = vshrl.u32 %v4853, 7
    %v4855 = vsub.s32 %v1685, %v4854
    %v4856 = vrot.slane %v3749, %v4855
    %v4857 = vsel %vm1690, %v4856, %v4852
    %v4858 = vlaneseq
    %v4859 = vshrl.u32 %v4858, 7
    %v4860 = vsub.s32 %v1692, %v4859
    %v4861 = vrot.slane %v3752, %v4860
    %v4862 = vsel %vm1697, %v4861, %v4857
    %v4863 = vlaneseq
    %v4864 = vshrl.u32 %v4863, 7
    %v4865 = vsub.s32 %v1699, %v4864
    %v4866 = vrot.slane %v3755, %v4865
    %v4867 = vsel %vm1704, %v4866, %v4862
    %v4868 = vlaneseq
    %v4869 = vshrl.u32 %v4868, 7
    %v4870 = vsub.s32 %v1706, %v4869
    %v4871 = vrot.slane %v3758, %v4870
    %v4872 = vsel %vm1711, %v4871, %v4867
    %v4873 = vlaneseq
    %v4874 = vshrl.u32 %v4873, 7
    %v4875 = vsub.s32 %v1713, %v4874
    %v4876 = vrot.slane %v3761, %v4875
    %v4877 = vsel %vm1718, %v4876, %v4872
    %v4878 = vlaneseq
    %v4879 = vshrl.u32 %v4878, 7
    %v4880 = vsub.s32 %v1720, %v4879
    %v4881 = vrot.slane %v3764, %v4880
    %v4882 = vsel %vm1725, %v4881, %v4877
    %v4883 = vlaneseq
    %v4884 = vshrl.u32 %v4883, 7
    %v4885 = vsub.s32 %v1727, %v4884
    %v4886 = vrot.slane %v3767, %v4885
    %v4887 = vsel %vm1732, %v4886, %v4882
    %v4888 = vlaneseq
    %v4889 = vshrl.u32 %v4888, 7
    %v4890 = vsub.s32 %v1734, %v4889
    %v4891 = vrot.slane %v3770, %v4890
    %v4892 = vsel %vm1739, %v4891, %v4887
    %v4893 = vlaneseq
    %v4894 = vshrl.u32 %v4893, 7
    %v4895 = vsub.s32 %v1741, %v4894
    %v4896 = vrot.slane %v3773, %v4895
    %v4897 = vsel %vm1746, %v4896, %v4892
    %v4898 = vlaneseq
    %v4899 = vshrl.u32 %v4898, 7
    %v4900 = vsub.s32 %v1673, %v4899
    %v4901 = vrot.slane %v3776, %v4900
    %v4902 = vlaneseq
    %v4903 = vshrl.u32 %v4902, 7
    %v4904 = vsub.s32 %v1678, %v4903
    %v4905 = vrot.slane %v3779, %v4904
    %v4906 = vsel %vm1683, %v4905, %v4901
    %v4907 = vlaneseq
    %v4908 = vshrl.u32 %v4907, 7
    %v4909 = vsub.s32 %v1685, %v4908
    %v4910 = vrot.slane %v3782, %v4909
    %v4911 = vsel %vm1690, %v4910, %v4906
    %v4912 = vlaneseq
    %v4913 = vshrl.u32 %v4912, 7
    %v4914 = vsub.s32 %v1692, %v4913
    %v4915 = vrot.slane %v3785, %v4914
    %v4916 = vsel %vm1697, %v4915, %v4911
    %v4917 = vlaneseq
    %v4918 = vshrl.u32 %v4917, 7
    %v4919 = vsub.s32 %v1699, %v4918
    %v4920 = vrot.slane %v3788, %v4919
    %v4921 = vsel %vm1704, %v4920, %v4916
    %v4922 = vlaneseq
    %v4923 = vshrl.u32 %v4922, 7
    %v4924 = vsub.s32 %v1706, %v4923
    %v4925 = vrot.slane %v3791, %v4924
    %v4926 = vsel %vm1711, %v4925, %v4921
    %v4927 = vlaneseq
    %v4928 = vshrl.u32 %v4927, 7
    %v4929 = vsub.s32 %v1713, %v4928
    %v4930 = vrot.slane %v3794, %v4929
    %v4931 = vsel %vm1718, %v4930, %v4926
    %v4932 = vlaneseq
    %v4933 = vshrl.u32 %v4932, 7
    %v4934 = vsub.s32 %v1720, %v4933
    %v4935 = vrot.slane %v3797, %v4934
    %v4936 = vsel %vm1725, %v4935, %v4931
    %v4937 = vlaneseq
    %v4938 = vshrl.u32 %v4937, 7
    %v4939 = vsub.s32 %v1727, %v4938
    %v4940 = vrot.slane %v3800, %v4939
    %v4941 = vsel %vm1732, %v4940, %v4936
    %v4942 = vlaneseq
    %v4943 = vshrl.u32 %v4942, 7
    %v4944 = vsub.s32 %v1734, %v4943
    %v4945 = vrot.slane %v3803, %v4944
    %v4946 = vsel %vm1739, %v4945, %v4941
    %v4947 = vlaneseq
    %v4948 = vshrl.u32 %v4947, 7
    %v4949 = vsub.s32 %v1741, %v4948
    %v4950 = vrot.slane %v3806, %v4949
    %v4951 = vsel %vm1746, %v4950, %v4946
    %v4952 = vlaneseq
    %v4953 = vshrl.u32 %v4952, 7
    %v4954 = vsub.s32 %v1748, %v4953
    %v4955 = vrot.slane %v3809, %v4954
    %v4956 = vsel %vm1753, %v4955, %v4951
    %v4957 = vlaneseq
    %v4958 = vshrl.u32 %v4957, 7
    %v4959 = vsub.s32 %v1755, %v4958
    %v4960 = vrot.slane %v3812, %v4959
    %v4961 = vsel %vm1760, %v4960, %v4956
    %v4962 = vlaneseq
    %v4963 = vshrl.u32 %v4962, 7
    %v4964 = vsub.s32 %v1762, %v4963
    %v4965 = vrot.slane %v3815, %v4964
    %v4966 = vsel %vm1767, %v4965, %v4961
    %v4967 = vlaneseq
    %v4968 = vshrl.u32 %v4967, 7
    %v4969 = vsub.s32 %v1769, %v4968
    %v4970 = vrot.slane %v3818, %v4969
    %v4971 = vsel %vm1774, %v4970, %v4966
    %v4972 = vlaneseq
    %v4973 = vshrl.u32 %v4972, 7
    %v4974 = vsub.s32 %v1776, %v4973
    %v4975 = vrot.slane %v3821, %v4974
    %v4976 = vsel %vm1781, %v4975, %v4971
    %v4977 = vlaneseq
    %v4978 = vshrl.u32 %v4977, 7
    %v4979 = vsub.s32 %v1673, %v4978
    %v4980 = vrot.slane %v3824, %v4979
    %v4981 = vlaneseq
    %v4982 = vshrl.u32 %v4981, 7
    %v4983 = vsub.s32 %v1678, %v4982
    %v4984 = vrot.slane %v3827, %v4983
    %v4985 = vsel %vm1683, %v4984, %v4980
    %v4986 = vlaneseq
    %v4987 = vshrl.u32 %v4986, 7
    %v4988 = vsub.s32 %v1685, %v4987
    %v4989 = vrot.slane %v3830, %v4988
    %v4990 = vsel %vm1690, %v4989, %v4985
    %v4991 = vlaneseq
    %v4992 = vshrl.u32 %v4991, 7
    %v4993 = vsub.s32 %v1692, %v4992
    %v4994 = vrot.slane %v3833, %v4993
    %v4995 = vsel %vm1697, %v4994, %v4990
    %v4996 = vlaneseq
    %v4997 = vshrl.u32 %v4996, 7
    %v4998 = vsub.s32 %v1699, %v4997
    %v4999 = vrot.slane %v3836, %v4998
    %v5000 = vsel %vm1704, %v4999, %v4995
    %v5001 = vlaneseq
    %v5002 = vshrl.u32 %v5001, 7
    %v5003 = vsub.s32 %v1706, %v5002
    %v5004 = vrot.slane %v3839, %v5003
    %v5005 = vsel %vm1711, %v5004, %v5000
    %v5006 = vlaneseq
    %v5007 = vshrl.u32 %v5006, 7
    %v5008 = vsub.s32 %v1713, %v5007
    %v5009 = vrot.slane %v3842, %v5008
    %v5010 = vsel %vm1718, %v5009, %v5005
    %v5011 = vlaneseq
    %v5012 = vshrl.u32 %v5011, 7
    %v5013 = vsub.s32 %v1720, %v5012
    %v5014 = vrot.slane %v3845, %v5013
    %v5015 = vsel %vm1725, %v5014, %v5010
    %v5016 = vlaneseq
    %v5017 = vshrl.u32 %v5016, 7
    %v5018 = vsub.s32 %v1727, %v5017
    %v5019 = vrot.slane %v3848, %v5018
    %v5020 = vsel %vm1732, %v5019, %v5015
    %v5021 = vlaneseq
    %v5022 = vshrl.u32 %v5021, 7
    %v5023 = vsub.s32 %v1734, %v5022
    %v5024 = vrot.slane %v3851, %v5023
    %v5025 = vsel %vm1739, %v5024, %v5020
    %v5026 = vlaneseq
    %v5027 = vshrl.u32 %v5026, 7
    %v5028 = vsub.s32 %v1741, %v5027
    %v5029 = vrot.slane %v3854, %v5028
    %v5030 = vsel %vm1746, %v5029, %v5025
    %v5031 = vlaneseq
    %v5032 = vshrl.u32 %v5031, 7
    %v5033 = vsub.s32 %v1673, %v5032
    %v5034 = vrot.slane %v3857, %v5033
    %v5035 = vlaneseq
    %v5036 = vshrl.u32 %v5035, 7
    %v5037 = vsub.s32 %v1678, %v5036
    %v5038 = vrot.slane %v3860, %v5037
    %v5039 = vsel %vm1683, %v5038, %v5034
    %v5040 = vlaneseq
    %v5041 = vshrl.u32 %v5040, 7
    %v5042 = vsub.s32 %v1685, %v5041
    %v5043 = vrot.slane %v3863, %v5042
    %v5044 = vsel %vm1690, %v5043, %v5039
    %v5045 = vlaneseq
    %v5046 = vshrl.u32 %v5045, 7
    %v5047 = vsub.s32 %v1692, %v5046
    %v5048 = vrot.slane %v3866, %v5047
    %v5049 = vsel %vm1697, %v5048, %v5044
    %v5050 = vlaneseq
    %v5051 = vshrl.u32 %v5050, 7
    %v5052 = vsub.s32 %v1699, %v5051
    %v5053 = vrot.slane %v3869, %v5052
    %v5054 = vsel %vm1704, %v5053, %v5049
    %v5055 = vlaneseq
    %v5056 = vshrl.u32 %v5055, 7
    %v5057 = vsub.s32 %v1706, %v5056
    %v5058 = vrot.slane %v3872, %v5057
    %v5059 = vsel %vm1711, %v5058, %v5054
    %v5060 = vlaneseq
    %v5061 = vshrl.u32 %v5060, 7
    %v5062 = vsub.s32 %v1713, %v5061
    %v5063 = vrot.slane %v3875, %v5062
    %v5064 = vsel %vm1718, %v5063, %v5059
    %v5065 = vlaneseq
    %v5066 = vshrl.u32 %v5065, 7
    %v5067 = vsub.s32 %v1720, %v5066
    %v5068 = vrot.slane %v3878, %v5067
    %v5069 = vsel %vm1725, %v5068, %v5064
    %v5070 = vlaneseq
    %v5071 = vshrl.u32 %v5070, 7
    %v5072 = vsub.s32 %v1727, %v5071
    %v5073 = vrot.slane %v3881, %v5072
    %v5074 = vsel %vm1732, %v5073, %v5069
    %v5075 = vlaneseq
    %v5076 = vshrl.u32 %v5075, 7
    %v5077 = vsub.s32 %v1734, %v5076
    %v5078 = vrot.slane %v3884, %v5077
    %v5079 = vsel %vm1739, %v5078, %v5074
    %v5080 = vlaneseq
    %v5081 = vshrl.u32 %v5080, 7
    %v5082 = vsub.s32 %v1741, %v5081
    %v5083 = vrot.slane %v3887, %v5082
    %v5084 = vsel %vm1746, %v5083, %v5079
    %v5085 = vlaneseq
    %v5086 = vshrl.u32 %v5085, 7
    %v5087 = vsub.s32 %v1748, %v5086
    %v5088 = vrot.slane %v3890, %v5087
    %v5089 = vsel %vm1753, %v5088, %v5084
    %v5090 = vlaneseq
    %v5091 = vshrl.u32 %v5090, 7
    %v5092 = vsub.s32 %v1755, %v5091
    %v5093 = vrot.slane %v3893, %v5092
    %v5094 = vsel %vm1760, %v5093, %v5089
    %v5095 = vlaneseq
    %v5096 = vshrl.u32 %v5095, 7
    %v5097 = vsub.s32 %v1762, %v5096
    %v5098 = vrot.slane %v3896, %v5097
    %v5099 = vsel %vm1767, %v5098, %v5094
    %v5100 = vlaneseq
    %v5101 = vshrl.u32 %v5100, 7
    %v5102 = vsub.s32 %v1769, %v5101
    %v5103 = vrot.slane %v3899, %v5102
    %v5104 = vsel %vm1774, %v5103, %v5099
    %v5105 = vlaneseq
    %v5106 = vshrl.u32 %v5105, 7
    %v5107 = vsub.s32 %v1776, %v5106
    %v5108 = vrot.slane %v3902, %v5107
    %v5109 = vsel %vm1781, %v5108, %v5104
    %v5110 = vlaneseq
    %v5111 = vshrl.u32 %v5110, 7
    %v5112 = vsub.s32 %v1673, %v5111
    %v5113 = vrot.slane %v3905, %v5112
    %v5114 = vlaneseq
    %v5115 = vshrl.u32 %v5114, 7
    %v5116 = vsub.s32 %v1678, %v5115
    %v5117 = vrot.slane %v3908, %v5116
    %v5118 = vsel %vm1683, %v5117, %v5113
    %v5119 = vlaneseq
    %v5120 = vshrl.u32 %v5119, 7
    %v5121 = vsub.s32 %v1685, %v5120
    %v5122 = vrot.slane %v3911, %v5121
    %v5123 = vsel %vm1690, %v5122, %v5118
    %v5124 = vlaneseq
    %v5125 = vshrl.u32 %v5124, 7
    %v5126 = vsub.s32 %v1692, %v5125
    %v5127 = vrot.slane %v3914, %v5126
    %v5128 = vsel %vm1697, %v5127, %v5123
    %v5129 = vlaneseq
    %v5130 = vshrl.u32 %v5129, 7
    %v5131 = vsub.s32 %v1699, %v5130
    %v5132 = vrot.slane %v3917, %v5131
    %v5133 = vsel %vm1704, %v5132, %v5128
    %v5134 = vlaneseq
    %v5135 = vshrl.u32 %v5134, 7
    %v5136 = vsub.s32 %v1706, %v5135
    %v5137 = vrot.slane %v3920, %v5136
    %v5138 = vsel %vm1711, %v5137, %v5133
    %v5139 = vlaneseq
    %v5140 = vshrl.u32 %v5139, 7
    %v5141 = vsub.s32 %v1713, %v5140
    %v5142 = vrot.slane %v3923, %v5141
    %v5143 = vsel %vm1718, %v5142, %v5138
    %v5144 = vlaneseq
    %v5145 = vshrl.u32 %v5144, 7
    %v5146 = vsub.s32 %v1720, %v5145
    %v5147 = vrot.slane %v3926, %v5146
    %v5148 = vsel %vm1725, %v5147, %v5143
    %v5149 = vlaneseq
    %v5150 = vshrl.u32 %v5149, 7
    %v5151 = vsub.s32 %v1727, %v5150
    %v5152 = vrot.slane %v3929, %v5151
    %v5153 = vsel %vm1732, %v5152, %v5148
    %v5154 = vlaneseq
    %v5155 = vshrl.u32 %v5154, 7
    %v5156 = vsub.s32 %v1734, %v5155
    %v5157 = vrot.slane %v3932, %v5156
    %v5158 = vsel %vm1739, %v5157, %v5153
    %v5159 = vlaneseq
    %v5160 = vshrl.u32 %v5159, 7
    %v5161 = vsub.s32 %v1741, %v5160
    %v5162 = vrot.slane %v3935, %v5161
    %v5163 = vsel %vm1746, %v5162, %v5158
    %v5164 = vlaneseq
    %v5165 = vshrl.u32 %v5164, 7
    %v5166 = vsub.s32 %v1673, %v5165
    %v5167 = vrot.slane %v3938, %v5166
    %v5168 = vlaneseq
    %v5169 = vshrl.u32 %v5168, 7
    %v5170 = vsub.s32 %v1678, %v5169
    %v5171 = vrot.slane %v3941, %v5170
    %v5172 = vsel %vm1683, %v5171, %v5167
    %v5173 = vlaneseq
    %v5174 = vshrl.u32 %v5173, 7
    %v5175 = vsub.s32 %v1685, %v5174
    %v5176 = vrot.slane %v3944, %v5175
    %v5177 = vsel %vm1690, %v5176, %v5172
    %v5178 = vlaneseq
    %v5179 = vshrl.u32 %v5178, 7
    %v5180 = vsub.s32 %v1692, %v5179
    %v5181 = vrot.slane %v3947, %v5180
    %v5182 = vsel %vm1697, %v5181, %v5177
    %v5183 = vlaneseq
    %v5184 = vshrl.u32 %v5183, 7
    %v5185 = vsub.s32 %v1699, %v5184
    %v5186 = vrot.slane %v3950, %v5185
    %v5187 = vsel %vm1704, %v5186, %v5182
    %v5188 = vlaneseq
    %v5189 = vshrl.u32 %v5188, 7
    %v5190 = vsub.s32 %v1706, %v5189
    %v5191 = vrot.slane %v3953, %v5190
    %v5192 = vsel %vm1711, %v5191, %v5187
    %v5193 = vlaneseq
    %v5194 = vshrl.u32 %v5193, 7
    %v5195 = vsub.s32 %v1713, %v5194
    %v5196 = vrot.slane %v3956, %v5195
    %v5197 = vsel %vm1718, %v5196, %v5192
    %v5198 = vlaneseq
    %v5199 = vshrl.u32 %v5198, 7
    %v5200 = vsub.s32 %v1720, %v5199
    %v5201 = vrot.slane %v3959, %v5200
    %v5202 = vsel %vm1725, %v5201, %v5197
    %v5203 = vlaneseq
    %v5204 = vshrl.u32 %v5203, 7
    %v5205 = vsub.s32 %v1727, %v5204
    %v5206 = vrot.slane %v3962, %v5205
    %v5207 = vsel %vm1732, %v5206, %v5202
    %v5208 = vlaneseq
    %v5209 = vshrl.u32 %v5208, 7
    %v5210 = vsub.s32 %v1734, %v5209
    %v5211 = vrot.slane %v3965, %v5210
    %v5212 = vsel %vm1739, %v5211, %v5207
    %v5213 = vlaneseq
    %v5214 = vshrl.u32 %v5213, 7
    %v5215 = vsub.s32 %v1741, %v5214
    %v5216 = vrot.slane %v3968, %v5215
    %v5217 = vsel %vm1746, %v5216, %v5212
    %v5218 = vlaneseq
    %v5219 = vshrl.u32 %v5218, 7
    %v5220 = vsub.s32 %v1748, %v5219
    %v5221 = vrot.slane %v3971, %v5220
    %v5222 = vsel %vm1753, %v5221, %v5217
    %v5223 = vlaneseq
    %v5224 = vshrl.u32 %v5223, 7
    %v5225 = vsub.s32 %v1755, %v5224
    %v5226 = vrot.slane %v3974, %v5225
    %v5227 = vsel %vm1760, %v5226, %v5222
    %v5228 = vlaneseq
    %v5229 = vshrl.u32 %v5228, 7
    %v5230 = vsub.s32 %v1762, %v5229
    %v5231 = vrot.slane %v3977, %v5230
    %v5232 = vsel %vm1767, %v5231, %v5227
    %v5233 = vlaneseq
    %v5234 = vshrl.u32 %v5233, 7
    %v5235 = vsub.s32 %v1769, %v5234
    %v5236 = vrot.slane %v3980, %v5235
    %v5237 = vsel %vm1774, %v5236, %v5232
    %v5238 = vlaneseq
    %v5239 = vshrl.u32 %v5238, 7
    %v5240 = vsub.s32 %v1776, %v5239
    %v5241 = vrot.slane %v3983, %v5240
    %v5242 = vsel %vm1781, %v5241, %v5237
    %v5243 = vlaneseq
    %v5244 = vshrl.u32 %v5243, 7
    %v5245 = vsub.s32 %v1673, %v5244
    %v5246 = vrot.slane %v3986, %v5245
    %v5247 = vlaneseq
    %v5248 = vshrl.u32 %v5247, 7
    %v5249 = vsub.s32 %v1678, %v5248
    %v5250 = vrot.slane %v3989, %v5249
    %v5251 = vsel %vm1683, %v5250, %v5246
    %v5252 = vlaneseq
    %v5253 = vshrl.u32 %v5252, 7
    %v5254 = vsub.s32 %v1685, %v5253
    %v5255 = vrot.slane %v3992, %v5254
    %v5256 = vsel %vm1690, %v5255, %v5251
    %v5257 = vlaneseq
    %v5258 = vshrl.u32 %v5257, 7
    %v5259 = vsub.s32 %v1692, %v5258
    %v5260 = vrot.slane %v3995, %v5259
    %v5261 = vsel %vm1697, %v5260, %v5256
    %v5262 = vlaneseq
    %v5263 = vshrl.u32 %v5262, 7
    %v5264 = vsub.s32 %v1699, %v5263
    %v5265 = vrot.slane %v3998, %v5264
    %v5266 = vsel %vm1704, %v5265, %v5261
    %v5267 = vlaneseq
    %v5268 = vshrl.u32 %v5267, 7
    %v5269 = vsub.s32 %v1706, %v5268
    %v5270 = vrot.slane %v4001, %v5269
    %v5271 = vsel %vm1711, %v5270, %v5266
    %v5272 = vlaneseq
    %v5273 = vshrl.u32 %v5272, 7
    %v5274 = vsub.s32 %v1713, %v5273
    %v5275 = vrot.slane %v4004, %v5274
    %v5276 = vsel %vm1718, %v5275, %v5271
    %v5277 = vlaneseq
    %v5278 = vshrl.u32 %v5277, 7
    %v5279 = vsub.s32 %v1720, %v5278
    %v5280 = vrot.slane %v4007, %v5279
    %v5281 = vsel %vm1725, %v5280, %v5276
    %v5282 = vlaneseq
    %v5283 = vshrl.u32 %v5282, 7
    %v5284 = vsub.s32 %v1727, %v5283
    %v5285 = vrot.slane %v4010, %v5284
    %v5286 = vsel %vm1732, %v5285, %v5281
    %v5287 = vlaneseq
    %v5288 = vshrl.u32 %v5287, 7
    %v5289 = vsub.s32 %v1734, %v5288
    %v5290 = vrot.slane %v4013, %v5289
    %v5291 = vsel %vm1739, %v5290, %v5286
    %v5292 = vlaneseq
    %v5293 = vshrl.u32 %v5292, 7
    %v5294 = vsub.s32 %v1741, %v5293
    %v5295 = vrot.slane %v4016, %v5294
    %v5296 = vsel %vm1746, %v5295, %v5291
    %v5297 = vsel %vm2768, %v4444, %v4311
    %v5298 = vsel %vm2770, %v4577, %v5297
    %v5299 = vsel %vm2772, %v4710, %v5298
    %v5300 = vsel %vm2774, %v4843, %v5299
    %v5301 = vsel %vm2776, %v4976, %v5300
    %v5302 = vsel %vm2778, %v5109, %v5301
    %v5303 = vsel %vm2780, %v5242, %v5302
    %v5304 = vsel %vm2768, %v4498, %v4365
    %v5305 = vsel %vm2770, %v4631, %v5304
    %v5306 = vsel %vm2772, %v4764, %v5305
    %v5307 = vsel %vm2774, %v4897, %v5306
    %v5308 = vsel %vm2776, %v5030, %v5307
    %v5309 = vsel %vm2778, %v5163, %v5308
    %v5310 = vsel %vm2780, %v5296, %v5309
    %v5313 = vsel %vm2791, %v5310, 0.0
    %v5314 = vadd.f32 %v5303, %v5313
    %5315 = vadd.xlane.f32.xlu0 %v5314
    %v5316 = vpop.xlane.xlu0 %5315
    %v5317 = vadd.f32 %v5316, %v2803
    %5319 = vset.pattern.permute.xlu0 0
    %5320 = vperm.xlu0 %5319, %v5317
    %v5321 = vpop.permute.xlu0 %5320
    %v5322 = vlaneseq
    %v5323 = vshrl.u32 %v5322, 7
    %v5324 = vsub.s32 %v1673, %v5323
    %v5325 = vrot.slane %v5321, %v5324
    %5327 = vst.msk [vmem:[#allocation2 + $0x1] sm:$0x1] %vm2815, %v5325
    // Predicated region
    $region22: #{my_cnn_forward.1} parent=1 // pred_check
      _
    $region23: #{my_cnn_forward.1} parent=1 // pred_check_branch
      %5329 = sbr.rel (0) target = $region25
    $region24: #{my_cnn_forward.1} parent=1 // pred_region
      %s5331 = ssub.s32 32, 32
      %5332 = vsyncadd [#allocation3], %s5331
      %s5334 = sshll.u32 [#allocation2], 4
      %s5335 = int_to_ptr.vmem [resolvable:$true] %s5334
      %5337 = dma.vmem_to_hbm [thread:$0]  %s5335, 32, %s5, [#allocation3]
    $region25: #{my_cnn_forward.1} parent=1 // pred_fallthru
      _
    // Predicated region
    $region26: #{my_cnn_forward.1} parent=1 // pred_check
      _
    $region27: #{my_cnn_forward.1} parent=1 // pred_check_branch
      %5339 = sbr.rel (0) target = $region29
    $region28: #{my_cnn_forward.1} parent=1 // pred_region
      %5340 = dma.done [#allocation3], 32
    $region29: #{my_cnn_forward.1} parent=1 // pred_fallthru
      _
    %5341 = vsyncpa [#allocation3], 1

</llo_original>
